<compile_context>
chip_gen: v7x
topology: tpu7x:2x2x1
jax: 0.10.0
libtpu: 0.0.40
codegen_flags: <defaults>
</compile_context>

<pallas_src>
import functools

import jax
import jax.numpy as jnp
from jax.experimental import pallas as pl
from jax.experimental.pallas import tpu as pltpu


def _layer_geometry(h_params, c_in, h_in, w_in):
    """Static per-layer geometry of the conv/pool stack (stride-1, valid conv)."""
    k = h_params['kernel_size']
    s = h_params['stride']
    pk = h_params['pool_kernel']
    ps = h_params['pool_stride']
    assert s == 1, "TODO(synk): conv stride > 1 not implemented"
    layers = []
    H, W, C = h_in, w_in, c_in
    for _ in range(h_params['n_cnn_layers']):
        c_out = C + h_params['channel_growth']
        hc = H - k + 1                      # conv output height
        wc = W - k + 1                      # valid conv output width
        hp = (hc - pk) // ps + 1            # pooled height
        wp = (wc - pk) // ps + 1            # pooled width
        layers.append(dict(H=H, W=W, C=C, c_out=c_out, hc=hc, wc=wc,
                           hp=hp, wp=wp,
                           # zero tail rows so every im2col tap slice stays in range
                           pad=(k - 1) * W + (k - 1)))
        H, W, C = hp, wp, c_out
    return layers, (H, W, C)


def _fused_cnn_kernel(*refs, layers, k, pk, ps, n_layers):
    """One grid step = one image: conv/pool stack + flatten + MLP head."""
    x_ref = refs[0]
    conv_refs = refs[1:1 + 2 * n_layers]
    w1_ref, b1_ref, w2_ref, b2_ref, w3_ref, b3_ref = refs[1 + 2 * n_layers:-1]
    o_ref = refs[-1]

    x = x_ref[0]                                          # (H*W + pad, Cin), channels-last flat
    flat = None
    for li in range(n_layers):
        g = layers[li]
        W, hc, hp, wp, c_out = g['W'], g['hc'], g['hp'], g['wp'], g['c_out']
        w_ref = conv_refs[2 * li]
        b_ref = conv_refs[2 * li + 1]

        # --- Conv2d(valid) as one im2col matmul over the full row width.
        # Tap (kh, kw) for output flat-row r reads input flat-row r + kh*W + kw,
        # i.e. a contiguous sublane slice.  Output columns >= W_out are garbage
        # (row wrap-around / zero tail) but are never read by a pool window.
        m = hc * W
        cols = [x[kh * W + kw: kh * W + kw + m, :]
                for kh in range(k) for kw in range(k)]
        patches = jnp.concatenate(cols, axis=1)           # (m, k*k*Cin)
        y = jnp.dot(patches, w_ref[...], preferred_element_type=jnp.float32)
        y = jnp.maximum(y + b_ref[...], 0.0)              # bias + ReLU

        # --- MaxPool2d(pk, ps): elementwise row-max over pk full-width slabs
        # (VPU), then one small sublane reduce per pooled column.
        pieces = []
        for ph in range(hp):
            slab = y[ph * ps * W: ph * ps * W + W, :]
            for i in range(1, pk):
                r0 = (ph * ps + i) * W
                slab = jnp.maximum(slab, y[r0: r0 + W, :])
            for pw in range(wp):
                pieces.append(jnp.max(slab[pw * ps: pw * ps + pk, :],
                                      axis=0, keepdims=True))
        if li + 1 < n_layers:
            # Next layer's flat input (hp*wp + tail, c_out); zero tail keeps the
            # next layer's tap slices in range.
            tail = layers[li + 1]['pad']
            pieces.append(jnp.zeros((tail, c_out), jnp.float32))
            x = jnp.concatenate(pieces, axis=0)
        else:
            # Flatten (h, w, c) into one row vector; the NCHW permutation implied
            # by torch.flatten is folded into w1 in the wrapper.
            flat = jnp.concatenate(pieces, axis=1)        # (1, hp*wp*c_out)

    # --- MLP head: fc1+ReLU -> fc2+ReLU -> fc3+sigmoid (dropout = identity).
    h = jnp.dot(flat, w1_ref[...], preferred_element_type=jnp.float32)
    h = jnp.maximum(h + b1_ref[...], 0.0)
    h = jnp.dot(h, w2_ref[...], preferred_element_type=jnp.float32)
    h = jnp.maximum(h + b2_ref[...], 0.0)
    logits = jnp.dot(h, w3_ref[...], preferred_element_type=jnp.float32) + b3_ref[...]
    o_ref[0, :, :] = 1.0 / (1.0 + jnp.exp(-logits))       # (1, n_classes)


def vanilla_cnn_forward(x_nchw, params, h_params):
    n, c0, h_in, w_in = x_nchw.shape
    k = h_params['kernel_size']
    pk, ps = h_params['pool_kernel'], h_params['pool_stride']
    n_layers = h_params['n_cnn_layers']
    layers, (hp_f, wp_f, c_f) = _layer_geometry(h_params, c0, h_in, w_in)

    # Boundary glue: NCHW -> channels-last flat (H*W, C) per image, plus zero
    # tail rows so layer 0's tap slices stay in range.
    x = jnp.transpose(x_nchw, (0, 2, 3, 1)).reshape(n, h_in * w_in, c0)
    x = jnp.pad(x, ((0, 0), (0, layers[0]['pad']), (0, 0)))

    operands = [x]
    in_specs = [pl.BlockSpec((1, x.shape[1], c0), lambda i: (i, 0, 0))]

    def add_vmem_operand(a):
        operands.append(a)
        in_specs.append(pl.BlockSpec(a.shape, lambda i, nd=a.ndim: (0,) * nd))

    # Conv weights flattened to (kh*kw*cin, cout) matching the patch column order.
    for g, (w, b) in zip(layers, params['conv']):
        add_vmem_operand(w.reshape(k * k * g['C'], g['c_out']))
        add_vmem_operand(b.reshape(1, g['c_out']))

    (w1, b1), (w2, b2), (w3, b3) = params['fc']
    d1 = w1.shape[1]
    # Fold torch.flatten's (c, h, w) row ordering into fc1: reorder rows to (h, w, c).
    w1p = (w1.reshape(c_f, hp_f, wp_f, d1)
             .transpose(1, 2, 0, 3)
             .reshape(hp_f * wp_f * c_f, d1))
    for a in (w1p, b1.reshape(1, -1), w2, b2.reshape(1, -1), w3, b3.reshape(1, -1)):
        add_vmem_operand(a)

    n_classes = w3.shape[1]
    kernel = functools.partial(_fused_cnn_kernel, layers=layers,
                               k=k, pk=pk, ps=ps, n_layers=n_layers)
    out = pl.pallas_call(
        kernel,
        out_shape=jax.ShapeDtypeStruct((n, 1, n_classes), jnp.float32),
        grid=(n,),
        in_specs=in_specs,
        out_specs=pl.BlockSpec((1, 1, n_classes), lambda i: (i, 0, 0)),
        compiler_params=pltpu.CompilerParams(
            dimension_semantics=("parallel",)),           # batch across TCs on v7x
    )(*operands)
    return out.reshape(n, n_classes)


def reference_forward(x_nchw, params, h_params):
    """Pure-JAX reference for a correctness check."""
    x = jnp.transpose(x_nchw, (0, 2, 3, 1))
    s = h_params['stride']
    pk, ps = h_params['pool_kernel'], h_params['pool_stride']
    for i in range(h_params['n_cnn_layers']):
        w, b = params['conv'][i]
        x = jax.lax.conv_general_dilated(
            x, w, window_strides=(s, s), padding='VALID',
            dimension_numbers=('NHWC', 'HWIO', 'NHWC')) + b
        x = jnp.maximum(x, 0.0)
        x = jax.lax.reduce_window(x, -jnp.inf, jax.lax.max,
                                  (1, pk, pk, 1), (1, ps, ps, 1), 'VALID')
    x = jnp.transpose(x, (0, 3, 1, 2)).reshape(x.shape[0], -1)
    (w1, b1), (w2, b2), (w3, b3) = params['fc']
    x = jnp.maximum(x @ w1 + b1, 0.0)
    x = jnp.maximum(x @ w2 + b2, 0.0)
    return jax.nn.sigmoid(x @ w3 + b3)


if __name__ == "__main__":
    h_params = dict(n_cnn_layers=2, channel_growth=4, kernel_size=3, stride=1,
                    pool_kernel=2, pool_stride=2, connect_layer_1=32,
                    connect_layer_2=16, dropout_rate=0.25)
    n_classes, n_channels = 10, 4
    h_in, w_in = 16, 16
    batch = 2

    key = jax.random.PRNGKey(0)
    keys = iter(jax.random.split(key, 16))

    # Deterministic parameter init (shapes follow the module's __init__).
    conv_params = []
    c = n_channels
    h, w = h_in, w_in
    k, s = h_params['kernel_size'], h_params['stride']
    pk, ps = h_params['pool_kernel'], h_params['pool_stride']
    for _ in range(h_params['n_cnn_layers']):
        c_out = c + h_params['channel_growth']
        fan_in = c * k * k
        wgt = (jax.random.normal(next(keys), (k, k, c, c_out), jnp.float32)
               / jnp.sqrt(float(fan_in)))                     # HWIO layout
        bias = jax.random.normal(next(keys), (c_out,), jnp.float32) * 0.01
        conv_params.append((wgt, bias))
        h = (h - k) // s + 1
        w = (w - k) // s + 1
        h = (h - pk) // ps + 1
        w = (w - pk) // ps + 1
        c = c_out

    flat = c * h * w
    dims = [flat, h_params['connect_layer_1'], h_params['connect_layer_2'], n_classes]
    fc_params = []
    for din, dout in zip(dims[:-1], dims[1:]):
        wgt = (jax.random.normal(next(keys), (din, dout), jnp.float32)
               / jnp.sqrt(float(din)))                        # (in, out) layout
        bias = jax.random.normal(next(keys), (dout,), jnp.float32) * 0.01
        fc_params.append((wgt, bias))

    params = {'conv': conv_params, 'fc': fc_params}

    x = jax.random.normal(next(keys), (batch, n_channels, h_in, w_in), jnp.float32)

    fwd = jax.jit(lambda xx: vanilla_cnn_forward(xx, params, h_params))
    out = jax.block_until_ready(fwd(x))

    ref = reference_forward(x, params, h_params)
    assert out.shape == (batch, n_classes)
    if not bool(jnp.allclose(out, ref, atol=1e-4, rtol=1e-4)):
        raise AssertionError("Pallas output does not match pure-JAX reference")

    print("KERNEL_OK")
</pallas_src>

<mosaic_0001>
module attributes {stable_mosaic.version = 11 : i64} {
  func.func @_fused_cnn_kernel(%arg0: i32, %arg1: memref<1x290x4xf32, #tpu.memory_space<vmem>>, %arg2: memref<36x8xf32, #tpu.memory_space<vmem>>, %arg3: memref<1x8xf32, #tpu.memory_space<vmem>>, %arg4: memref<72x12xf32, #tpu.memory_space<vmem>>, %arg5: memref<1x12xf32, #tpu.memory_space<vmem>>, %arg6: memref<48x32xf32, #tpu.memory_space<vmem>>, %arg7: memref<1x32xf32, #tpu.memory_space<vmem>>, %arg8: memref<32x16xf32, #tpu.memory_space<vmem>>, %arg9: memref<1x16xf32, #tpu.memory_space<vmem>>, %arg10: memref<16x10xf32, #tpu.memory_space<vmem>>, %arg11: memref<1x10xf32, #tpu.memory_space<vmem>>, %arg12: memref<1x1x10xf32, #tpu.memory_space<vmem>>) attributes {dimension_semantics = [#tpu.dimension_semantics<parallel>], iteration_bounds = array<i64: 2>, scalar_prefetch = 0 : i64, scratch_operands = 0 : i64, tpu.core_type = #tpu.core_type<tc>, window_params = [{transform_indices = @transform_0, window_bounds = array<i64: 1, 290, 4>}, {pipeline_mode = #tpu.pipeline_mode<synchronous>, transform_indices = @transform_1, window_bounds = array<i64: 36, 8>}, {pipeline_mode = #tpu.pipeline_mode<synchronous>, transform_indices = @transform_2, window_bounds = array<i64: 1, 8>}, {pipeline_mode = #tpu.pipeline_mode<synchronous>, transform_indices = @transform_3, window_bounds = array<i64: 72, 12>}, {pipeline_mode = #tpu.pipeline_mode<synchronous>, transform_indices = @transform_4, window_bounds = array<i64: 1, 12>}, {pipeline_mode = #tpu.pipeline_mode<synchronous>, transform_indices = @transform_5, window_bounds = array<i64: 48, 32>}, {pipeline_mode = #tpu.pipeline_mode<synchronous>, transform_indices = @transform_6, window_bounds = array<i64: 1, 32>}, {pipeline_mode = #tpu.pipeline_mode<synchronous>, transform_indices = @transform_7, window_bounds = array<i64: 32, 16>}, {pipeline_mode = #tpu.pipeline_mode<synchronous>, transform_indices = @transform_8, window_bounds = array<i64: 1, 16>}, {pipeline_mode = #tpu.pipeline_mode<synchronous>, transform_indices = @transform_9, window_bounds = array<i64: 16, 10>}, {pipeline_mode = #tpu.pipeline_mode<synchronous>, transform_indices = @transform_10, window_bounds = array<i64: 1, 10>}, {transform_indices = @transform_11, window_bounds = array<i64: 1, 1, 10>}]} {
    %c0 = arith.constant 0 : index
    %c0_0 = arith.constant 0 : index
    %c0_1 = arith.constant 0 : index
    %0 = vector.load %arg1[%c0, %c0_0, %c0_1] : memref<1x290x4xf32, #tpu.memory_space<vmem>>, vector<1x290x4xf32>
    %1 = vector.shape_cast %0 : vector<1x290x4xf32> to vector<290x4xf32>
    %2 = vector.extract_strided_slice %1 {offsets = [0, 0], sizes = [224, 4], strides = [1, 1]} : vector<290x4xf32> to vector<224x4xf32>
    %3 = vector.extract_strided_slice %1 {offsets = [1, 0], sizes = [224, 4], strides = [1, 1]} : vector<290x4xf32> to vector<224x4xf32>
    %4 = vector.extract_strided_slice %1 {offsets = [2, 0], sizes = [224, 4], strides = [1, 1]} : vector<290x4xf32> to vector<224x4xf32>
    %5 = vector.extract_strided_slice %1 {offsets = [16, 0], sizes = [224, 4], strides = [1, 1]} : vector<290x4xf32> to vector<224x4xf32>
    %6 = vector.extract_strided_slice %1 {offsets = [17, 0], sizes = [224, 4], strides = [1, 1]} : vector<290x4xf32> to vector<224x4xf32>
    %7 = vector.extract_strided_slice %1 {offsets = [18, 0], sizes = [224, 4], strides = [1, 1]} : vector<290x4xf32> to vector<224x4xf32>
    %8 = vector.extract_strided_slice %1 {offsets = [32, 0], sizes = [224, 4], strides = [1, 1]} : vector<290x4xf32> to vector<224x4xf32>
    %9 = vector.extract_strided_slice %1 {offsets = [33, 0], sizes = [224, 4], strides = [1, 1]} : vector<290x4xf32> to vector<224x4xf32>
    %10 = vector.extract_strided_slice %1 {offsets = [34, 0], sizes = [224, 4], strides = [1, 1]} : vector<290x4xf32> to vector<224x4xf32>
    %11 = tpu.concatenate %2, %3, %4, %5, %6, %7, %8, %9, %10 in 1 : vector<224x4xf32>, vector<224x4xf32>, vector<224x4xf32>, vector<224x4xf32>, vector<224x4xf32>, vector<224x4xf32>, vector<224x4xf32>, vector<224x4xf32>, vector<224x4xf32> -> vector<224x36xf32>
    %c0_2 = arith.constant 0 : index
    %c0_3 = arith.constant 0 : index
    %12 = vector.load %arg2[%c0_2, %c0_3] : memref<36x8xf32, #tpu.memory_space<vmem>>, vector<36x8xf32>
    %cst = arith.constant dense<0.000000e+00> : vector<224x8xf32>
    %13 = tpu.matmul %11, %12, %cst {dimension_numbers = #tpu.dot_dimension_numbers<[1], [0], [0], [1], [0, 0, 1, 1], [], []>} : vector<224x36xf32>, vector<36x8xf32>, vector<224x8xf32> -> vector<224x8xf32>
    %c0_4 = arith.constant 0 : index
    %c0_5 = arith.constant 0 : index
    %14 = vector.load %arg3[%c0_4, %c0_5] : memref<1x8xf32, #tpu.memory_space<vmem>>, vector<1x8xf32>
    %15 = vector.broadcast %14 : vector<1x8xf32> to vector<224x8xf32>
    %16 = arith.addf %13, %15 : vector<224x8xf32>
    %cst_6 = arith.constant 0.000000e+00 : f32
    %17 = vector.broadcast %cst_6 : f32 to vector<224x8xf32>
    %18 = arith.maximumf %16, %17 : vector<224x8xf32>
    %19 = vector.extract_strided_slice %18 {offsets = [0, 0], sizes = [16, 8], strides = [1, 1]} : vector<224x8xf32> to vector<16x8xf32>
    %20 = vector.extract_strided_slice %18 {offsets = [16, 0], sizes = [16, 8], strides = [1, 1]} : vector<224x8xf32> to vector<16x8xf32>
    %21 = arith.maximumf %19, %20 : vector<16x8xf32>
    %22 = vector.extract_strided_slice %21 {offsets = [0, 0], sizes = [2, 8], strides = [1, 1]} : vector<16x8xf32> to vector<2x8xf32>
    %cst_7 = arith.constant dense<0xFF800000> : vector<8xf32>
    %23 = vector.multi_reduction <maximumf>, %22, %cst_7 [0] : vector<2x8xf32> to vector<8xf32>
    %24 = vector.shape_cast %23 : vector<8xf32> to vector<1x8xf32>
    %25 = vector.extract_strided_slice %21 {offsets = [2, 0], sizes = [2, 8], strides = [1, 1]} : vector<16x8xf32> to vector<2x8xf32>
    %cst_8 = arith.constant dense<0xFF800000> : vector<8xf32>
    %26 = vector.multi_reduction <maximumf>, %25, %cst_8 [0] : vector<2x8xf32> to vector<8xf32>
    %27 = vector.shape_cast %26 : vector<8xf32> to vector<1x8xf32>
    %28 = vector.extract_strided_slice %21 {offsets = [4, 0], sizes = [2, 8], strides = [1, 1]} : vector<16x8xf32> to vector<2x8xf32>
    %cst_9 = arith.constant dense<0xFF800000> : vector<8xf32>
    %29 = vector.multi_reduction <maximumf>, %28, %cst_9 [0] : vector<2x8xf32> to vector<8xf32>
    %30 = vector.shape_cast %29 : vector<8xf32> to vector<1x8xf32>
    %31 = vector.extract_strided_slice %21 {offsets = [6, 0], sizes = [2, 8], strides = [1, 1]} : vector<16x8xf32> to vector<2x8xf32>
    %cst_10 = arith.constant dense<0xFF800000> : vector<8xf32>
    %32 = vector.multi_reduction <maximumf>, %31, %cst_10 [0] : vector<2x8xf32> to vector<8xf32>
    %33 = vector.shape_cast %32 : vector<8xf32> to vector<1x8xf32>
    %34 = vector.extract_strided_slice %21 {offsets = [8, 0], sizes = [2, 8], strides = [1, 1]} : vector<16x8xf32> to vector<2x8xf32>
    %cst_11 = arith.constant dense<0xFF800000> : vector<8xf32>
    %35 = vector.multi_reduction <maximumf>, %34, %cst_11 [0] : vector<2x8xf32> to vector<8xf32>
    %36 = vector.shape_cast %35 : vector<8xf32> to vector<1x8xf32>
    %37 = vector.extract_strided_slice %21 {offsets = [10, 0], sizes = [2, 8], strides = [1, 1]} : vector<16x8xf32> to vector<2x8xf32>
    %cst_12 = arith.constant dense<0xFF800000> : vector<8xf32>
    %38 = vector.multi_reduction <maximumf>, %37, %cst_12 [0] : vector<2x8xf32> to vector<8xf32>
    %39 = vector.shape_cast %38 : vector<8xf32> to vector<1x8xf32>
    %40 = vector.extract_strided_slice %21 {offsets = [12, 0], sizes = [2, 8], strides = [1, 1]} : vector<16x8xf32> to vector<2x8xf32>
    %cst_13 = arith.constant dense<0xFF800000> : vector<8xf32>
    %41 = vector.multi_reduction <maximumf>, %40, %cst_13 [0] : vector<2x8xf32> to vector<8xf32>
    %42 = vector.shape_cast %41 : vector<8xf32> to vector<1x8xf32>
    %43 = vector.extract_strided_slice %18 {offsets = [32, 0], sizes = [16, 8], strides = [1, 1]} : vector<224x8xf32> to vector<16x8xf32>
    %44 = vector.extract_strided_slice %18 {offsets = [48, 0], sizes = [16, 8], strides = [1, 1]} : vector<224x8xf32> to vector<16x8xf32>
    %45 = arith.maximumf %43, %44 : vector<16x8xf32>
    %46 = vector.extract_strided_slice %45 {offsets = [0, 0], sizes = [2, 8], strides = [1, 1]} : vector<16x8xf32> to vector<2x8xf32>
    %cst_14 = arith.constant dense<0xFF800000> : vector<8xf32>
    %47 = vector.multi_reduction <maximumf>, %46, %cst_14 [0] : vector<2x8xf32> to vector<8xf32>
    %48 = vector.shape_cast %47 : vector<8xf32> to vector<1x8xf32>
    %49 = vector.extract_strided_slice %45 {offsets = [2, 0], sizes = [2, 8], strides = [1, 1]} : vector<16x8xf32> to vector<2x8xf32>
    %cst_15 = arith.constant dense<0xFF800000> : vector<8xf32>
    %50 = vector.multi_reduction <maximumf>, %49, %cst_15 [0] : vector<2x8xf32> to vector<8xf32>
    %51 = vector.shape_cast %50 : vector<8xf32> to vector<1x8xf32>
    %52 = vector.extract_strided_slice %45 {offsets = [4, 0], sizes = [2, 8], strides = [1, 1]} : vector<16x8xf32> to vector<2x8xf32>
    %cst_16 = arith.constant dense<0xFF800000> : vector<8xf32>
    %53 = vector.multi_reduction <maximumf>, %52, %cst_16 [0] : vector<2x8xf32> to vector<8xf32>
    %54 = vector.shape_cast %53 : vector<8xf32> to vector<1x8xf32>
    %55 = vector.extract_strided_slice %45 {offsets = [6, 0], sizes = [2, 8], strides = [1, 1]} : vector<16x8xf32> to vector<2x8xf32>
    %cst_17 = arith.constant dense<0xFF800000> : vector<8xf32>
    %56 = vector.multi_reduction <maximumf>, %55, %cst_17 [0] : vector<2x8xf32> to vector<8xf32>
    %57 = vector.shape_cast %56 : vector<8xf32> to vector<1x8xf32>
    %58 = vector.extract_strided_slice %45 {offsets = [8, 0], sizes = [2, 8], strides = [1, 1]} : vector<16x8xf32> to vector<2x8xf32>
    %cst_18 = arith.constant dense<0xFF800000> : vector<8xf32>
    %59 = vector.multi_reduction <maximumf>, %58, %cst_18 [0] : vector<2x8xf32> to vector<8xf32>
    %60 = vector.shape_cast %59 : vector<8xf32> to vector<1x8xf32>
    %61 = vector.extract_strided_slice %45 {offsets = [10, 0], sizes = [2, 8], strides = [1, 1]} : vector<16x8xf32> to vector<2x8xf32>
    %cst_19 = arith.constant dense<0xFF800000> : vector<8xf32>
    %62 = vector.multi_reduction <maximumf>, %61, %cst_19 [0] : vector<2x8xf32> to vector<8xf32>
    %63 = vector.shape_cast %62 : vector<8xf32> to vector<1x8xf32>
    %64 = vector.extract_strided_slice %45 {offsets = [12, 0], sizes = [2, 8], strides = [1, 1]} : vector<16x8xf32> to vector<2x8xf32>
    %cst_20 = arith.constant dense<0xFF800000> : vector<8xf32>
    %65 = vector.multi_reduction <maximumf>, %64, %cst_20 [0] : vector<2x8xf32> to vector<8xf32>
    %66 = vector.shape_cast %65 : vector<8xf32> to vector<1x8xf32>
    %67 = vector.extract_strided_slice %18 {offsets = [64, 0], sizes = [16, 8], strides = [1, 1]} : vector<224x8xf32> to vector<16x8xf32>
    %68 = vector.extract_strided_slice %18 {offsets = [80, 0], sizes = [16, 8], strides = [1, 1]} : vector<224x8xf32> to vector<16x8xf32>
    %69 = arith.maximumf %67, %68 : vector<16x8xf32>
    %70 = vector.extract_strided_slice %69 {offsets = [0, 0], sizes = [2, 8], strides = [1, 1]} : vector<16x8xf32> to vector<2x8xf32>
    %cst_21 = arith.constant dense<0xFF800000> : vector<8xf32>
    %71 = vector.multi_reduction <maximumf>, %70, %cst_21 [0] : vector<2x8xf32> to vector<8xf32>
    %72 = vector.shape_cast %71 : vector<8xf32> to vector<1x8xf32>
    %73 = vector.extract_strided_slice %69 {offsets = [2, 0], sizes = [2, 8], strides = [1, 1]} : vector<16x8xf32> to vector<2x8xf32>
    %cst_22 = arith.constant dense<0xFF800000> : vector<8xf32>
    %74 = vector.multi_reduction <maximumf>, %73, %cst_22 [0] : vector<2x8xf32> to vector<8xf32>
    %75 = vector.shape_cast %74 : vector<8xf32> to vector<1x8xf32>
    %76 = vector.extract_strided_slice %69 {offsets = [4, 0], sizes = [2, 8], strides = [1, 1]} : vector<16x8xf32> to vector<2x8xf32>
    %cst_23 = arith.constant dense<0xFF800000> : vector<8xf32>
    %77 = vector.multi_reduction <maximumf>, %76, %cst_23 [0] : vector<2x8xf32> to vector<8xf32>
    %78 = vector.shape_cast %77 : vector<8xf32> to vector<1x8xf32>
    %79 = vector.extract_strided_slice %69 {offsets = [6, 0], sizes = [2, 8], strides = [1, 1]} : vector<16x8xf32> to vector<2x8xf32>
    %cst_24 = arith.constant dense<0xFF800000> : vector<8xf32>
    %80 = vector.multi_reduction <maximumf>, %79, %cst_24 [0] : vector<2x8xf32> to vector<8xf32>
    %81 = vector.shape_cast %80 : vector<8xf32> to vector<1x8xf32>
    %82 = vector.extract_strided_slice %69 {offsets = [8, 0], sizes = [2, 8], strides = [1, 1]} : vector<16x8xf32> to vector<2x8xf32>
    %cst_25 = arith.constant dense<0xFF800000> : vector<8xf32>
    %83 = vector.multi_reduction <maximumf>, %82, %cst_25 [0] : vector<2x8xf32> to vector<8xf32>
    %84 = vector.shape_cast %83 : vector<8xf32> to vector<1x8xf32>
    %85 = vector.extract_strided_slice %69 {offsets = [10, 0], sizes = [2, 8], strides = [1, 1]} : vector<16x8xf32> to vector<2x8xf32>
    %cst_26 = arith.constant dense<0xFF800000> : vector<8xf32>
    %86 = vector.multi_reduction <maximumf>, %85, %cst_26 [0] : vector<2x8xf32> to vector<8xf32>
    %87 = vector.shape_cast %86 : vector<8xf32> to vector<1x8xf32>
    %88 = vector.extract_strided_slice %69 {offsets = [12, 0], sizes = [2, 8], strides = [1, 1]} : vector<16x8xf32> to vector<2x8xf32>
    %cst_27 = arith.constant dense<0xFF800000> : vector<8xf32>
    %89 = vector.multi_reduction <maximumf>, %88, %cst_27 [0] : vector<2x8xf32> to vector<8xf32>
    %90 = vector.shape_cast %89 : vector<8xf32> to vector<1x8xf32>
    %91 = vector.extract_strided_slice %18 {offsets = [96, 0], sizes = [16, 8], strides = [1, 1]} : vector<224x8xf32> to vector<16x8xf32>
    %92 = vector.extract_strided_slice %18 {offsets = [112, 0], sizes = [16, 8], strides = [1, 1]} : vector<224x8xf32> to vector<16x8xf32>
    %93 = arith.maximumf %91, %92 : vector<16x8xf32>
    %94 = vector.extract_strided_slice %93 {offsets = [0, 0], sizes = [2, 8], strides = [1, 1]} : vector<16x8xf32> to vector<2x8xf32>
    %cst_28 = arith.constant dense<0xFF800000> : vector<8xf32>
    %95 = vector.multi_reduction <maximumf>, %94, %cst_28 [0] : vector<2x8xf32> to vector<8xf32>
    %96 = vector.shape_cast %95 : vector<8xf32> to vector<1x8xf32>
    %97 = vector.extract_strided_slice %93 {offsets = [2, 0], sizes = [2, 8], strides = [1, 1]} : vector<16x8xf32> to vector<2x8xf32>
    %cst_29 = arith.constant dense<0xFF800000> : vector<8xf32>
    %98 = vector.multi_reduction <maximumf>, %97, %cst_29 [0] : vector<2x8xf32> to vector<8xf32>
    %99 = vector.shape_cast %98 : vector<8xf32> to vector<1x8xf32>
    %100 = vector.extract_strided_slice %93 {offsets = [4, 0], sizes = [2, 8], strides = [1, 1]} : vector<16x8xf32> to vector<2x8xf32>
    %cst_30 = arith.constant dense<0xFF800000> : vector<8xf32>
    %101 = vector.multi_reduction <maximumf>, %100, %cst_30 [0] : vector<2x8xf32> to vector<8xf32>
    %102 = vector.shape_cast %101 : vector<8xf32> to vector<1x8xf32>
    %103 = vector.extract_strided_slice %93 {offsets = [6, 0], sizes = [2, 8], strides = [1, 1]} : vector<16x8xf32> to vector<2x8xf32>
    %cst_31 = arith.constant dense<0xFF800000> : vector<8xf32>
    %104 = vector.multi_reduction <maximumf>, %103, %cst_31 [0] : vector<2x8xf32> to vector<8xf32>
    %105 = vector.shape_cast %104 : vector<8xf32> to vector<1x8xf32>
    %106 = vector.extract_strided_slice %93 {offsets = [8, 0], sizes = [2, 8], strides = [1, 1]} : vector<16x8xf32> to vector<2x8xf32>
    %cst_32 = arith.constant dense<0xFF800000> : vector<8xf32>
    %107 = vector.multi_reduction <maximumf>, %106, %cst_32 [0] : vector<2x8xf32> to vector<8xf32>
    %108 = vector.shape_cast %107 : vector<8xf32> to vector<1x8xf32>
    %109 = vector.extract_strided_slice %93 {offsets = [10, 0], sizes = [2, 8], strides = [1, 1]} : vector<16x8xf32> to vector<2x8xf32>
    %cst_33 = arith.constant dense<0xFF800000> : vector<8xf32>
    %110 = vector.multi_reduction <maximumf>, %109, %cst_33 [0] : vector<2x8xf32> to vector<8xf32>
    %111 = vector.shape_cast %110 : vector<8xf32> to vector<1x8xf32>
    %112 = vector.extract_strided_slice %93 {offsets = [12, 0], sizes = [2, 8], strides = [1, 1]} : vector<16x8xf32> to vector<2x8xf32>
    %cst_34 = arith.constant dense<0xFF800000> : vector<8xf32>
    %113 = vector.multi_reduction <maximumf>, %112, %cst_34 [0] : vector<2x8xf32> to vector<8xf32>
    %114 = vector.shape_cast %113 : vector<8xf32> to vector<1x8xf32>
    %115 = vector.extract_strided_slice %18 {offsets = [128, 0], sizes = [16, 8], strides = [1, 1]} : vector<224x8xf32> to vector<16x8xf32>
    %116 = vector.extract_strided_slice %18 {offsets = [144, 0], sizes = [16, 8], strides = [1, 1]} : vector<224x8xf32> to vector<16x8xf32>
    %117 = arith.maximumf %115, %116 : vector<16x8xf32>
    %118 = vector.extract_strided_slice %117 {offsets = [0, 0], sizes = [2, 8], strides = [1, 1]} : vector<16x8xf32> to vector<2x8xf32>
    %cst_35 = arith.constant dense<0xFF800000> : vector<8xf32>
    %119 = vector.multi_reduction <maximumf>, %118, %cst_35 [0] : vector<2x8xf32> to vector<8xf32>
    %120 = vector.shape_cast %119 : vector<8xf32> to vector<1x8xf32>
    %121 = vector.extract_strided_slice %117 {offsets = [2, 0], sizes = [2, 8], strides = [1, 1]} : vector<16x8xf32> to vector<2x8xf32>
    %cst_36 = arith.constant dense<0xFF800000> : vector<8xf32>
    %122 = vector.multi_reduction <maximumf>, %121, %cst_36 [0] : vector<2x8xf32> to vector<8xf32>
    %123 = vector.shape_cast %122 : vector<8xf32> to vector<1x8xf32>
    %124 = vector.extract_strided_slice %117 {offsets = [4, 0], sizes = [2, 8], strides = [1, 1]} : vector<16x8xf32> to vector<2x8xf32>
    %cst_37 = arith.constant dense<0xFF800000> : vector<8xf32>
    %125 = vector.multi_reduction <maximumf>, %124, %cst_37 [0] : vector<2x8xf32> to vector<8xf32>
    %126 = vector.shape_cast %125 : vector<8xf32> to vector<1x8xf32>
    %127 = vector.extract_strided_slice %117 {offsets = [6, 0], sizes = [2, 8], strides = [1, 1]} : vector<16x8xf32> to vector<2x8xf32>
    %cst_38 = arith.constant dense<0xFF800000> : vector<8xf32>
    %128 = vector.multi_reduction <maximumf>, %127, %cst_38 [0] : vector<2x8xf32> to vector<8xf32>
    %129 = vector.shape_cast %128 : vector<8xf32> to vector<1x8xf32>
    %130 = vector.extract_strided_slice %117 {offsets = [8, 0], sizes = [2, 8], strides = [1, 1]} : vector<16x8xf32> to vector<2x8xf32>
    %cst_39 = arith.constant dense<0xFF800000> : vector<8xf32>
    %131 = vector.multi_reduction <maximumf>, %130, %cst_39 [0] : vector<2x8xf32> to vector<8xf32>
    %132 = vector.shape_cast %131 : vector<8xf32> to vector<1x8xf32>
    %133 = vector.extract_strided_slice %117 {offsets = [10, 0], sizes = [2, 8], strides = [1, 1]} : vector<16x8xf32> to vector<2x8xf32>
    %cst_40 = arith.constant dense<0xFF800000> : vector<8xf32>
    %134 = vector.multi_reduction <maximumf>, %133, %cst_40 [0] : vector<2x8xf32> to vector<8xf32>
    %135 = vector.shape_cast %134 : vector<8xf32> to vector<1x8xf32>
    %136 = vector.extract_strided_slice %117 {offsets = [12, 0], sizes = [2, 8], strides = [1, 1]} : vector<16x8xf32> to vector<2x8xf32>
    %cst_41 = arith.constant dense<0xFF800000> : vector<8xf32>
    %137 = vector.multi_reduction <maximumf>, %136, %cst_41 [0] : vector<2x8xf32> to vector<8xf32>
    %138 = vector.shape_cast %137 : vector<8xf32> to vector<1x8xf32>
    %139 = vector.extract_strided_slice %18 {offsets = [160, 0], sizes = [16, 8], strides = [1, 1]} : vector<224x8xf32> to vector<16x8xf32>
    %140 = vector.extract_strided_slice %18 {offsets = [176, 0], sizes = [16, 8], strides = [1, 1]} : vector<224x8xf32> to vector<16x8xf32>
    %141 = arith.maximumf %139, %140 : vector<16x8xf32>
    %142 = vector.extract_strided_slice %141 {offsets = [0, 0], sizes = [2, 8], strides = [1, 1]} : vector<16x8xf32> to vector<2x8xf32>
    %cst_42 = arith.constant dense<0xFF800000> : vector<8xf32>
    %143 = vector.multi_reduction <maximumf>, %142, %cst_42 [0] : vector<2x8xf32> to vector<8xf32>
    %144 = vector.shape_cast %143 : vector<8xf32> to vector<1x8xf32>
    %145 = vector.extract_strided_slice %141 {offsets = [2, 0], sizes = [2, 8], strides = [1, 1]} : vector<16x8xf32> to vector<2x8xf32>
    %cst_43 = arith.constant dense<0xFF800000> : vector<8xf32>
    %146 = vector.multi_reduction <maximumf>, %145, %cst_43 [0] : vector<2x8xf32> to vector<8xf32>
    %147 = vector.shape_cast %146 : vector<8xf32> to vector<1x8xf32>
    %148 = vector.extract_strided_slice %141 {offsets = [4, 0], sizes = [2, 8], strides = [1, 1]} : vector<16x8xf32> to vector<2x8xf32>
    %cst_44 = arith.constant dense<0xFF800000> : vector<8xf32>
    %149 = vector.multi_reduction <maximumf>, %148, %cst_44 [0] : vector<2x8xf32> to vector<8xf32>
    %150 = vector.shape_cast %149 : vector<8xf32> to vector<1x8xf32>
    %151 = vector.extract_strided_slice %141 {offsets = [6, 0], sizes = [2, 8], strides = [1, 1]} : vector<16x8xf32> to vector<2x8xf32>
    %cst_45 = arith.constant dense<0xFF800000> : vector<8xf32>
    %152 = vector.multi_reduction <maximumf>, %151, %cst_45 [0] : vector<2x8xf32> to vector<8xf32>
    %153 = vector.shape_cast %152 : vector<8xf32> to vector<1x8xf32>
    %154 = vector.extract_strided_slice %141 {offsets = [8, 0], sizes = [2, 8], strides = [1, 1]} : vector<16x8xf32> to vector<2x8xf32>
    %cst_46 = arith.constant dense<0xFF800000> : vector<8xf32>
    %155 = vector.multi_reduction <maximumf>, %154, %cst_46 [0] : vector<2x8xf32> to vector<8xf32>
    %156 = vector.shape_cast %155 : vector<8xf32> to vector<1x8xf32>
    %157 = vector.extract_strided_slice %141 {offsets = [10, 0], sizes = [2, 8], strides = [1, 1]} : vector<16x8xf32> to vector<2x8xf32>
    %cst_47 = arith.constant dense<0xFF800000> : vector<8xf32>
    %158 = vector.multi_reduction <maximumf>, %157, %cst_47 [0] : vector<2x8xf32> to vector<8xf32>
    %159 = vector.shape_cast %158 : vector<8xf32> to vector<1x8xf32>
    %160 = vector.extract_strided_slice %141 {offsets = [12, 0], sizes = [2, 8], strides = [1, 1]} : vector<16x8xf32> to vector<2x8xf32>
    %cst_48 = arith.constant dense<0xFF800000> : vector<8xf32>
    %161 = vector.multi_reduction <maximumf>, %160, %cst_48 [0] : vector<2x8xf32> to vector<8xf32>
    %162 = vector.shape_cast %161 : vector<8xf32> to vector<1x8xf32>
    %163 = vector.extract_strided_slice %18 {offsets = [192, 0], sizes = [16, 8], strides = [1, 1]} : vector<224x8xf32> to vector<16x8xf32>
    %164 = vector.extract_strided_slice %18 {offsets = [208, 0], sizes = [16, 8], strides = [1, 1]} : vector<224x8xf32> to vector<16x8xf32>
    %165 = arith.maximumf %163, %164 : vector<16x8xf32>
    %166 = vector.extract_strided_slice %165 {offsets = [0, 0], sizes = [2, 8], strides = [1, 1]} : vector<16x8xf32> to vector<2x8xf32>
    %cst_49 = arith.constant dense<0xFF800000> : vector<8xf32>
    %167 = vector.multi_reduction <maximumf>, %166, %cst_49 [0] : vector<2x8xf32> to vector<8xf32>
    %168 = vector.shape_cast %167 : vector<8xf32> to vector<1x8xf32>
    %169 = vector.extract_strided_slice %165 {offsets = [2, 0], sizes = [2, 8], strides = [1, 1]} : vector<16x8xf32> to vector<2x8xf32>
    %cst_50 = arith.constant dense<0xFF800000> : vector<8xf32>
    %170 = vector.multi_reduction <maximumf>, %169, %cst_50 [0] : vector<2x8xf32> to vector<8xf32>
    %171 = vector.shape_cast %170 : vector<8xf32> to vector<1x8xf32>
    %172 = vector.extract_strided_slice %165 {offsets = [4, 0], sizes = [2, 8], strides = [1, 1]} : vector<16x8xf32> to vector<2x8xf32>
    %cst_51 = arith.constant dense<0xFF800000> : vector<8xf32>
    %173 = vector.multi_reduction <maximumf>, %172, %cst_51 [0] : vector<2x8xf32> to vector<8xf32>
    %174 = vector.shape_cast %173 : vector<8xf32> to vector<1x8xf32>
    %175 = vector.extract_strided_slice %165 {offsets = [6, 0], sizes = [2, 8], strides = [1, 1]} : vector<16x8xf32> to vector<2x8xf32>
    %cst_52 = arith.constant dense<0xFF800000> : vector<8xf32>
    %176 = vector.multi_reduction <maximumf>, %175, %cst_52 [0] : vector<2x8xf32> to vector<8xf32>
    %177 = vector.shape_cast %176 : vector<8xf32> to vector<1x8xf32>
    %178 = vector.extract_strided_slice %165 {offsets = [8, 0], sizes = [2, 8], strides = [1, 1]} : vector<16x8xf32> to vector<2x8xf32>
    %cst_53 = arith.constant dense<0xFF800000> : vector<8xf32>
    %179 = vector.multi_reduction <maximumf>, %178, %cst_53 [0] : vector<2x8xf32> to vector<8xf32>
    %180 = vector.shape_cast %179 : vector<8xf32> to vector<1x8xf32>
    %181 = vector.extract_strided_slice %165 {offsets = [10, 0], sizes = [2, 8], strides = [1, 1]} : vector<16x8xf32> to vector<2x8xf32>
    %cst_54 = arith.constant dense<0xFF800000> : vector<8xf32>
    %182 = vector.multi_reduction <maximumf>, %181, %cst_54 [0] : vector<2x8xf32> to vector<8xf32>
    %183 = vector.shape_cast %182 : vector<8xf32> to vector<1x8xf32>
    %184 = vector.extract_strided_slice %165 {offsets = [12, 0], sizes = [2, 8], strides = [1, 1]} : vector<16x8xf32> to vector<2x8xf32>
    %cst_55 = arith.constant dense<0xFF800000> : vector<8xf32>
    %185 = vector.multi_reduction <maximumf>, %184, %cst_55 [0] : vector<2x8xf32> to vector<8xf32>
    %186 = vector.shape_cast %185 : vector<8xf32> to vector<1x8xf32>
    %cst_56 = arith.constant 0.000000e+00 : f32
    %187 = vector.broadcast %cst_56 : f32 to vector<16x8xf32>
    %188 = tpu.concatenate %24, %27, %30, %33, %36, %39, %42, %48, %51, %54, %57, %60, %63, %66, %72, %75 in 0 : vector<1x8xf32>, vector<1x8xf32>, vector<1x8xf32>, vector<1x8xf32>, vector<1x8xf32>, vector<1x8xf32>, vector<1x8xf32>, vector<1x8xf32>, vector<1x8xf32>, vector<1x8xf32>, vector<1x8xf32>, vector<1x8xf32>, vector<1x8xf32>, vector<1x8xf32>, vector<1x8xf32>, vector<1x8xf32> -> vector<16x8xf32>
    %189 = tpu.concatenate %78, %81, %84, %87, %90, %96, %99, %102, %105, %108, %111, %114, %120, %123, %126, %129 in 0 : vector<1x8xf32>, vector<1x8xf32>, vector<1x8xf32>, vector<1x8xf32>, vector<1x8xf32>, vector<1x8xf32>, vector<1x8xf32>, vector<1x8xf32>, vector<1x8xf32>, vector<1x8xf32>, vector<1x8xf32>, vector<1x8xf32>, vector<1x8xf32>, vector<1x8xf32>, vector<1x8xf32>, vector<1x8xf32> -> vector<16x8xf32>
    %190 = tpu.concatenate %132, %135, %138, %144, %147, %150, %153, %156, %159, %162, %168, %171, %174, %177, %180, %183 in 0 : vector<1x8xf32>, vector<1x8xf32>, vector<1x8xf32>, vector<1x8xf32>, vector<1x8xf32>, vector<1x8xf32>, vector<1x8xf32>, vector<1x8xf32>, vector<1x8xf32>, vector<1x8xf32>, vector<1x8xf32>, vector<1x8xf32>, vector<1x8xf32>, vector<1x8xf32>, vector<1x8xf32>, vector<1x8xf32> -> vector<16x8xf32>
    %191 = tpu.concatenate %186, %187 in 0 : vector<1x8xf32>, vector<16x8xf32> -> vector<17x8xf32>
    %192 = tpu.concatenate %188, %189, %190, %191 in 0 : vector<16x8xf32>, vector<16x8xf32>, vector<16x8xf32>, vector<17x8xf32> -> vector<65x8xf32>
    %193 = vector.extract_strided_slice %192 {offsets = [0, 0], sizes = [35, 8], strides = [1, 1]} : vector<65x8xf32> to vector<35x8xf32>
    %194 = vector.extract_strided_slice %192 {offsets = [1, 0], sizes = [35, 8], strides = [1, 1]} : vector<65x8xf32> to vector<35x8xf32>
    %195 = vector.extract_strided_slice %192 {offsets = [2, 0], sizes = [35, 8], strides = [1, 1]} : vector<65x8xf32> to vector<35x8xf32>
    %196 = vector.extract_strided_slice %192 {offsets = [7, 0], sizes = [35, 8], strides = [1, 1]} : vector<65x8xf32> to vector<35x8xf32>
    %197 = vector.extract_strided_slice %192 {offsets = [8, 0], sizes = [35, 8], strides = [1, 1]} : vector<65x8xf32> to vector<35x8xf32>
    %198 = vector.extract_strided_slice %192 {offsets = [9, 0], sizes = [35, 8], strides = [1, 1]} : vector<65x8xf32> to vector<35x8xf32>
    %199 = vector.extract_strided_slice %192 {offsets = [14, 0], sizes = [35, 8], strides = [1, 1]} : vector<65x8xf32> to vector<35x8xf32>
    %200 = vector.extract_strided_slice %192 {offsets = [15, 0], sizes = [35, 8], strides = [1, 1]} : vector<65x8xf32> to vector<35x8xf32>
    %201 = vector.extract_strided_slice %192 {offsets = [16, 0], sizes = [35, 8], strides = [1, 1]} : vector<65x8xf32> to vector<35x8xf32>
    %202 = tpu.concatenate %193, %194, %195, %196, %197, %198, %199, %200, %201 in 1 : vector<35x8xf32>, vector<35x8xf32>, vector<35x8xf32>, vector<35x8xf32>, vector<35x8xf32>, vector<35x8xf32>, vector<35x8xf32>, vector<35x8xf32>, vector<35x8xf32> -> vector<35x72xf32>
    %c0_57 = arith.constant 0 : index
    %c0_58 = arith.constant 0 : index
    %203 = vector.load %arg4[%c0_57, %c0_58] : memref<72x12xf32, #tpu.memory_space<vmem>>, vector<72x12xf32>
    %cst_59 = arith.constant dense<0.000000e+00> : vector<35x12xf32>
    %204 = tpu.matmul %202, %203, %cst_59 {dimension_numbers = #tpu.dot_dimension_numbers<[1], [0], [0], [1], [0, 0, 1, 1], [], []>} : vector<35x72xf32>, vector<72x12xf32>, vector<35x12xf32> -> vector<35x12xf32>
    %c0_60 = arith.constant 0 : index
    %c0_61 = arith.constant 0 : index
    %205 = vector.load %arg5[%c0_60, %c0_61] : memref<1x12xf32, #tpu.memory_space<vmem>>, vector<1x12xf32>
    %206 = vector.broadcast %205 : vector<1x12xf32> to vector<35x12xf32>
    %207 = arith.addf %204, %206 : vector<35x12xf32>
    %cst_62 = arith.constant 0.000000e+00 : f32
    %208 = vector.broadcast %cst_62 : f32 to vector<35x12xf32>
    %209 = arith.maximumf %207, %208 : vector<35x12xf32>
    %210 = vector.extract_strided_slice %209 {offsets = [0, 0], sizes = [7, 12], strides = [1, 1]} : vector<35x12xf32> to vector<7x12xf32>
    %211 = vector.extract_strided_slice %209 {offsets = [7, 0], sizes = [7, 12], strides = [1, 1]} : vector<35x12xf32> to vector<7x12xf32>
    %212 = arith.maximumf %210, %211 : vector<7x12xf32>
    %213 = vector.extract_strided_slice %212 {offsets = [0, 0], sizes = [2, 12], strides = [1, 1]} : vector<7x12xf32> to vector<2x12xf32>
    %cst_63 = arith.constant dense<0xFF800000> : vector<12xf32>
    %214 = vector.multi_reduction <maximumf>, %213, %cst_63 [0] : vector<2x12xf32> to vector<12xf32>
    %215 = vector.shape_cast %214 : vector<12xf32> to vector<1x12xf32>
    %216 = vector.extract_strided_slice %212 {offsets = [2, 0], sizes = [2, 12], strides = [1, 1]} : vector<7x12xf32> to vector<2x12xf32>
    %cst_64 = arith.constant dense<0xFF800000> : vector<12xf32>
    %217 = vector.multi_reduction <maximumf>, %216, %cst_64 [0] : vector<2x12xf32> to vector<12xf32>
    %218 = vector.shape_cast %217 : vector<12xf32> to vector<1x12xf32>
    %219 = vector.extract_strided_slice %209 {offsets = [14, 0], sizes = [7, 12], strides = [1, 1]} : vector<35x12xf32> to vector<7x12xf32>
    %220 = vector.extract_strided_slice %209 {offsets = [21, 0], sizes = [7, 12], strides = [1, 1]} : vector<35x12xf32> to vector<7x12xf32>
    %221 = arith.maximumf %219, %220 : vector<7x12xf32>
    %222 = vector.extract_strided_slice %221 {offsets = [0, 0], sizes = [2, 12], strides = [1, 1]} : vector<7x12xf32> to vector<2x12xf32>
    %cst_65 = arith.constant dense<0xFF800000> : vector<12xf32>
    %223 = vector.multi_reduction <maximumf>, %222, %cst_65 [0] : vector<2x12xf32> to vector<12xf32>
    %224 = vector.shape_cast %223 : vector<12xf32> to vector<1x12xf32>
    %225 = vector.extract_strided_slice %221 {offsets = [2, 0], sizes = [2, 12], strides = [1, 1]} : vector<7x12xf32> to vector<2x12xf32>
    %cst_66 = arith.constant dense<0xFF800000> : vector<12xf32>
    %226 = vector.multi_reduction <maximumf>, %225, %cst_66 [0] : vector<2x12xf32> to vector<12xf32>
    %227 = vector.shape_cast %226 : vector<12xf32> to vector<1x12xf32>
    %228 = tpu.concatenate %215, %218, %224, %227 in 1 : vector<1x12xf32>, vector<1x12xf32>, vector<1x12xf32>, vector<1x12xf32> -> vector<1x48xf32>
    %c0_67 = arith.constant 0 : index
    %c0_68 = arith.constant 0 : index
    %229 = vector.load %arg6[%c0_67, %c0_68] : memref<48x32xf32, #tpu.memory_space<vmem>>, vector<48x32xf32>
    %cst_69 = arith.constant dense<0.000000e+00> : vector<1x32xf32>
    %230 = tpu.matmul %228, %229, %cst_69 {dimension_numbers = #tpu.dot_dimension_numbers<[1], [0], [0], [1], [0, 0, 1, 1], [], []>} : vector<1x48xf32>, vector<48x32xf32>, vector<1x32xf32> -> vector<1x32xf32>
    %c0_70 = arith.constant 0 : index
    %c0_71 = arith.constant 0 : index
    %231 = vector.load %arg7[%c0_70, %c0_71] : memref<1x32xf32, #tpu.memory_space<vmem>>, vector<1x32xf32>
    %232 = arith.addf %230, %231 : vector<1x32xf32>
    %cst_72 = arith.constant 0.000000e+00 : f32
    %233 = vector.broadcast %cst_72 : f32 to vector<1x32xf32>
    %234 = arith.maximumf %232, %233 : vector<1x32xf32>
    %c0_73 = arith.constant 0 : index
    %c0_74 = arith.constant 0 : index
    %235 = vector.load %arg8[%c0_73, %c0_74] : memref<32x16xf32, #tpu.memory_space<vmem>>, vector<32x16xf32>
    %cst_75 = arith.constant dense<0.000000e+00> : vector<1x16xf32>
    %236 = tpu.matmul %234, %235, %cst_75 {dimension_numbers = #tpu.dot_dimension_numbers<[1], [0], [0], [1], [0, 0, 1, 1], [], []>} : vector<1x32xf32>, vector<32x16xf32>, vector<1x16xf32> -> vector<1x16xf32>
    %c0_76 = arith.constant 0 : index
    %c0_77 = arith.constant 0 : index
    %237 = vector.load %arg9[%c0_76, %c0_77] : memref<1x16xf32, #tpu.memory_space<vmem>>, vector<1x16xf32>
    %238 = arith.addf %236, %237 : vector<1x16xf32>
    %cst_78 = arith.constant 0.000000e+00 : f32
    %239 = vector.broadcast %cst_78 : f32 to vector<1x16xf32>
    %240 = arith.maximumf %238, %239 : vector<1x16xf32>
    %c0_79 = arith.constant 0 : index
    %c0_80 = arith.constant 0 : index
    %241 = vector.load %arg10[%c0_79, %c0_80] : memref<16x10xf32, #tpu.memory_space<vmem>>, vector<16x10xf32>
    %cst_81 = arith.constant dense<0.000000e+00> : vector<1x10xf32>
    %242 = tpu.matmul %240, %241, %cst_81 {dimension_numbers = #tpu.dot_dimension_numbers<[1], [0], [0], [1], [0, 0, 1, 1], [], []>} : vector<1x16xf32>, vector<16x10xf32>, vector<1x10xf32> -> vector<1x10xf32>
    %c0_82 = arith.constant 0 : index
    %c0_83 = arith.constant 0 : index
    %243 = vector.load %arg11[%c0_82, %c0_83] : memref<1x10xf32, #tpu.memory_space<vmem>>, vector<1x10xf32>
    %244 = arith.addf %242, %243 : vector<1x10xf32>
    %cst_84 = arith.constant 0.000000e+00 : f32
    %245 = vector.broadcast %cst_84 : f32 to vector<1x10xf32>
    %246 = arith.subf %245, %244 : vector<1x10xf32>
    %247 = math.exp %246 : vector<1x10xf32>
    %cst_85 = arith.constant 1.000000e+00 : f32
    %248 = vector.broadcast %cst_85 : f32 to vector<1x10xf32>
    %249 = arith.addf %248, %247 : vector<1x10xf32>
    %cst_86 = arith.constant 1.000000e+00 : f32
    %250 = vector.broadcast %cst_86 : f32 to vector<1x10xf32>
    %251 = arith.divf %250, %249 : vector<1x10xf32>
    %c0_87 = arith.constant 0 : index
    %c0_88 = arith.constant 0 : index
    %c0_89 = arith.constant 0 : index
    %252 = vector.load %arg12[%c0_87, %c0_88, %c0_89] : memref<1x1x10xf32, #tpu.memory_space<vmem>>, vector<1x1x10xf32>
    %253 = vector.shape_cast %252 : vector<1x1x10xf32> to vector<1x10xf32>
    %254 = vector.shape_cast %251 : vector<1x10xf32> to vector<1x1x10xf32>
    tpu.vector_store %arg12[%c0_87, %c0_88, %c0_89], %254 {strides = array<i32>} : memref<1x1x10xf32, #tpu.memory_space<vmem>>, vector<1x1x10xf32>,
    return
  }
  func.func @transform_0(%arg0: i32) -> (i32, i32, i32) {
    %c0_i32 = arith.constant 0 : i32
    %c0_i32_0 = arith.constant 0 : i32
    %c0_i32_1 = arith.constant 0 : i32
    return %arg0, %c0_i32, %c0_i32_0 : i32, i32, i32
  }
  func.func @transform_1(%arg0: i32) -> (i32, i32) {
    %c0_i32 = arith.constant 0 : i32
    %c0_i32_0 = arith.constant 0 : i32
    %c0_i32_1 = arith.constant 0 : i32
    return %c0_i32, %c0_i32_0 : i32, i32
  }
  func.func @transform_2(%arg0: i32) -> (i32, i32) {
    %c0_i32 = arith.constant 0 : i32
    %c0_i32_0 = arith.constant 0 : i32
    %c0_i32_1 = arith.constant 0 : i32
    return %c0_i32, %c0_i32_0 : i32, i32
  }
  func.func @transform_3(%arg0: i32) -> (i32, i32) {
    %c0_i32 = arith.constant 0 : i32
    %c0_i32_0 = arith.constant 0 : i32
    %c0_i32_1 = arith.constant 0 : i32
    return %c0_i32, %c0_i32_0 : i32, i32
  }
  func.func @transform_4(%arg0: i32) -> (i32, i32) {
    %c0_i32 = arith.constant 0 : i32
    %c0_i32_0 = arith.constant 0 : i32
    %c0_i32_1 = arith.constant 0 : i32
    return %c0_i32, %c0_i32_0 : i32, i32
  }
  func.func @transform_5(%arg0: i32) -> (i32, i32) {
    %c0_i32 = arith.constant 0 : i32
    %c0_i32_0 = arith.constant 0 : i32
    %c0_i32_1 = arith.constant 0 : i32
    return %c0_i32, %c0_i32_0 : i32, i32
  }
  func.func @transform_6(%arg0: i32) -> (i32, i32) {
    %c0_i32 = arith.constant 0 : i32
    %c0_i32_0 = arith.constant 0 : i32
    %c0_i32_1 = arith.constant 0 : i32
    return %c0_i32, %c0_i32_0 : i32, i32
  }
  func.func @transform_7(%arg0: i32) -> (i32, i32) {
    %c0_i32 = arith.constant 0 : i32
    %c0_i32_0 = arith.constant 0 : i32
    %c0_i32_1 = arith.constant 0 : i32
    return %c0_i32, %c0_i32_0 : i32, i32
  }
  func.func @transform_8(%arg0: i32) -> (i32, i32) {
    %c0_i32 = arith.constant 0 : i32
    %c0_i32_0 = arith.constant 0 : i32
    %c0_i32_1 = arith.constant 0 : i32
    return %c0_i32, %c0_i32_0 : i32, i32
  }
  func.func @transform_9(%arg0: i32) -> (i32, i32) {
    %c0_i32 = arith.constant 0 : i32
    %c0_i32_0 = arith.constant 0 : i32
    %c0_i32_1 = arith.constant 0 : i32
    return %c0_i32, %c0_i32_0 : i32, i32
  }
  func.func @transform_10(%arg0: i32) -> (i32, i32) {
    %c0_i32 = arith.constant 0 : i32
    %c0_i32_0 = arith.constant 0 : i32
    %c0_i32_1 = arith.constant 0 : i32
    return %c0_i32, %c0_i32_0 : i32, i32
  }
  func.func @transform_11(%arg0: i32) -> (i32, i32, i32) {
    %c0_i32 = arith.constant 0 : i32
    %c0_i32_0 = arith.constant 0 : i32
    %c0_i32_1 = arith.constant 0 : i32
    return %arg0, %c0_i32, %c0_i32_0 : i32, i32, i32
  }
}

</mosaic_0001>

<llo_original>
// kernel: _lambda_.1
$region0: #{_lambda_.1}
  #allocation0 [shape = 'u32[]', space=smem, size = 0x4, offset = 0x4, fixed_abs, tag = 'smem constant byte address 0x4 - core index']
  #allocation1 [shape = 'u32[144,128]{1,0:T(1,128)}', space=vmem, size = 0x12000, scoped, tag = 'internal scratch']
  %s0 = inlined_call_operand.vmem [shape: f32[2,290,4], index: 0, kind: input, shape index: {}]
  %s1 = inlined_call_operand.vmem [shape: f32[36,8], index: 1, kind: input, shape index: {}]
  %s2 = inlined_call_operand.vmem [shape: f32[1,8], index: 2, kind: input, shape index: {}]
  %s3 = inlined_call_operand.vmem [shape: f32[72,12], index: 3, kind: input, shape index: {}]
  %s4 = inlined_call_operand.vmem [shape: f32[1,12], index: 4, kind: input, shape index: {}]
  %s5 = inlined_call_operand.vmem [shape: f32[48,32], index: 5, kind: input, shape index: {}]
  %s6 = inlined_call_operand.vmem [shape: f32[1,32], index: 6, kind: input, shape index: {}]
  %s7 = inlined_call_operand.vmem [shape: f32[32,16], index: 7, kind: input, shape index: {}]
  %s8 = inlined_call_operand.vmem [shape: f32[1,16], index: 8, kind: input, shape index: {}]
  %s9 = inlined_call_operand.vmem [shape: f32[16,10], index: 9, kind: input, shape index: {}]
  %s10 = inlined_call_operand.vmem [shape: f32[1,10], index: 10, kind: input, shape index: {}]
  %s11 = inlined_call_operand.hbm [shape: f32[2,1,10], index: 11, kind: output, shape index: {}]
  %s12 = sld [smem:[#allocation0]]
  $region77: #{_lambda_.1} parent=0
    _
  %s14 = ssub.s32 1, %s12
  %s15 = scalar_select 0, %s14, %s12
  $region1: #{_lambda_.1} parent=0
    #allocation2 [shape = 'u8[1024]{0}', space=vmem, size = 0x400, scoped, tag = 'output window, operand 0']
    #allocation3 [shape = 's32[2]{0}', space=sflag, size = 0x8, scoped, tag = 'scoped memory for _lambda_.1']
    %16 = vsyncpa [#allocation3], 0
    %s17 = scalar_lea.sflag [#allocation3], 1
    %18 = vsyncpa %s17, 0
    loop: start=0, step=1, limit=4
    $region2: #{_lambda_.1} parent=1 // loop_pre_header
      _
    $region3: #{_lambda_.1} parent=1 // loop_header
      %s20 = sphi 0, %s24
      %p21 = scmp.ge.s32.totalorder %s20, 4
      %s30 = sphi 0, %s32
      %s33 = sphi 0, %s30
      %s34 = sphi 0, %s33
      %s50 = sphi 0, %s34
      %s54 = sphi 0, %s54
      %s56 = sphi 0, %s54
      %s57 = sphi 0, %s56
      %s71 = sphi 0, %s57
      %s75 = sphi 0, %s75
      %s77 = sphi 0, %s75
      %s78 = sphi 0, %s77
      %s92 = sphi 0, %s78
      %s96 = sphi 0, %s96
      %s98 = sphi 0, %s96
      %s99 = sphi 0, %s98
      %s113 = sphi 0, %s99
      %s117 = sphi 0, %s117
      %s119 = sphi 0, %s117
      %s120 = sphi 0, %s119
      %s134 = sphi 0, %s120
      %s138 = sphi 0, %s138
      %s140 = sphi 0, %s138
      %s141 = sphi 0, %s140
      %s155 = sphi 0, %s141
      %s159 = sphi 0, %s159
      %s161 = sphi 0, %s159
      %s162 = sphi 0, %s161
      %s176 = sphi 0, %s162
      %s180 = sphi 0, %s180
      %s182 = sphi 0, %s180
      %s183 = sphi 0, %s182
      %s197 = sphi 0, %s183
      %s201 = sphi 0, %s201
      %s203 = sphi 0, %s201
      %s204 = sphi 0, %s203
      %s218 = sphi 0, %s204
      %s222 = sphi 0, %s222
      %s224 = sphi 0, %s222
      %s225 = sphi 0, %s224
      %s239 = sphi 0, %s225
      %s243 = sphi 0, %s243
      %s245 = sphi 0, %s243
      %s246 = sphi 0, %s245
      %s260 = sphi 0, %s246
      %s266 = sphi 0, %s268
      %s269 = sphi 0, %s266
      %s270 = sphi 0, %s269
      %s286 = sphi 0, %s270
    $region4: #{_lambda_.1} parent=1 // loop_header_branch
      %23 = sbr.rel (%p21) target = $region8
    $region5: #{_lambda_.1} parent=1 // loop_body
      %s25 = ssub.s32 %s20, 1
      %s26 = ssub.s32 %s20, 2
      %s27 = sadd.s32 %s20, 1
      %s28 = ssub.s32 %s20, %s27
      %p29 = scmp.eq.s32.totalorder %s28, 0
      %s31 = sadd.s32 %s30, 1
      %s32 = scalar_select %p29, %s30, %s31
      %p35 = pneg %p29
      %p36 = scmp.eq.s32.totalorder %s20, 1
      %p37 = por %p35, %p36
      %p38 = scmp.ne.s32.totalorder %s30, %s33
      %p39 = scmp.eq.s32.totalorder %s20, 0
      %p40 = por %p38, %p39
      %p41 = scmp.ne.s32.totalorder %s30, %s33
      %p42 = scmp.eq.s32.totalorder %s25, 1
      %p43 = por %p41, %p42
      %p44 = scmp.ne.s32.totalorder %s33, %s34
      %p45 = scmp.eq.s32.totalorder %s25, 0
      %p46 = por %p44, %p45
      %p47 = scmp.ne.s32.totalorder %s33, %s34
      %p48 = scmp.eq.s32.totalorder %s26, 1
      %p49 = por %p47, %p48
      %p51 = scmp.ne.s32.totalorder %s34, %s50
      %p52 = scmp.eq.s32.totalorder %s26, 0
      %p53 = por %p51, %p52
      %s55 = sadd.s32 %s54, 1
      %p58 = scmp.eq.s32.totalorder %s20, 1
      %p59 = scmp.ne.s32.totalorder %s54, %s56
      %p60 = scmp.eq.s32.totalorder %s20, 0
      %p61 = por %p59, %p60
      %p62 = scmp.ne.s32.totalorder %s54, %s56
      %p63 = scmp.eq.s32.totalorder %s25, 1
      %p64 = por %p62, %p63
      %p65 = scmp.ne.s32.totalorder %s56, %s57
      %p66 = scmp.eq.s32.totalorder %s25, 0
      %p67 = por %p65, %p66
      %p68 = scmp.ne.s32.totalorder %s56, %s57
      %p69 = scmp.eq.s32.totalorder %s26, 1
      %p70 = por %p68, %p69
      %p72 = scmp.ne.s32.totalorder %s57, %s71
      %p73 = scmp.eq.s32.totalorder %s26, 0
      %p74 = por %p72, %p73
      %s76 = sadd.s32 %s75, 1
      %p79 = scmp.eq.s32.totalorder %s20, 1
      %p80 = scmp.ne.s32.totalorder %s75, %s77
      %p81 = scmp.eq.s32.totalorder %s20, 0
      %p82 = por %p80, %p81
      %p83 = scmp.ne.s32.totalorder %s75, %s77
      %p84 = scmp.eq.s32.totalorder %s25, 1
      %p85 = por %p83, %p84
      %p86 = scmp.ne.s32.totalorder %s77, %s78
      %p87 = scmp.eq.s32.totalorder %s25, 0
      %p88 = por %p86, %p87
      %p89 = scmp.ne.s32.totalorder %s77, %s78
      %p90 = scmp.eq.s32.totalorder %s26, 1
      %p91 = por %p89, %p90
      %p93 = scmp.ne.s32.totalorder %s78, %s92
      %p94 = scmp.eq.s32.totalorder %s26, 0
      %p95 = por %p93, %p94
      %s97 = sadd.s32 %s96, 1
      %p100 = scmp.eq.s32.totalorder %s20, 1
      %p101 = scmp.ne.s32.totalorder %s96, %s98
      %p102 = scmp.eq.s32.totalorder %s20, 0
      %p103 = por %p101, %p102
      %p104 = scmp.ne.s32.totalorder %s96, %s98
      %p105 = scmp.eq.s32.totalorder %s25, 1
      %p106 = por %p104, %p105
      %p107 = scmp.ne.s32.totalorder %s98, %s99
      %p108 = scmp.eq.s32.totalorder %s25, 0
      %p109 = por %p107, %p108
      %p110 = scmp.ne.s32.totalorder %s98, %s99
      %p111 = scmp.eq.s32.totalorder %s26, 1
      %p112 = por %p110, %p111
      %p114 = scmp.ne.s32.totalorder %s99, %s113
      %p115 = scmp.eq.s32.totalorder %s26, 0
      %p116 = por %p114, %p115
      %s118 = sadd.s32 %s117, 1
      %p121 = scmp.eq.s32.totalorder %s20, 1
      %p122 = scmp.ne.s32.totalorder %s117, %s119
      %p123 = scmp.eq.s32.totalorder %s20, 0
      %p124 = por %p122, %p123
      %p125 = scmp.ne.s32.totalorder %s117, %s119
      %p126 = scmp.eq.s32.totalorder %s25, 1
      %p127 = por %p125, %p126
      %p128 = scmp.ne.s32.totalorder %s119, %s120
      %p129 = scmp.eq.s32.totalorder %s25, 0
      %p130 = por %p128, %p129
      %p131 = scmp.ne.s32.totalorder %s119, %s120
      %p132 = scmp.eq.s32.totalorder %s26, 1
      %p133 = por %p131, %p132
      %p135 = scmp.ne.s32.totalorder %s120, %s134
      %p136 = scmp.eq.s32.totalorder %s26, 0
      %p137 = por %p135, %p136
      %s139 = sadd.s32 %s138, 1
      %p142 = scmp.eq.s32.totalorder %s20, 1
      %p143 = scmp.ne.s32.totalorder %s138, %s140
      %p144 = scmp.eq.s32.totalorder %s20, 0
      %p145 = por %p143, %p144
      %p146 = scmp.ne.s32.totalorder %s138, %s140
      %p147 = scmp.eq.s32.totalorder %s25, 1
      %p148 = por %p146, %p147
      %p149 = scmp.ne.s32.totalorder %s140, %s141
      %p150 = scmp.eq.s32.totalorder %s25, 0
      %p151 = por %p149, %p150
      %p152 = scmp.ne.s32.totalorder %s140, %s141
      %p153 = scmp.eq.s32.totalorder %s26, 1
      %p154 = por %p152, %p153
      %p156 = scmp.ne.s32.totalorder %s141, %s155
      %p157 = scmp.eq.s32.totalorder %s26, 0
      %p158 = por %p156, %p157
      %s160 = sadd.s32 %s159, 1
      %p163 = scmp.eq.s32.totalorder %s20, 1
      %p164 = scmp.ne.s32.totalorder %s159, %s161
      %p165 = scmp.eq.s32.totalorder %s20, 0
      %p166 = por %p164, %p165
      %p167 = scmp.ne.s32.totalorder %s159, %s161
      %p168 = scmp.eq.s32.totalorder %s25, 1
      %p169 = por %p167, %p168
      %p170 = scmp.ne.s32.totalorder %s161, %s162
      %p171 = scmp.eq.s32.totalorder %s25, 0
      %p172 = por %p170, %p171
      %p173 = scmp.ne.s32.totalorder %s161, %s162
      %p174 = scmp.eq.s32.totalorder %s26, 1
      %p175 = por %p173, %p174
      %p177 = scmp.ne.s32.totalorder %s162, %s176
      %p178 = scmp.eq.s32.totalorder %s26, 0
      %p179 = por %p177, %p178
      %s181 = sadd.s32 %s180, 1
      %p184 = scmp.eq.s32.totalorder %s20, 1
      %p185 = scmp.ne.s32.totalorder %s180, %s182
      %p186 = scmp.eq.s32.totalorder %s20, 0
      %p187 = por %p185, %p186
      %p188 = scmp.ne.s32.totalorder %s180, %s182
      %p189 = scmp.eq.s32.totalorder %s25, 1
      %p190 = por %p188, %p189
      %p191 = scmp.ne.s32.totalorder %s182, %s183
      %p192 = scmp.eq.s32.totalorder %s25, 0
      %p193 = por %p191, %p192
      %p194 = scmp.ne.s32.totalorder %s182, %s183
      %p195 = scmp.eq.s32.totalorder %s26, 1
      %p196 = por %p194, %p195
      %p198 = scmp.ne.s32.totalorder %s183, %s197
      %p199 = scmp.eq.s32.totalorder %s26, 0
      %p200 = por %p198, %p199
      %s202 = sadd.s32 %s201, 1
      %p205 = scmp.eq.s32.totalorder %s20, 1
      %p206 = scmp.ne.s32.totalorder %s201, %s203
      %p207 = scmp.eq.s32.totalorder %s20, 0
      %p208 = por %p206, %p207
      %p209 = scmp.ne.s32.totalorder %s201, %s203
      %p210 = scmp.eq.s32.totalorder %s25, 1
      %p211 = por %p209, %p210
      %p212 = scmp.ne.s32.totalorder %s203, %s204
      %p213 = scmp.eq.s32.totalorder %s25, 0
      %p214 = por %p212, %p213
      %p215 = scmp.ne.s32.totalorder %s203, %s204
      %p216 = scmp.eq.s32.totalorder %s26, 1
      %p217 = por %p215, %p216
      %p219 = scmp.ne.s32.totalorder %s204, %s218
      %p220 = scmp.eq.s32.totalorder %s26, 0
      %p221 = por %p219, %p220
      %s223 = sadd.s32 %s222, 1
      %p226 = scmp.eq.s32.totalorder %s20, 1
      %p227 = scmp.ne.s32.totalorder %s222, %s224
      %p228 = scmp.eq.s32.totalorder %s20, 0
      %p229 = por %p227, %p228
      %p230 = scmp.ne.s32.totalorder %s222, %s224
      %p231 = scmp.eq.s32.totalorder %s25, 1
      %p232 = por %p230, %p231
      %p233 = scmp.ne.s32.totalorder %s224, %s225
      %p234 = scmp.eq.s32.totalorder %s25, 0
      %p235 = por %p233, %p234
      %p236 = scmp.ne.s32.totalorder %s224, %s225
      %p237 = scmp.eq.s32.totalorder %s26, 1
      %p238 = por %p236, %p237
      %p240 = scmp.ne.s32.totalorder %s225, %s239
      %p241 = scmp.eq.s32.totalorder %s26, 0
      %p242 = por %p240, %p241
      %s244 = sadd.s32 %s243, 1
      %p247 = scmp.eq.s32.totalorder %s20, 1
      %p248 = scmp.ne.s32.totalorder %s243, %s245
      %p249 = scmp.eq.s32.totalorder %s20, 0
      %p250 = por %p248, %p249
      %p251 = scmp.ne.s32.totalorder %s243, %s245
      %p252 = scmp.eq.s32.totalorder %s25, 1
      %p253 = por %p251, %p252
      %p254 = scmp.ne.s32.totalorder %s245, %s246
      %p255 = scmp.eq.s32.totalorder %s25, 0
      %p256 = por %p254, %p255
      %p257 = scmp.ne.s32.totalorder %s245, %s246
      %p258 = scmp.eq.s32.totalorder %s26, 1
      %p259 = por %p257, %p258
      %p261 = scmp.ne.s32.totalorder %s246, %s260
      %p262 = scmp.eq.s32.totalorder %s26, 0
      %p263 = por %p261, %p262
      %s264 = ssub.s32 %s20, %s27
      %p265 = scmp.eq.s32.totalorder %s264, 0
      %s267 = sadd.s32 %s266, 1
      %s268 = scalar_select %p265, %s266, %s267
      %p271 = pneg %p265
      %p272 = scmp.eq.s32.totalorder %s20, 1
      %p273 = por %p271, %p272
      %p274 = scmp.ne.s32.totalorder %s266, %s269
      %p275 = scmp.eq.s32.totalorder %s20, 0
      %p276 = por %p274, %p275
      %p277 = scmp.ne.s32.totalorder %s266, %s269
      %p278 = scmp.eq.s32.totalorder %s25, 1
      %p279 = por %p277, %p278
      %p280 = scmp.ne.s32.totalorder %s269, %s270
      %p281 = scmp.eq.s32.totalorder %s25, 0
      %p282 = por %p280, %p281
      %p283 = scmp.ne.s32.totalorder %s269, %s270
      %p284 = scmp.eq.s32.totalorder %s26, 1
      %p285 = por %p283, %p284
      %p287 = scmp.ne.s32.totalorder %s270, %s286
      %p288 = scmp.eq.s32.totalorder %s26, 0
      %p289 = por %p287, %p288
      %p290 = scmp.le.s32.totalorder 1, %s20
      %p291 = scmp.lt.s32.totalorder %s20, 3
      %p292 = pnand %p290, %p291
      %p293 = pneg %p292
      // Predicated region
      $region9: #{_lambda_.1} parent=5 // pred_check
        _
      $region10: #{_lambda_.1} parent=5 // pred_check_branch
        %295 = sbr.rel (%p292) target = $region12
      $region11: #{_lambda_.1} parent=5 // pred_region
        %s296 = ssub.s32 %s20, 1
        // Predicated region
        $region13: #{_lambda_.1} parent=11 // pred_check
          %p297 = pneg %p67
        $region14: #{_lambda_.1} parent=11 // pred_check_branch
          %299 = sbr.rel (%p297) target = $region16
        $region15: #{_lambda_.1} parent=11 // pred_region
          _
        $region16: #{_lambda_.1} parent=11 // pred_fallthru
          _
        // Predicated region
        $region17: #{_lambda_.1} parent=11 // pred_check
          %p300 = pneg %p88
        $region18: #{_lambda_.1} parent=11 // pred_check_branch
          %302 = sbr.rel (%p300) target = $region20
        $region19: #{_lambda_.1} parent=11 // pred_region
          _
        $region20: #{_lambda_.1} parent=11 // pred_fallthru
          _
        // Predicated region
        $region21: #{_lambda_.1} parent=11 // pred_check
          %p303 = pneg %p109
        $region22: #{_lambda_.1} parent=11 // pred_check_branch
          %305 = sbr.rel (%p303) target = $region24
        $region23: #{_lambda_.1} parent=11 // pred_region
          _
        $region24: #{_lambda_.1} parent=11 // pred_fallthru
          _
        // Predicated region
        $region25: #{_lambda_.1} parent=11 // pred_check
          %p306 = pneg %p130
        $region26: #{_lambda_.1} parent=11 // pred_check_branch
          %308 = sbr.rel (%p306) target = $region28
        $region27: #{_lambda_.1} parent=11 // pred_region
          _
        $region28: #{_lambda_.1} parent=11 // pred_fallthru
          _
        // Predicated region
        $region29: #{_lambda_.1} parent=11 // pred_check
          %p309 = pneg %p151
        $region30: #{_lambda_.1} parent=11 // pred_check_branch
          %311 = sbr.rel (%p309) target = $region32
        $region31: #{_lambda_.1} parent=11 // pred_region
          _
        $region32: #{_lambda_.1} parent=11 // pred_fallthru
          _
        // Predicated region
        $region33: #{_lambda_.1} parent=11 // pred_check
          %p312 = pneg %p172
        $region34: #{_lambda_.1} parent=11 // pred_check_branch
          %314 = sbr.rel (%p312) target = $region36
        $region35: #{_lambda_.1} parent=11 // pred_region
          _
        $region36: #{_lambda_.1} parent=11 // pred_fallthru
          _
        // Predicated region
        $region37: #{_lambda_.1} parent=11 // pred_check
          %p315 = pneg %p193
        $region38: #{_lambda_.1} parent=11 // pred_check_branch
          %317 = sbr.rel (%p315) target = $region40
        $region39: #{_lambda_.1} parent=11 // pred_region
          _
        $region40: #{_lambda_.1} parent=11 // pred_fallthru
          _
        // Predicated region
        $region41: #{_lambda_.1} parent=11 // pred_check
          %p318 = pneg %p214
        $region42: #{_lambda_.1} parent=11 // pred_check_branch
          %320 = sbr.rel (%p318) target = $region44
        $region43: #{_lambda_.1} parent=11 // pred_region
          _
        $region44: #{_lambda_.1} parent=11 // pred_fallthru
          _
        // Predicated region
        $region45: #{_lambda_.1} parent=11 // pred_check
          %p321 = pneg %p235
        $region46: #{_lambda_.1} parent=11 // pred_check_branch
          %323 = sbr.rel (%p321) target = $region48
        $region47: #{_lambda_.1} parent=11 // pred_region
          _
        $region48: #{_lambda_.1} parent=11 // pred_fallthru
          _
        // Predicated region
        $region49: #{_lambda_.1} parent=11 // pred_check
          %p324 = pneg %p256
        $region50: #{_lambda_.1} parent=11 // pred_check_branch
          %326 = sbr.rel (%p324) target = $region52
        $region51: #{_lambda_.1} parent=11 // pred_region
          _
        $region52: #{_lambda_.1} parent=11 // pred_fallthru
          _
      $region12: #{_lambda_.1} parent=5 // pred_fallthru
        _
      %p327 = scmp.lt.s32.totalorder %s20, 2
      // Predicated region
      $region53: #{_lambda_.1} parent=5 // pred_check
        %p328 = pneg %p327
      $region54: #{_lambda_.1} parent=5 // pred_check_branch
        %330 = sbr.rel (%p328) target = $region56
      $region55: #{_lambda_.1} parent=5 // pred_region
        // Predicated region
        $region57: #{_lambda_.1} parent=55 // pred_check
          %p331 = pneg %p40
        $region58: #{_lambda_.1} parent=55 // pred_check_branch
          %333 = sbr.rel (%p331) target = $region60
        $region59: #{_lambda_.1} parent=55 // pred_region
          %p334 = scmp.lt.s32.totalorder %s20, 1
          %s335 = scalar_select %p334, %s20, 1
          %s336 = smul.addr %s335, 37
          %s337 = smul.addr %s336, 8
          %s338 = scalar_lea.vmem %s0, %s337
        $region60: #{_lambda_.1} parent=55 // pred_fallthru
          _
      $region56: #{_lambda_.1} parent=5 // pred_fallthru
        _
      %p339 = scmp.le.s32.totalorder 1, %s20
      %p340 = scmp.lt.s32.totalorder %s20, 3
      %p341 = pnand %p339, %p340
      %p342 = pneg %p341
      // Predicated region
      $region61: #{_lambda_.1} parent=5 // pred_check
        _
      $region62: #{_lambda_.1} parent=5 // pred_check_branch
        %344 = sbr.rel (%p341) target = $region64
      $region63: #{_lambda_.1} parent=5 // pred_region
        %s345 = ssub.s32 %s20, 1
        %p346 = scmp.lt.s32.totalorder %s25, 1
        %s347 = scalar_select %p346, %s25, 1
        %s348 = smul.addr %s347, 37
        %s349 = smul.addr %s348, 8
        %s350 = scalar_lea.vmem %s0, %s349
        %p351 = pneg %p46
        %p352 = pneg %p43
        %p353 = pneg %p67
        %p354 = pneg %p64
        %p355 = pneg %p88
        %p356 = pneg %p85
        %p357 = pneg %p109
        %p358 = pneg %p106
        %p359 = pneg %p130
        %p360 = pneg %p127
        %p361 = pneg %p151
        %p362 = pneg %p148
        %p363 = pneg %p172
        %p364 = pneg %p169
        %p365 = pneg %p193
        %p366 = pneg %p190
        %p367 = pneg %p214
        %p368 = pneg %p211
        %p369 = pneg %p235
        %p370 = pneg %p232
        %p371 = pneg %p256
        %p372 = pneg %p253
        %p373 = pneg %p282
        %p374 = pneg %p279
        %s375 = sand.u32 %s269, 1
        %s376 = scalar_lea.sflag [#allocation3], %s375
        %s377 = sand.u32 %s269, 1
        %s378 = scalar_lea.vmem [#allocation2], %s377
        %p379 = scmp.lt.s32.totalorder %s25, 1
        %s380 = scalar_select %p379, %s25, 1
        %s381 = smul.addr %s380, 37
        %s382 = smul.addr %s381, 8
        %s383 = scalar_lea.vmem %s0, %s382
        %v384 = vld [vmem:[%s383] sm:$0xff]
        %v385 = vld [vmem:[%s383 + $0x8] sm:$0xff]
        %v386 = vld [vmem:[%s383 + $0x10] sm:$0xff]
        %v387 = vld [vmem:[%s383 + $0x18] sm:$0xff]
        %v388 = vld [vmem:[%s383 + $0x20] sm:$0xff]
        %v389 = vld [vmem:[%s383 + $0x28] sm:$0xff]
        %v390 = vld [vmem:[%s383 + $0x30] sm:$0xff]
        %v391 = vld [vmem:[%s383 + $0x38] sm:$0xff]
        %v392 = vld [vmem:[%s383 + $0x40] sm:$0xff]
        %v393 = vld [vmem:[%s383 + $0x48] sm:$0xff]
        %v394 = vld [vmem:[%s383 + $0x50] sm:$0xff]
        %v395 = vld [vmem:[%s383 + $0x58] sm:$0xff]
        %v396 = vld [vmem:[%s383 + $0x60] sm:$0xff]
        %v397 = vld [vmem:[%s383 + $0x68] sm:$0xff]
        %v398 = vld [vmem:[%s383 + $0x70] sm:$0xff]
        %v399 = vld [vmem:[%s383 + $0x78] sm:$0xff]
        %v400 = vld [vmem:[%s383 + $0x80] sm:$0xff]
        %v401 = vld [vmem:[%s383 + $0x88] sm:$0xff]
        %v402 = vld [vmem:[%s383 + $0x90] sm:$0xff]
        %v403 = vld [vmem:[%s383 + $0x98] sm:$0xff]
        %v404 = vld [vmem:[%s383 + $0xa0] sm:$0xff]
        %v405 = vld [vmem:[%s383 + $0xa8] sm:$0xff]
        %v406 = vld [vmem:[%s383 + $0xb0] sm:$0xff]
        %v407 = vld [vmem:[%s383 + $0xb8] sm:$0xff]
        %v408 = vld [vmem:[%s383 + $0xc0] sm:$0xff]
        %v409 = vld [vmem:[%s383 + $0xc8] sm:$0xff]
        %v410 = vld [vmem:[%s383 + $0xd0] sm:$0xff]
        %v411 = vld [vmem:[%s383 + $0xd8] sm:$0xff]
        %v412 = vld [vmem:[%s383 + $0xe0] sm:$0xff]
        %v413 = vld [vmem:[%s383 + $0xe8] sm:$0xff]
        %v414 = vld [vmem:[%s383 + $0xf0] sm:$0xff]
        %v415 = vld [vmem:[%s383 + $0xf8] sm:$0xff]
        %v416 = vld [vmem:[%s383 + $0x100] sm:$0xff]
        %vm446 = vcmask 1046528
        %v447 = vrot.slane %v384, 1
        %v448 = vrot.slane %v385, 1
        %v449 = vsel %vm446, %v447, %v448
        %v450 = vrot.slane %v386, 1
        %v451 = vsel %vm446, %v448, %v450
        %v452 = vrot.slane %v387, 1
        %v453 = vsel %vm446, %v450, %v452
        %v454 = vrot.slane %v388, 1
        %v455 = vsel %vm446, %v452, %v454
        %v456 = vrot.slane %v389, 1
        %v457 = vsel %vm446, %v454, %v456
        %v458 = vrot.slane %v390, 1
        %v459 = vsel %vm446, %v456, %v458
        %v460 = vrot.slane %v391, 1
        %v461 = vsel %vm446, %v458, %v460
        %v462 = vrot.slane %v392, 1
        %v463 = vsel %vm446, %v460, %v462
        %v464 = vrot.slane %v393, 1
        %v465 = vsel %vm446, %v462, %v464
        %v466 = vrot.slane %v394, 1
        %v467 = vsel %vm446, %v464, %v466
        %v468 = vrot.slane %v395, 1
        %v469 = vsel %vm446, %v466, %v468
        %v470 = vrot.slane %v396, 1
        %v471 = vsel %vm446, %v468, %v470
        %v472 = vrot.slane %v397, 1
        %v473 = vsel %vm446, %v470, %v472
        %v474 = vrot.slane %v398, 1
        %v475 = vsel %vm446, %v472, %v474
        %v476 = vrot.slane %v399, 1
        %v477 = vsel %vm446, %v474, %v476
        %v478 = vrot.slane %v400, 1
        %v479 = vsel %vm446, %v476, %v478
        %v480 = vrot.slane %v401, 1
        %v481 = vsel %vm446, %v478, %v480
        %v482 = vrot.slane %v402, 1
        %v483 = vsel %vm446, %v480, %v482
        %v484 = vrot.slane %v403, 1
        %v485 = vsel %vm446, %v482, %v484
        %v486 = vrot.slane %v404, 1
        %v487 = vsel %vm446, %v484, %v486
        %v488 = vrot.slane %v405, 1
        %v489 = vsel %vm446, %v486, %v488
        %v490 = vrot.slane %v406, 1
        %v491 = vsel %vm446, %v488, %v490
        %v492 = vrot.slane %v407, 1
        %v493 = vsel %vm446, %v490, %v492
        %v494 = vrot.slane %v408, 1
        %v495 = vsel %vm446, %v492, %v494
        %v496 = vrot.slane %v409, 1
        %v497 = vsel %vm446, %v494, %v496
        %v498 = vrot.slane %v410, 1
        %v499 = vsel %vm446, %v496, %v498
        %v500 = vrot.slane %v411, 1
        %v501 = vsel %vm446, %v498, %v500
        %v502 = vrot.slane %v412, 1
        %v503 = vsel %vm446, %v500, %v502
        %504 = vrot.lane.b32.xlu0 %v449, 4
        %v505 = vpop.permute.xlu0 %504
        %506 = vrot.lane.b32.xlu0 %v451, 4
        %v507 = vpop.permute.xlu0 %506
        %508 = vrot.lane.b32.xlu0 %v453, 4
        %v509 = vpop.permute.xlu0 %508
        %510 = vrot.lane.b32.xlu0 %v455, 4
        %v511 = vpop.permute.xlu0 %510
        %512 = vrot.lane.b32.xlu0 %v457, 4
        %v513 = vpop.permute.xlu0 %512
        %514 = vrot.lane.b32.xlu0 %v459, 4
        %v515 = vpop.permute.xlu0 %514
        %516 = vrot.lane.b32.xlu0 %v461, 4
        %v517 = vpop.permute.xlu0 %516
        %518 = vrot.lane.b32.xlu0 %v463, 4
        %v519 = vpop.permute.xlu0 %518
        %520 = vrot.lane.b32.xlu0 %v465, 4
        %v521 = vpop.permute.xlu0 %520
        %522 = vrot.lane.b32.xlu0 %v467, 4
        %v523 = vpop.permute.xlu0 %522
        %524 = vrot.lane.b32.xlu0 %v469, 4
        %v525 = vpop.permute.xlu0 %524
        %526 = vrot.lane.b32.xlu0 %v471, 4
        %v527 = vpop.permute.xlu0 %526
        %528 = vrot.lane.b32.xlu0 %v473, 4
        %v529 = vpop.permute.xlu0 %528
        %530 = vrot.lane.b32.xlu0 %v475, 4
        %v531 = vpop.permute.xlu0 %530
        %532 = vrot.lane.b32.xlu0 %v477, 4
        %v533 = vpop.permute.xlu0 %532
        %534 = vrot.lane.b32.xlu0 %v479, 4
        %v535 = vpop.permute.xlu0 %534
        %536 = vrot.lane.b32.xlu0 %v481, 4
        %v537 = vpop.permute.xlu0 %536
        %538 = vrot.lane.b32.xlu0 %v483, 4
        %v539 = vpop.permute.xlu0 %538
        %540 = vrot.lane.b32.xlu0 %v485, 4
        %v541 = vpop.permute.xlu0 %540
        %542 = vrot.lane.b32.xlu0 %v487, 4
        %v543 = vpop.permute.xlu0 %542
        %544 = vrot.lane.b32.xlu0 %v489, 4
        %v545 = vpop.permute.xlu0 %544
        %546 = vrot.lane.b32.xlu0 %v491, 4
        %v547 = vpop.permute.xlu0 %546
        %548 = vrot.lane.b32.xlu0 %v493, 4
        %v549 = vpop.permute.xlu0 %548
        %550 = vrot.lane.b32.xlu0 %v495, 4
        %v551 = vpop.permute.xlu0 %550
        %552 = vrot.lane.b32.xlu0 %v497, 4
        %v553 = vpop.permute.xlu0 %552
        %554 = vrot.lane.b32.xlu0 %v499, 4
        %v555 = vpop.permute.xlu0 %554
        %556 = vrot.lane.b32.xlu0 %v501, 4
        %v557 = vpop.permute.xlu0 %556
        %558 = vrot.lane.b32.xlu0 %v503, 4
        %v559 = vpop.permute.xlu0 %558
        %vm588 = vcmask 1045504
        %v589 = vrot.slane %v384, 2
        %v590 = vrot.slane %v385, 2
        %v591 = vsel %vm588, %v589, %v590
        %v592 = vrot.slane %v386, 2
        %v593 = vsel %vm588, %v590, %v592
        %v594 = vrot.slane %v387, 2
        %v595 = vsel %vm588, %v592, %v594
        %v596 = vrot.slane %v388, 2
        %v597 = vsel %vm588, %v594, %v596
        %v598 = vrot.slane %v389, 2
        %v599 = vsel %vm588, %v596, %v598
        %v600 = vrot.slane %v390, 2
        %v601 = vsel %vm588, %v598, %v600
        %v602 = vrot.slane %v391, 2
        %v603 = vsel %vm588, %v600, %v602
        %v604 = vrot.slane %v392, 2
        %v605 = vsel %vm588, %v602, %v604
        %v606 = vrot.slane %v393, 2
        %v607 = vsel %vm588, %v604, %v606
        %v608 = vrot.slane %v394, 2
        %v609 = vsel %vm588, %v606, %v608
        %v610 = vrot.slane %v395, 2
        %v611 = vsel %vm588, %v608, %v610
        %v612 = vrot.slane %v396, 2
        %v613 = vsel %vm588, %v610, %v612
        %v614 = vrot.slane %v397, 2
        %v615 = vsel %vm588, %v612, %v614
        %v616 = vrot.slane %v398, 2
        %v617 = vsel %vm588, %v614, %v616
        %v618 = vrot.slane %v399, 2
        %v619 = vsel %vm588, %v616, %v618
        %v620 = vrot.slane %v400, 2
        %v621 = vsel %vm588, %v618, %v620
        %v622 = vrot.slane %v401, 2
        %v623 = vsel %vm588, %v620, %v622
        %v624 = vrot.slane %v402, 2
        %v625 = vsel %vm588, %v622, %v624
        %v626 = vrot.slane %v403, 2
        %v627 = vsel %vm588, %v624, %v626
        %v628 = vrot.slane %v404, 2
        %v629 = vsel %vm588, %v626, %v628
        %v630 = vrot.slane %v405, 2
        %v631 = vsel %vm588, %v628, %v630
        %v632 = vrot.slane %v406, 2
        %v633 = vsel %vm588, %v630, %v632
        %v634 = vrot.slane %v407, 2
        %v635 = vsel %vm588, %v632, %v634
        %v636 = vrot.slane %v408, 2
        %v637 = vsel %vm588, %v634, %v636
        %v638 = vrot.slane %v409, 2
        %v639 = vsel %vm588, %v636, %v638
        %v640 = vrot.slane %v410, 2
        %v641 = vsel %vm588, %v638, %v640
        %v642 = vrot.slane %v411, 2
        %v643 = vsel %vm588, %v640, %v642
        %v644 = vrot.slane %v412, 2
        %v645 = vsel %vm588, %v642, %v644
        %646 = vrot.lane.b32.xlu0 %v591, 8
        %v647 = vpop.permute.xlu0 %646
        %648 = vrot.lane.b32.xlu0 %v593, 8
        %v649 = vpop.permute.xlu0 %648
        %650 = vrot.lane.b32.xlu0 %v595, 8
        %v651 = vpop.permute.xlu0 %650
        %652 = vrot.lane.b32.xlu0 %v597, 8
        %v653 = vpop.permute.xlu0 %652
        %654 = vrot.lane.b32.xlu0 %v599, 8
        %v655 = vpop.permute.xlu0 %654
        %656 = vrot.lane.b32.xlu0 %v601, 8
        %v657 = vpop.permute.xlu0 %656
        %658 = vrot.lane.b32.xlu0 %v603, 8
        %v659 = vpop.permute.xlu0 %658
        %660 = vrot.lane.b32.xlu0 %v605, 8
        %v661 = vpop.permute.xlu0 %660
        %662 = vrot.lane.b32.xlu0 %v607, 8
        %v663 = vpop.permute.xlu0 %662
        %664 = vrot.lane.b32.xlu0 %v609, 8
        %v665 = vpop.permute.xlu0 %664
        %666 = vrot.lane.b32.xlu0 %v611, 8
        %v667 = vpop.permute.xlu0 %666
        %668 = vrot.lane.b32.xlu0 %v613, 8
        %v669 = vpop.permute.xlu0 %668
        %670 = vrot.lane.b32.xlu0 %v615, 8
        %v671 = vpop.permute.xlu0 %670
        %672 = vrot.lane.b32.xlu0 %v617, 8
        %v673 = vpop.permute.xlu0 %672
        %674 = vrot.lane.b32.xlu0 %v619, 8
        %v675 = vpop.permute.xlu0 %674
        %676 = vrot.lane.b32.xlu0 %v621, 8
        %v677 = vpop.permute.xlu0 %676
        %678 = vrot.lane.b32.xlu0 %v623, 8
        %v679 = vpop.permute.xlu0 %678
        %680 = vrot.lane.b32.xlu0 %v625, 8
        %v681 = vpop.permute.xlu0 %680
        %682 = vrot.lane.b32.xlu0 %v627, 8
        %v683 = vpop.permute.xlu0 %682
        %684 = vrot.lane.b32.xlu0 %v629, 8
        %v685 = vpop.permute.xlu0 %684
        %686 = vrot.lane.b32.xlu0 %v631, 8
        %v687 = vpop.permute.xlu0 %686
        %688 = vrot.lane.b32.xlu0 %v633, 8
        %v689 = vpop.permute.xlu0 %688
        %690 = vrot.lane.b32.xlu0 %v635, 8
        %v691 = vpop.permute.xlu0 %690
        %692 = vrot.lane.b32.xlu0 %v637, 8
        %v693 = vpop.permute.xlu0 %692
        %694 = vrot.lane.b32.xlu0 %v639, 8
        %v695 = vpop.permute.xlu0 %694
        %696 = vrot.lane.b32.xlu0 %v641, 8
        %v697 = vpop.permute.xlu0 %696
        %698 = vrot.lane.b32.xlu0 %v643, 8
        %v699 = vpop.permute.xlu0 %698
        %700 = vrot.lane.b32.xlu0 %v645, 8
        %v701 = vpop.permute.xlu0 %700
        %731 = vrot.lane.b32.xlu0 %v386, 12
        %v732 = vpop.permute.xlu0 %731
        %733 = vrot.lane.b32.xlu0 %v387, 12
        %v734 = vpop.permute.xlu0 %733
        %735 = vrot.lane.b32.xlu0 %v388, 12
        %v736 = vpop.permute.xlu0 %735
        %737 = vrot.lane.b32.xlu0 %v389, 12
        %v738 = vpop.permute.xlu0 %737
        %739 = vrot.lane.b32.xlu0 %v390, 12
        %v740 = vpop.permute.xlu0 %739
        %741 = vrot.lane.b32.xlu0 %v391, 12
        %v742 = vpop.permute.xlu0 %741
        %743 = vrot.lane.b32.xlu0 %v392, 12
        %v744 = vpop.permute.xlu0 %743
        %745 = vrot.lane.b32.xlu0 %v393, 12
        %v746 = vpop.permute.xlu0 %745
        %747 = vrot.lane.b32.xlu0 %v394, 12
        %v748 = vpop.permute.xlu0 %747
        %749 = vrot.lane.b32.xlu0 %v395, 12
        %v750 = vpop.permute.xlu0 %749
        %751 = vrot.lane.b32.xlu0 %v396, 12
        %v752 = vpop.permute.xlu0 %751
        %753 = vrot.lane.b32.xlu0 %v397, 12
        %v754 = vpop.permute.xlu0 %753
        %755 = vrot.lane.b32.xlu0 %v398, 12
        %v756 = vpop.permute.xlu0 %755
        %757 = vrot.lane.b32.xlu0 %v399, 12
        %v758 = vpop.permute.xlu0 %757
        %759 = vrot.lane.b32.xlu0 %v400, 12
        %v760 = vpop.permute.xlu0 %759
        %761 = vrot.lane.b32.xlu0 %v401, 12
        %v762 = vpop.permute.xlu0 %761
        %763 = vrot.lane.b32.xlu0 %v402, 12
        %v764 = vpop.permute.xlu0 %763
        %765 = vrot.lane.b32.xlu0 %v403, 12
        %v766 = vpop.permute.xlu0 %765
        %767 = vrot.lane.b32.xlu0 %v404, 12
        %v768 = vpop.permute.xlu0 %767
        %769 = vrot.lane.b32.xlu0 %v405, 12
        %v770 = vpop.permute.xlu0 %769
        %771 = vrot.lane.b32.xlu0 %v406, 12
        %v772 = vpop.permute.xlu0 %771
        %773 = vrot.lane.b32.xlu0 %v407, 12
        %v774 = vpop.permute.xlu0 %773
        %775 = vrot.lane.b32.xlu0 %v408, 12
        %v776 = vpop.permute.xlu0 %775
        %777 = vrot.lane.b32.xlu0 %v409, 12
        %v778 = vpop.permute.xlu0 %777
        %779 = vrot.lane.b32.xlu0 %v410, 12
        %v780 = vpop.permute.xlu0 %779
        %781 = vrot.lane.b32.xlu0 %v411, 12
        %v782 = vpop.permute.xlu0 %781
        %783 = vrot.lane.b32.xlu0 %v412, 12
        %v784 = vpop.permute.xlu0 %783
        %785 = vrot.lane.b32.xlu0 %v413, 12
        %v786 = vpop.permute.xlu0 %785
        %v816 = vrot.slane %v413, 1
        %v817 = vsel %vm446, %v502, %v816
        %v818 = vrot.slane %v414, 1
        %v819 = vsel %vm446, %v816, %v818
        %820 = vrot.lane.b32.xlu0 %v453, 16
        %v821 = vpop.permute.xlu0 %820
        %822 = vrot.lane.b32.xlu0 %v455, 16
        %v823 = vpop.permute.xlu0 %822
        %824 = vrot.lane.b32.xlu0 %v457, 16
        %v825 = vpop.permute.xlu0 %824
        %826 = vrot.lane.b32.xlu0 %v459, 16
        %v827 = vpop.permute.xlu0 %826
        %828 = vrot.lane.b32.xlu0 %v461, 16
        %v829 = vpop.permute.xlu0 %828
        %830 = vrot.lane.b32.xlu0 %v463, 16
        %v831 = vpop.permute.xlu0 %830
        %832 = vrot.lane.b32.xlu0 %v465, 16
        %v833 = vpop.permute.xlu0 %832
        %834 = vrot.lane.b32.xlu0 %v467, 16
        %v835 = vpop.permute.xlu0 %834
        %836 = vrot.lane.b32.xlu0 %v469, 16
        %v837 = vpop.permute.xlu0 %836
        %838 = vrot.lane.b32.xlu0 %v471, 16
        %v839 = vpop.permute.xlu0 %838
        %840 = vrot.lane.b32.xlu0 %v473, 16
        %v841 = vpop.permute.xlu0 %840
        %842 = vrot.lane.b32.xlu0 %v475, 16
        %v843 = vpop.permute.xlu0 %842
        %844 = vrot.lane.b32.xlu0 %v477, 16
        %v845 = vpop.permute.xlu0 %844
        %846 = vrot.lane.b32.xlu0 %v479, 16
        %v847 = vpop.permute.xlu0 %846
        %848 = vrot.lane.b32.xlu0 %v481, 16
        %v849 = vpop.permute.xlu0 %848
        %850 = vrot.lane.b32.xlu0 %v483, 16
        %v851 = vpop.permute.xlu0 %850
        %852 = vrot.lane.b32.xlu0 %v485, 16
        %v853 = vpop.permute.xlu0 %852
        %854 = vrot.lane.b32.xlu0 %v487, 16
        %v855 = vpop.permute.xlu0 %854
        %856 = vrot.lane.b32.xlu0 %v489, 16
        %v857 = vpop.permute.xlu0 %856
        %858 = vrot.lane.b32.xlu0 %v491, 16
        %v859 = vpop.permute.xlu0 %858
        %860 = vrot.lane.b32.xlu0 %v493, 16
        %v861 = vpop.permute.xlu0 %860
        %862 = vrot.lane.b32.xlu0 %v495, 16
        %v863 = vpop.permute.xlu0 %862
        %864 = vrot.lane.b32.xlu0 %v497, 16
        %v865 = vpop.permute.xlu0 %864
        %866 = vrot.lane.b32.xlu0 %v499, 16
        %v867 = vpop.permute.xlu0 %866
        %868 = vrot.lane.b32.xlu0 %v501, 16
        %v869 = vpop.permute.xlu0 %868
        %870 = vrot.lane.b32.xlu0 %v503, 16
        %v871 = vpop.permute.xlu0 %870
        %872 = vrot.lane.b32.xlu0 %v817, 16
        %v873 = vpop.permute.xlu0 %872
        %874 = vrot.lane.b32.xlu0 %v819, 16
        %v875 = vpop.permute.xlu0 %874
        %v904 = vrot.slane %v413, 2
        %v905 = vsel %vm588, %v644, %v904
        %v906 = vrot.slane %v414, 2
        %v907 = vsel %vm588, %v904, %v906
        %908 = vrot.lane.b32.xlu0 %v595, 20
        %v909 = vpop.permute.xlu0 %908
        %910 = vrot.lane.b32.xlu0 %v597, 20
        %v911 = vpop.permute.xlu0 %910
        %912 = vrot.lane.b32.xlu0 %v599, 20
        %v913 = vpop.permute.xlu0 %912
        %914 = vrot.lane.b32.xlu0 %v601, 20
        %v915 = vpop.permute.xlu0 %914
        %916 = vrot.lane.b32.xlu0 %v603, 20
        %v917 = vpop.permute.xlu0 %916
        %918 = vrot.lane.b32.xlu0 %v605, 20
        %v919 = vpop.permute.xlu0 %918
        %920 = vrot.lane.b32.xlu0 %v607, 20
        %v921 = vpop.permute.xlu0 %920
        %922 = vrot.lane.b32.xlu0 %v609, 20
        %v923 = vpop.permute.xlu0 %922
        %924 = vrot.lane.b32.xlu0 %v611, 20
        %v925 = vpop.permute.xlu0 %924
        %926 = vrot.lane.b32.xlu0 %v613, 20
        %v927 = vpop.permute.xlu0 %926
        %928 = vrot.lane.b32.xlu0 %v615, 20
        %v929 = vpop.permute.xlu0 %928
        %930 = vrot.lane.b32.xlu0 %v617, 20
        %v931 = vpop.permute.xlu0 %930
        %932 = vrot.lane.b32.xlu0 %v619, 20
        %v933 = vpop.permute.xlu0 %932
        %934 = vrot.lane.b32.xlu0 %v621, 20
        %v935 = vpop.permute.xlu0 %934
        %936 = vrot.lane.b32.xlu0 %v623, 20
        %v937 = vpop.permute.xlu0 %936
        %938 = vrot.lane.b32.xlu0 %v625, 20
        %v939 = vpop.permute.xlu0 %938
        %940 = vrot.lane.b32.xlu0 %v627, 20
        %v941 = vpop.permute.xlu0 %940
        %942 = vrot.lane.b32.xlu0 %v629, 20
        %v943 = vpop.permute.xlu0 %942
        %944 = vrot.lane.b32.xlu0 %v631, 20
        %v945 = vpop.permute.xlu0 %944
        %946 = vrot.lane.b32.xlu0 %v633, 20
        %v947 = vpop.permute.xlu0 %946
        %948 = vrot.lane.b32.xlu0 %v635, 20
        %v949 = vpop.permute.xlu0 %948
        %950 = vrot.lane.b32.xlu0 %v637, 20
        %v951 = vpop.permute.xlu0 %950
        %952 = vrot.lane.b32.xlu0 %v639, 20
        %v953 = vpop.permute.xlu0 %952
        %954 = vrot.lane.b32.xlu0 %v641, 20
        %v955 = vpop.permute.xlu0 %954
        %956 = vrot.lane.b32.xlu0 %v643, 20
        %v957 = vpop.permute.xlu0 %956
        %958 = vrot.lane.b32.xlu0 %v645, 20
        %v959 = vpop.permute.xlu0 %958
        %960 = vrot.lane.b32.xlu0 %v905, 20
        %v961 = vpop.permute.xlu0 %960
        %962 = vrot.lane.b32.xlu0 %v907, 20
        %v963 = vpop.permute.xlu0 %962
        %993 = vrot.lane.b32.xlu0 %v388, 24
        %v994 = vpop.permute.xlu0 %993
        %995 = vrot.lane.b32.xlu0 %v389, 24
        %v996 = vpop.permute.xlu0 %995
        %997 = vrot.lane.b32.xlu0 %v390, 24
        %v998 = vpop.permute.xlu0 %997
        %999 = vrot.lane.b32.xlu0 %v391, 24
        %v1000 = vpop.permute.xlu0 %999
        %1001 = vrot.lane.b32.xlu0 %v392, 24
        %v1002 = vpop.permute.xlu0 %1001
        %1003 = vrot.lane.b32.xlu0 %v393, 24
        %v1004 = vpop.permute.xlu0 %1003
        %1005 = vrot.lane.b32.xlu0 %v394, 24
        %v1006 = vpop.permute.xlu0 %1005
        %1007 = vrot.lane.b32.xlu0 %v395, 24
        %v1008 = vpop.permute.xlu0 %1007
        %1009 = vrot.lane.b32.xlu0 %v396, 24
        %v1010 = vpop.permute.xlu0 %1009
        %1011 = vrot.lane.b32.xlu0 %v397, 24
        %v1012 = vpop.permute.xlu0 %1011
        %1013 = vrot.lane.b32.xlu0 %v398, 24
        %v1014 = vpop.permute.xlu0 %1013
        %1015 = vrot.lane.b32.xlu0 %v399, 24
        %v1016 = vpop.permute.xlu0 %1015
        %1017 = vrot.lane.b32.xlu0 %v400, 24
        %v1018 = vpop.permute.xlu0 %1017
        %1019 = vrot.lane.b32.xlu0 %v401, 24
        %v1020 = vpop.permute.xlu0 %1019
        %1021 = vrot.lane.b32.xlu0 %v402, 24
        %v1022 = vpop.permute.xlu0 %1021
        %1023 = vrot.lane.b32.xlu0 %v403, 24
        %v1024 = vpop.permute.xlu0 %1023
        %1025 = vrot.lane.b32.xlu0 %v404, 24
        %v1026 = vpop.permute.xlu0 %1025
        %1027 = vrot.lane.b32.xlu0 %v405, 24
        %v1028 = vpop.permute.xlu0 %1027
        %1029 = vrot.lane.b32.xlu0 %v406, 24
        %v1030 = vpop.permute.xlu0 %1029
        %1031 = vrot.lane.b32.xlu0 %v407, 24
        %v1032 = vpop.permute.xlu0 %1031
        %1033 = vrot.lane.b32.xlu0 %v408, 24
        %v1034 = vpop.permute.xlu0 %1033
        %1035 = vrot.lane.b32.xlu0 %v409, 24
        %v1036 = vpop.permute.xlu0 %1035
        %1037 = vrot.lane.b32.xlu0 %v410, 24
        %v1038 = vpop.permute.xlu0 %1037
        %1039 = vrot.lane.b32.xlu0 %v411, 24
        %v1040 = vpop.permute.xlu0 %1039
        %1041 = vrot.lane.b32.xlu0 %v412, 24
        %v1042 = vpop.permute.xlu0 %1041
        %1043 = vrot.lane.b32.xlu0 %v413, 24
        %v1044 = vpop.permute.xlu0 %1043
        %1045 = vrot.lane.b32.xlu0 %v414, 24
        %v1046 = vpop.permute.xlu0 %1045
        %1047 = vrot.lane.b32.xlu0 %v415, 24
        %v1048 = vpop.permute.xlu0 %1047
        %v1078 = vrot.slane %v415, 1
        %v1079 = vsel %vm446, %v818, %v1078
        %v1080 = vrot.slane %v416, 1
        %v1081 = vsel %vm446, %v1078, %v1080
        %1082 = vrot.lane.b32.xlu0 %v457, 28
        %v1083 = vpop.permute.xlu0 %1082
        %1084 = vrot.lane.b32.xlu0 %v459, 28
        %v1085 = vpop.permute.xlu0 %1084
        %1086 = vrot.lane.b32.xlu0 %v461, 28
        %v1087 = vpop.permute.xlu0 %1086
        %1088 = vrot.lane.b32.xlu0 %v463, 28
        %v1089 = vpop.permute.xlu0 %1088
        %1090 = vrot.lane.b32.xlu0 %v465, 28
        %v1091 = vpop.permute.xlu0 %1090
        %1092 = vrot.lane.b32.xlu0 %v467, 28
        %v1093 = vpop.permute.xlu0 %1092
        %1094 = vrot.lane.b32.xlu0 %v469, 28
        %v1095 = vpop.permute.xlu0 %1094
        %1096 = vrot.lane.b32.xlu0 %v471, 28
        %v1097 = vpop.permute.xlu0 %1096
        %1098 = vrot.lane.b32.xlu0 %v473, 28
        %v1099 = vpop.permute.xlu0 %1098
        %1100 = vrot.lane.b32.xlu0 %v475, 28
        %v1101 = vpop.permute.xlu0 %1100
        %1102 = vrot.lane.b32.xlu0 %v477, 28
        %v1103 = vpop.permute.xlu0 %1102
        %1104 = vrot.lane.b32.xlu0 %v479, 28
        %v1105 = vpop.permute.xlu0 %1104
        %1106 = vrot.lane.b32.xlu0 %v481, 28
        %v1107 = vpop.permute.xlu0 %1106
        %1108 = vrot.lane.b32.xlu0 %v483, 28
        %v1109 = vpop.permute.xlu0 %1108
        %1110 = vrot.lane.b32.xlu0 %v485, 28
        %v1111 = vpop.permute.xlu0 %1110
        %1112 = vrot.lane.b32.xlu0 %v487, 28
        %v1113 = vpop.permute.xlu0 %1112
        %1114 = vrot.lane.b32.xlu0 %v489, 28
        %v1115 = vpop.permute.xlu0 %1114
        %1116 = vrot.lane.b32.xlu0 %v491, 28
        %v1117 = vpop.permute.xlu0 %1116
        %1118 = vrot.lane.b32.xlu0 %v493, 28
        %v1119 = vpop.permute.xlu0 %1118
        %1120 = vrot.lane.b32.xlu0 %v495, 28
        %v1121 = vpop.permute.xlu0 %1120
        %1122 = vrot.lane.b32.xlu0 %v497, 28
        %v1123 = vpop.permute.xlu0 %1122
        %1124 = vrot.lane.b32.xlu0 %v499, 28
        %v1125 = vpop.permute.xlu0 %1124
        %1126 = vrot.lane.b32.xlu0 %v501, 28
        %v1127 = vpop.permute.xlu0 %1126
        %1128 = vrot.lane.b32.xlu0 %v503, 28
        %v1129 = vpop.permute.xlu0 %1128
        %1130 = vrot.lane.b32.xlu0 %v817, 28
        %v1131 = vpop.permute.xlu0 %1130
        %1132 = vrot.lane.b32.xlu0 %v819, 28
        %v1133 = vpop.permute.xlu0 %1132
        %1134 = vrot.lane.b32.xlu0 %v1079, 28
        %v1135 = vpop.permute.xlu0 %1134
        %1136 = vrot.lane.b32.xlu0 %v1081, 28
        %v1137 = vpop.permute.xlu0 %1136
        %v1166 = vrot.slane %v415, 2
        %v1167 = vsel %vm588, %v906, %v1166
        %v1168 = vrot.slane %v416, 2
        %v1169 = vsel %vm588, %v1166, %v1168
        %1170 = vrot.lane.b32.xlu0 %v599, 32
        %v1171 = vpop.permute.xlu0 %1170
        %1172 = vrot.lane.b32.xlu0 %v601, 32
        %v1173 = vpop.permute.xlu0 %1172
        %1174 = vrot.lane.b32.xlu0 %v603, 32
        %v1175 = vpop.permute.xlu0 %1174
        %1176 = vrot.lane.b32.xlu0 %v605, 32
        %v1177 = vpop.permute.xlu0 %1176
        %1178 = vrot.lane.b32.xlu0 %v607, 32
        %v1179 = vpop.permute.xlu0 %1178
        %1180 = vrot.lane.b32.xlu0 %v609, 32
        %v1181 = vpop.permute.xlu0 %1180
        %1182 = vrot.lane.b32.xlu0 %v611, 32
        %v1183 = vpop.permute.xlu0 %1182
        %1184 = vrot.lane.b32.xlu0 %v613, 32
        %v1185 = vpop.permute.xlu0 %1184
        %1186 = vrot.lane.b32.xlu0 %v615, 32
        %v1187 = vpop.permute.xlu0 %1186
        %1188 = vrot.lane.b32.xlu0 %v617, 32
        %v1189 = vpop.permute.xlu0 %1188
        %1190 = vrot.lane.b32.xlu0 %v619, 32
        %v1191 = vpop.permute.xlu0 %1190
        %1192 = vrot.lane.b32.xlu0 %v621, 32
        %v1193 = vpop.permute.xlu0 %1192
        %1194 = vrot.lane.b32.xlu0 %v623, 32
        %v1195 = vpop.permute.xlu0 %1194
        %1196 = vrot.lane.b32.xlu0 %v625, 32
        %v1197 = vpop.permute.xlu0 %1196
        %1198 = vrot.lane.b32.xlu0 %v627, 32
        %v1199 = vpop.permute.xlu0 %1198
        %1200 = vrot.lane.b32.xlu0 %v629, 32
        %v1201 = vpop.permute.xlu0 %1200
        %1202 = vrot.lane.b32.xlu0 %v631, 32
        %v1203 = vpop.permute.xlu0 %1202
        %1204 = vrot.lane.b32.xlu0 %v633, 32
        %v1205 = vpop.permute.xlu0 %1204
        %1206 = vrot.lane.b32.xlu0 %v635, 32
        %v1207 = vpop.permute.xlu0 %1206
        %1208 = vrot.lane.b32.xlu0 %v637, 32
        %v1209 = vpop.permute.xlu0 %1208
        %1210 = vrot.lane.b32.xlu0 %v639, 32
        %v1211 = vpop.permute.xlu0 %1210
        %1212 = vrot.lane.b32.xlu0 %v641, 32
        %v1213 = vpop.permute.xlu0 %1212
        %1214 = vrot.lane.b32.xlu0 %v643, 32
        %v1215 = vpop.permute.xlu0 %1214
        %1216 = vrot.lane.b32.xlu0 %v645, 32
        %v1217 = vpop.permute.xlu0 %1216
        %1218 = vrot.lane.b32.xlu0 %v905, 32
        %v1219 = vpop.permute.xlu0 %1218
        %1220 = vrot.lane.b32.xlu0 %v907, 32
        %v1221 = vpop.permute.xlu0 %1220
        %1222 = vrot.lane.b32.xlu0 %v1167, 32
        %v1223 = vpop.permute.xlu0 %1222
        %1224 = vrot.lane.b32.xlu0 %v1169, 32
        %v1225 = vpop.permute.xlu0 %1224
        %vm1254 = vcmask 31744
        %v1255 = vsel %vm1254, %v384, %v505
        %v1256 = vsel %vm1254, %v385, %v507
        %v1257 = vsel %vm1254, %v386, %v509
        %v1258 = vsel %vm1254, %v387, %v511
        %v1259 = vsel %vm1254, %v388, %v513
        %v1260 = vsel %vm1254, %v389, %v515
        %v1261 = vsel %vm1254, %v390, %v517
        %v1262 = vsel %vm1254, %v391, %v519
        %v1263 = vsel %vm1254, %v392, %v521
        %v1264 = vsel %vm1254, %v393, %v523
        %v1265 = vsel %vm1254, %v394, %v525
        %v1266 = vsel %vm1254, %v395, %v527
        %v1267 = vsel %vm1254, %v396, %v529
        %v1268 = vsel %vm1254, %v397, %v531
        %v1269 = vsel %vm1254, %v398, %v533
        %v1270 = vsel %vm1254, %v399, %v535
        %v1271 = vsel %vm1254, %v400, %v537
        %v1272 = vsel %vm1254, %v401, %v539
        %v1273 = vsel %vm1254, %v402, %v541
        %v1274 = vsel %vm1254, %v403, %v543
        %v1275 = vsel %vm1254, %v404, %v545
        %v1276 = vsel %vm1254, %v405, %v547
        %v1277 = vsel %vm1254, %v406, %v549
        %v1278 = vsel %vm1254, %v407, %v551
        %v1279 = vsel %vm1254, %v408, %v553
        %v1280 = vsel %vm1254, %v409, %v555
        %v1281 = vsel %vm1254, %v410, %v557
        %v1282 = vsel %vm1254, %v411, %v559
        %vm1283 = vcmask 64512
        %v1284 = vsel %vm1283, %v1255, %v647
        %v1285 = vsel %vm1283, %v1256, %v649
        %v1286 = vsel %vm1283, %v1257, %v651
        %v1287 = vsel %vm1283, %v1258, %v653
        %v1288 = vsel %vm1283, %v1259, %v655
        %v1289 = vsel %vm1283, %v1260, %v657
        %v1290 = vsel %vm1283, %v1261, %v659
        %v1291 = vsel %vm1283, %v1262, %v661
        %v1292 = vsel %vm1283, %v1263, %v663
        %v1293 = vsel %vm1283, %v1264, %v665
        %v1294 = vsel %vm1283, %v1265, %v667
        %v1295 = vsel %vm1283, %v1266, %v669
        %v1296 = vsel %vm1283, %v1267, %v671
        %v1297 = vsel %vm1283, %v1268, %v673
        %v1298 = vsel %vm1283, %v1269, %v675
        %v1299 = vsel %vm1283, %v1270, %v677
        %v1300 = vsel %vm1283, %v1271, %v679
        %v1301 = vsel %vm1283, %v1272, %v681
        %v1302 = vsel %vm1283, %v1273, %v683
        %v1303 = vsel %vm1283, %v1274, %v685
        %v1304 = vsel %vm1283, %v1275, %v687
        %v1305 = vsel %vm1283, %v1276, %v689
        %v1306 = vsel %vm1283, %v1277, %v691
        %v1307 = vsel %vm1283, %v1278, %v693
        %v1308 = vsel %vm1283, %v1279, %v695
        %v1309 = vsel %vm1283, %v1280, %v697
        %v1310 = vsel %vm1283, %v1281, %v699
        %v1311 = vsel %vm1283, %v1282, %v701
        %vm1312 = vcmask 97280
        %v1313 = vsel %vm1312, %v1284, %v732
        %v1314 = vsel %vm1312, %v1285, %v734
        %v1315 = vsel %vm1312, %v1286, %v736
        %v1316 = vsel %vm1312, %v1287, %v738
        %v1317 = vsel %vm1312, %v1288, %v740
        %v1318 = vsel %vm1312, %v1289, %v742
        %v1319 = vsel %vm1312, %v1290, %v744
        %v1320 = vsel %vm1312, %v1291, %v746
        %v1321 = vsel %vm1312, %v1292, %v748
        %v1322 = vsel %vm1312, %v1293, %v750
        %v1323 = vsel %vm1312, %v1294, %v752
        %v1324 = vsel %vm1312, %v1295, %v754
        %v1325 = vsel %vm1312, %v1296, %v756
        %v1326 = vsel %vm1312, %v1297, %v758
        %v1327 = vsel %vm1312, %v1298, %v760
        %v1328 = vsel %vm1312, %v1299, %v762
        %v1329 = vsel %vm1312, %v1300, %v764
        %v1330 = vsel %vm1312, %v1301, %v766
        %v1331 = vsel %vm1312, %v1302, %v768
        %v1332 = vsel %vm1312, %v1303, %v770
        %v1333 = vsel %vm1312, %v1304, %v772
        %v1334 = vsel %vm1312, %v1305, %v774
        %v1335 = vsel %vm1312, %v1306, %v776
        %v1336 = vsel %vm1312, %v1307, %v778
        %v1337 = vsel %vm1312, %v1308, %v780
        %v1338 = vsel %vm1312, %v1309, %v782
        %v1339 = vsel %vm1312, %v1310, %v784
        %v1340 = vsel %vm1312, %v1311, %v786
        %vm1341 = vcmask 130048
        %v1342 = vsel %vm1341, %v1313, %v821
        %v1343 = vsel %vm1341, %v1314, %v823
        %v1344 = vsel %vm1341, %v1315, %v825
        %v1345 = vsel %vm1341, %v1316, %v827
        %v1346 = vsel %vm1341, %v1317, %v829
        %v1347 = vsel %vm1341, %v1318, %v831
        %v1348 = vsel %vm1341, %v1319, %v833
        %v1349 = vsel %vm1341, %v1320, %v835
        %v1350 = vsel %vm1341, %v1321, %v837
        %v1351 = vsel %vm1341, %v1322, %v839
        %v1352 = vsel %vm1341, %v1323, %v841
        %v1353 = vsel %vm1341, %v1324, %v843
        %v1354 = vsel %vm1341, %v1325, %v845
        %v1355 = vsel %vm1341, %v1326, %v847
        %v1356 = vsel %vm1341, %v1327, %v849
        %v1357 = vsel %vm1341, %v1328, %v851
        %v1358 = vsel %vm1341, %v1329, %v853
        %v1359 = vsel %vm1341, %v1330, %v855
        %v1360 = vsel %vm1341, %v1331, %v857
        %v1361 = vsel %vm1341, %v1332, %v859
        %v1362 = vsel %vm1341, %v1333, %v861
        %v1363 = vsel %vm1341, %v1334, %v863
        %v1364 = vsel %vm1341, %v1335, %v865
        %v1365 = vsel %vm1341, %v1336, %v867
        %v1366 = vsel %vm1341, %v1337, %v869
        %v1367 = vsel %vm1341, %v1338, %v871
        %v1368 = vsel %vm1341, %v1339, %v873
        %v1369 = vsel %vm1341, %v1340, %v875
        %vm1370 = vcmask 162816
        %v1371 = vsel %vm1370, %v1342, %v909
        %v1372 = vsel %vm1370, %v1343, %v911
        %v1373 = vsel %vm1370, %v1344, %v913
        %v1374 = vsel %vm1370, %v1345, %v915
        %v1375 = vsel %vm1370, %v1346, %v917
        %v1376 = vsel %vm1370, %v1347, %v919
        %v1377 = vsel %vm1370, %v1348, %v921
        %v1378 = vsel %vm1370, %v1349, %v923
        %v1379 = vsel %vm1370, %v1350, %v925
        %v1380 = vsel %vm1370, %v1351, %v927
        %v1381 = vsel %vm1370, %v1352, %v929
        %v1382 = vsel %vm1370, %v1353, %v931
        %v1383 = vsel %vm1370, %v1354, %v933
        %v1384 = vsel %vm1370, %v1355, %v935
        %v1385 = vsel %vm1370, %v1356, %v937
        %v1386 = vsel %vm1370, %v1357, %v939
        %v1387 = vsel %vm1370, %v1358, %v941
        %v1388 = vsel %vm1370, %v1359, %v943
        %v1389 = vsel %vm1370, %v1360, %v945
        %v1390 = vsel %vm1370, %v1361, %v947
        %v1391 = vsel %vm1370, %v1362, %v949
        %v1392 = vsel %vm1370, %v1363, %v951
        %v1393 = vsel %vm1370, %v1364, %v953
        %v1394 = vsel %vm1370, %v1365, %v955
        %v1395 = vsel %vm1370, %v1366, %v957
        %v1396 = vsel %vm1370, %v1367, %v959
        %v1397 = vsel %vm1370, %v1368, %v961
        %v1398 = vsel %vm1370, %v1369, %v963
        %vm1399 = vcmask 195584
        %v1400 = vsel %vm1399, %v1371, %v994
        %v1401 = vsel %vm1399, %v1372, %v996
        %v1402 = vsel %vm1399, %v1373, %v998
        %v1403 = vsel %vm1399, %v1374, %v1000
        %v1404 = vsel %vm1399, %v1375, %v1002
        %v1405 = vsel %vm1399, %v1376, %v1004
        %v1406 = vsel %vm1399, %v1377, %v1006
        %v1407 = vsel %vm1399, %v1378, %v1008
        %v1408 = vsel %vm1399, %v1379, %v1010
        %v1409 = vsel %vm1399, %v1380, %v1012
        %v1410 = vsel %vm1399, %v1381, %v1014
        %v1411 = vsel %vm1399, %v1382, %v1016
        %v1412 = vsel %vm1399, %v1383, %v1018
        %v1413 = vsel %vm1399, %v1384, %v1020
        %v1414 = vsel %vm1399, %v1385, %v1022
        %v1415 = vsel %vm1399, %v1386, %v1024
        %v1416 = vsel %vm1399, %v1387, %v1026
        %v1417 = vsel %vm1399, %v1388, %v1028
        %v1418 = vsel %vm1399, %v1389, %v1030
        %v1419 = vsel %vm1399, %v1390, %v1032
        %v1420 = vsel %vm1399, %v1391, %v1034
        %v1421 = vsel %vm1399, %v1392, %v1036
        %v1422 = vsel %vm1399, %v1393, %v1038
        %v1423 = vsel %vm1399, %v1394, %v1040
        %v1424 = vsel %vm1399, %v1395, %v1042
        %v1425 = vsel %vm1399, %v1396, %v1044
        %v1426 = vsel %vm1399, %v1397, %v1046
        %v1427 = vsel %vm1399, %v1398, %v1048
        %vm1428 = vcmask 228352
        %v1429 = vsel %vm1428, %v1400, %v1083
        %v1430 = vsel %vm1428, %v1401, %v1085
        %v1431 = vsel %vm1428, %v1402, %v1087
        %v1432 = vsel %vm1428, %v1403, %v1089
        %v1433 = vsel %vm1428, %v1404, %v1091
        %v1434 = vsel %vm1428, %v1405, %v1093
        %v1435 = vsel %vm1428, %v1406, %v1095
        %v1436 = vsel %vm1428, %v1407, %v1097
        %v1437 = vsel %vm1428, %v1408, %v1099
        %v1438 = vsel %vm1428, %v1409, %v1101
        %v1439 = vsel %vm1428, %v1410, %v1103
        %v1440 = vsel %vm1428, %v1411, %v1105
        %v1441 = vsel %vm1428, %v1412, %v1107
        %v1442 = vsel %vm1428, %v1413, %v1109
        %v1443 = vsel %vm1428, %v1414, %v1111
        %v1444 = vsel %vm1428, %v1415, %v1113
        %v1445 = vsel %vm1428, %v1416, %v1115
        %v1446 = vsel %vm1428, %v1417, %v1117
        %v1447 = vsel %vm1428, %v1418, %v1119
        %v1448 = vsel %vm1428, %v1419, %v1121
        %v1449 = vsel %vm1428, %v1420, %v1123
        %v1450 = vsel %vm1428, %v1421, %v1125
        %v1451 = vsel %vm1428, %v1422, %v1127
        %v1452 = vsel %vm1428, %v1423, %v1129
        %v1453 = vsel %vm1428, %v1424, %v1131
        %v1454 = vsel %vm1428, %v1425, %v1133
        %v1455 = vsel %vm1428, %v1426, %v1135
        %v1456 = vsel %vm1428, %v1427, %v1137
        %vm1457 = vcmask 261120
        %v1458 = vsel %vm1457, %v1429, %v1171
        %v1459 = vsel %vm1457, %v1430, %v1173
        %v1460 = vsel %vm1457, %v1431, %v1175
        %v1461 = vsel %vm1457, %v1432, %v1177
        %v1462 = vsel %vm1457, %v1433, %v1179
        %v1463 = vsel %vm1457, %v1434, %v1181
        %v1464 = vsel %vm1457, %v1435, %v1183
        %v1465 = vsel %vm1457, %v1436, %v1185
        %v1466 = vsel %vm1457, %v1437, %v1187
        %v1467 = vsel %vm1457, %v1438, %v1189
        %v1468 = vsel %vm1457, %v1439, %v1191
        %v1469 = vsel %vm1457, %v1440, %v1193
        %v1470 = vsel %vm1457, %v1441, %v1195
        %v1471 = vsel %vm1457, %v1442, %v1197
        %v1472 = vsel %vm1457, %v1443, %v1199
        %v1473 = vsel %vm1457, %v1444, %v1201
        %v1474 = vsel %vm1457, %v1445, %v1203
        %v1475 = vsel %vm1457, %v1446, %v1205
        %v1476 = vsel %vm1457, %v1447, %v1207
        %v1477 = vsel %vm1457, %v1448, %v1209
        %v1478 = vsel %vm1457, %v1449, %v1211
        %v1479 = vsel %vm1457, %v1450, %v1213
        %v1480 = vsel %vm1457, %v1451, %v1215
        %v1481 = vsel %vm1457, %v1452, %v1217
        %v1482 = vsel %vm1457, %v1453, %v1219
        %v1483 = vsel %vm1457, %v1454, %v1221
        %v1484 = vsel %vm1457, %v1455, %v1223
        %v1485 = vsel %vm1457, %v1456, %v1225
        %v1486 = vld [vmem:[%s1] sm:$0xff]
        %v1487 = vld [vmem:[%s1 + $0x8] sm:$0xff]
        %v1488 = vld [vmem:[%s1 + $0x10] sm:$0xff]
        %v1489 = vld [vmem:[%s1 + $0x18] sm:$0xff]
        %v1490 = vld [vmem:[%s1 + $0x20] sm:$0xf]
        %v1491 = vld [vmem:[%s2] sm:$0x1]
        %v1493 = vlaneseq
        %v1494 = vshrl.u32 %v1493, 7
        %v1495 = vsub.s32 0, %v1494
        %v1496 = vrot.slane %v1491, %v1495
        %vm1498 = vcmask 293888
        %v1500 = vsel %vm1498, %v1458, 0
        %v1503 = vsel %vm1498, %v1459, 0
        %v1506 = vsel %vm1498, %v1460, 0
        %v1509 = vsel %vm1498, %v1461, 0
        %v1512 = vsel %vm1498, %v1462, 0
        %v1515 = vsel %vm1498, %v1463, 0
        %v1518 = vsel %vm1498, %v1464, 0
        %v1521 = vsel %vm1498, %v1465, 0
        %v1524 = vsel %vm1498, %v1466, 0
        %v1527 = vsel %vm1498, %v1467, 0
        %v1530 = vsel %vm1498, %v1468, 0
        %v1533 = vsel %vm1498, %v1469, 0
        %v1536 = vsel %vm1498, %v1470, 0
        %v1539 = vsel %vm1498, %v1471, 0
        %v1542 = vsel %vm1498, %v1472, 0
        %v1545 = vsel %vm1498, %v1473, 0
        %v1548 = vsel %vm1498, %v1474, 0
        %v1551 = vsel %vm1498, %v1475, 0
        %v1554 = vsel %vm1498, %v1476, 0
        %v1557 = vsel %vm1498, %v1477, 0
        %v1560 = vsel %vm1498, %v1478, 0
        %v1563 = vsel %vm1498, %v1479, 0
        %v1566 = vsel %vm1498, %v1480, 0
        %v1569 = vsel %vm1498, %v1481, 0
        %v1572 = vsel %vm1498, %v1482, 0
        %v1575 = vsel %vm1498, %v1483, 0
        %v1578 = vsel %vm1498, %v1484, 0
        %v1581 = vsel %vm1498, %v1485, 0
        %vm1583 = vcmask 1043456
        %v1585 = vsel %vm1583, %v1490, 0
        %1587 = vmatprep.subr.mxu0 0.0
        %1588 = vmatpush1.msra.mxu0 %v1486
        %1589 = vmatprep.subr.mxu0 0.0
        %1590 = vmatpush1.msra.mxu0 %v1487
        %1591 = vmatprep.subr.mxu0 0.0
        %1592 = vmatpush1.msra.mxu0 %v1488
        %1593 = vmatprep.subr.mxu0 0.0
        %1594 = vmatpush1.msra.mxu0 %v1489
        %1595 = vmatprep.subr.mxu0 0.0
        %1596 = vmatpush1.msra.mxu0 %v1585
        %1597 = vmatprep.subr.mxu0 0.0
        %1598 = vmatpush1.msra.mxu0 0.0
        %1599 = vmatprep.subr.mxu0 0.0
        %1600 = vmatpush1.msra.mxu0 0.0
        %1601 = vmatprep.subr.mxu0 0.0
        %1602 = vmatpush1.msra.mxu0 0.0
        %1603 = vmatprep.subr.mxu0 0.0
        %1604 = vmatpush1.msra.mxu0 0.0
        %1605 = vmatprep.subr.mxu0 0.0
        %1606 = vmatpush1.msra.mxu0 0.0
        %1607 = vmatprep.subr.mxu0 0.0
        %1608 = vmatpush1.msra.mxu0 0.0
        %1609 = vmatprep.subr.mxu0 0.0
        %1610 = vmatpush1.msra.mxu0 0.0
        %1611 = vmatprep.subr.mxu0 0.0
        %1612 = vmatpush1.msra.mxu0 0.0
        %1613 = vmatprep.subr.mxu0 0.0
        %1614 = vmatpush1.msra.mxu0 0.0
        %1615 = vmatprep.subr.mxu0 0.0
        %1616 = vmatpush1.msra.mxu0 0.0
        %1617 = vmatprep.subr.mxu0 0.0
        %1618 = vmatpush1.msra.mxu0 0.0
        %1619 = vmatprep.subr.mxu0 0.0
        %1620 = vmatpush1.msra.mxu0 0.0
        %1621 = vmatprep.subr.mxu0 0.0
        %1622 = vmatpush1.msra.mxu0 0.0
        %1623 = vmatprep.subr.mxu0 0.0
        %1624 = vmatpush1.msra.mxu0 0.0
        %1625 = vmatprep.subr.mxu0 0.0
        %1626 = vmatpush1.msra.mxu0 0.0
        %1627 = vmatprep.subr.mxu0 0.0
        %1628 = vmatpush1.msra.mxu0 0.0
        %1629 = vmatprep.subr.mxu0 0.0
        %1630 = vmatpush1.msra.mxu0 0.0
        %1631 = vmatprep.subr.mxu0 0.0
        %1632 = vmatpush1.msra.mxu0 0.0
        %1633 = vmatprep.subr.mxu0 0.0
        %1634 = vmatpush1.msra.mxu0 0.0
        %1635 = vmatprep.subr.mxu0 0.0
        %1636 = vmatpush1.msra.mxu0 0.0
        %1637 = vmatprep.subr.mxu0 0.0
        %1638 = vmatpush1.msra.mxu0 0.0
        %1639 = vmatprep.subr.mxu0 0.0
        %1640 = vmatpush1.msra.mxu0 0.0
        %1641 = vmatprep.subr.mxu0 0.0
        %1642 = vmatpush1.msra.mxu0 0.0
        %1643 = vmatprep.subr.mxu0 0.0
        %1644 = vmatpush1.msra.mxu0 0.0
        %1645 = vmatprep.subr.mxu0 0.0
        %1646 = vmatpush1.msra.mxu0 0.0
        %1647 = vmatprep.subr.mxu0 0.0
        %1648 = vmatpush1.msra.mxu0 0.0
        %1649 = vmatprep.subr.mxu0 0.0
        %1650 = vmatpush1.msra.mxu0 0.0
        %1651 = vmatprep.mubr.f32.mxu0 0.0
        %1652 = vmatmul.mubr.f32.gmra.mrb[0].mxu0 %v1500
        %v1653 = vpop.f32.mrb[0].mxu0
        %v1654 = vadd.f32 %v1496, %v1653
        %v1655 = vpop.f32.mrb[0].mxu0
        %1656 = vmatprep.mubr.f32.mxu0 0.0
        %1657 = vmatmul.mubr.f32.gmra.mrb[0].mxu0 %v1503
        %v1658 = vpop.f32.mrb[0].mxu0
        %v1659 = vadd.f32 %v1496, %v1658
        %v1660 = vpop.f32.mrb[0].mxu0
        %1661 = vmatprep.mubr.f32.mxu0 0.0
        %1662 = vmatmul.mubr.f32.gmra.mrb[0].mxu0 %v1506
        %v1663 = vpop.f32.mrb[0].mxu0
        %v1664 = vadd.f32 %v1496, %v1663
        %v1665 = vpop.f32.mrb[0].mxu0
        %1666 = vmatprep.mubr.f32.mxu0 0.0
        %1667 = vmatmul.mubr.f32.gmra.mrb[0].mxu0 %v1509
        %v1668 = vpop.f32.mrb[0].mxu0
        %v1669 = vadd.f32 %v1496, %v1668
        %v1670 = vpop.f32.mrb[0].mxu0
        %1671 = vmatprep.mubr.f32.mxu0 0.0
        %1672 = vmatmul.mubr.f32.gmra.mrb[0].mxu0 %v1512
        %v1673 = vpop.f32.mrb[0].mxu0
        %v1674 = vadd.f32 %v1496, %v1673
        %v1675 = vpop.f32.mrb[0].mxu0
        %1676 = vmatprep.mubr.f32.mxu0 0.0
        %1677 = vmatmul.mubr.f32.gmra.mrb[0].mxu0 %v1515
        %v1678 = vpop.f32.mrb[0].mxu0
        %v1679 = vadd.f32 %v1496, %v1678
        %v1680 = vpop.f32.mrb[0].mxu0
        %1681 = vmatprep.mubr.f32.mxu0 0.0
        %1682 = vmatmul.mubr.f32.gmra.mrb[0].mxu0 %v1518
        %v1683 = vpop.f32.mrb[0].mxu0
        %v1684 = vadd.f32 %v1496, %v1683
        %v1685 = vpop.f32.mrb[0].mxu0
        %1686 = vmatprep.mubr.f32.mxu0 0.0
        %1687 = vmatmul.mubr.f32.gmra.mrb[0].mxu0 %v1521
        %v1688 = vpop.f32.mrb[0].mxu0
        %v1689 = vadd.f32 %v1496, %v1688
        %v1690 = vpop.f32.mrb[0].mxu0
        %1691 = vmatprep.mubr.f32.mxu0 0.0
        %1692 = vmatmul.mubr.f32.gmra.mrb[0].mxu0 %v1524
        %v1693 = vpop.f32.mrb[0].mxu0
        %v1694 = vadd.f32 %v1496, %v1693
        %v1695 = vpop.f32.mrb[0].mxu0
        %1696 = vmatprep.mubr.f32.mxu0 0.0
        %1697 = vmatmul.mubr.f32.gmra.mrb[0].mxu0 %v1527
        %v1698 = vpop.f32.mrb[0].mxu0
        %v1699 = vadd.f32 %v1496, %v1698
        %v1700 = vpop.f32.mrb[0].mxu0
        %1701 = vmatprep.mubr.f32.mxu0 0.0
        %1702 = vmatmul.mubr.f32.gmra.mrb[0].mxu0 %v1530
        %v1703 = vpop.f32.mrb[0].mxu0
        %v1704 = vadd.f32 %v1496, %v1703
        %v1705 = vpop.f32.mrb[0].mxu0
        %1706 = vmatprep.mubr.f32.mxu0 0.0
        %1707 = vmatmul.mubr.f32.gmra.mrb[0].mxu0 %v1533
        %v1708 = vpop.f32.mrb[0].mxu0
        %v1709 = vadd.f32 %v1496, %v1708
        %v1710 = vpop.f32.mrb[0].mxu0
        %1711 = vmatprep.mubr.f32.mxu0 0.0
        %1712 = vmatmul.mubr.f32.gmra.mrb[0].mxu0 %v1536
        %v1713 = vpop.f32.mrb[0].mxu0
        %v1714 = vadd.f32 %v1496, %v1713
        %v1715 = vpop.f32.mrb[0].mxu0
        %1716 = vmatprep.mubr.f32.mxu0 0.0
        %1717 = vmatmul.mubr.f32.gmra.mrb[0].mxu0 %v1539
        %v1718 = vpop.f32.mrb[0].mxu0
        %v1719 = vadd.f32 %v1496, %v1718
        %v1720 = vpop.f32.mrb[0].mxu0
        %1721 = vmatprep.mubr.f32.mxu0 0.0
        %1722 = vmatmul.mubr.f32.gmra.mrb[0].mxu0 %v1542
        %v1723 = vpop.f32.mrb[0].mxu0
        %v1724 = vadd.f32 %v1496, %v1723
        %v1725 = vpop.f32.mrb[0].mxu0
        %1726 = vmatprep.mubr.f32.mxu0 0.0
        %1727 = vmatmul.mubr.f32.gmra.mrb[0].mxu0 %v1545
        %v1728 = vpop.f32.mrb[0].mxu0
        %v1729 = vadd.f32 %v1496, %v1728
        %v1730 = vpop.f32.mrb[0].mxu0
        %1731 = vmatprep.mubr.f32.mxu0 0.0
        %1732 = vmatmul.mubr.f32.gmra.mrb[0].mxu0 %v1548
        %v1733 = vpop.f32.mrb[0].mxu0
        %v1734 = vadd.f32 %v1496, %v1733
        %v1735 = vpop.f32.mrb[0].mxu0
        %1736 = vmatprep.mubr.f32.mxu0 0.0
        %1737 = vmatmul.mubr.f32.gmra.mrb[0].mxu0 %v1551
        %v1738 = vpop.f32.mrb[0].mxu0
        %v1739 = vadd.f32 %v1496, %v1738
        %v1740 = vpop.f32.mrb[0].mxu0
        %1741 = vmatprep.mubr.f32.mxu0 0.0
        %1742 = vmatmul.mubr.f32.gmra.mrb[0].mxu0 %v1554
        %v1743 = vpop.f32.mrb[0].mxu0
        %v1744 = vadd.f32 %v1496, %v1743
        %v1745 = vpop.f32.mrb[0].mxu0
        %1746 = vmatprep.mubr.f32.mxu0 0.0
        %1747 = vmatmul.mubr.f32.gmra.mrb[0].mxu0 %v1557
        %v1748 = vpop.f32.mrb[0].mxu0
        %v1749 = vadd.f32 %v1496, %v1748
        %v1750 = vpop.f32.mrb[0].mxu0
        %1751 = vmatprep.mubr.f32.mxu0 0.0
        %1752 = vmatmul.mubr.f32.gmra.mrb[0].mxu0 %v1560
        %v1753 = vpop.f32.mrb[0].mxu0
        %v1754 = vadd.f32 %v1496, %v1753
        %v1755 = vpop.f32.mrb[0].mxu0
        %1756 = vmatprep.mubr.f32.mxu0 0.0
        %1757 = vmatmul.mubr.f32.gmra.mrb[0].mxu0 %v1563
        %v1758 = vpop.f32.mrb[0].mxu0
        %v1759 = vadd.f32 %v1496, %v1758
        %v1760 = vpop.f32.mrb[0].mxu0
        %1761 = vmatprep.mubr.f32.mxu0 0.0
        %1762 = vmatmul.mubr.f32.gmra.mrb[0].mxu0 %v1566
        %v1763 = vpop.f32.mrb[0].mxu0
        %v1764 = vadd.f32 %v1496, %v1763
        %v1765 = vpop.f32.mrb[0].mxu0
        %1766 = vmatprep.mubr.f32.mxu0 0.0
        %1767 = vmatmul.mubr.f32.gmra.mrb[0].mxu0 %v1569
        %v1768 = vpop.f32.mrb[0].mxu0
        %v1769 = vadd.f32 %v1496, %v1768
        %v1770 = vpop.f32.mrb[0].mxu0
        %1771 = vmatprep.mubr.f32.mxu0 0.0
        %1772 = vmatmul.mubr.f32.gmra.mrb[0].mxu0 %v1572
        %v1773 = vpop.f32.mrb[0].mxu0
        %v1774 = vadd.f32 %v1496, %v1773
        %v1775 = vpop.f32.mrb[0].mxu0
        %1776 = vmatprep.mubr.f32.mxu0 0.0
        %1777 = vmatmul.mubr.f32.gmra.mrb[0].mxu0 %v1575
        %v1778 = vpop.f32.mrb[0].mxu0
        %v1779 = vadd.f32 %v1496, %v1778
        %v1780 = vpop.f32.mrb[0].mxu0
        %1781 = vmatprep.mubr.f32.mxu0 0.0
        %1782 = vmatmul.mubr.f32.gmra.mrb[0].mxu0 %v1578
        %v1783 = vpop.f32.mrb[0].mxu0
        %v1784 = vadd.f32 %v1496, %v1783
        %v1785 = vpop.f32.mrb[0].mxu0
        %1786 = vmatprep.mubr.f32.mxu0 0.0
        %1787 = vmatmul.mubr.f32.gmra.mrb[0].mxu0 %v1581
        %v1788 = vpop.f32.mrb[0].mxu0
        %v1789 = vadd.f32 %v1496, %v1788
        %v1790 = vpop.f32.mrb[0].mxu0
        %1791 = vdwg.mxu0
        %v1792 = vmax.f32 %v1654, 0.0
        %v1793 = vmax.f32 %v1659, 0.0
        %v1794 = vmax.f32 %v1664, 0.0
        %v1795 = vmax.f32 %v1669, 0.0
        %v1796 = vmax.f32 %v1674, 0.0
        %v1797 = vmax.f32 %v1679, 0.0
        %v1798 = vmax.f32 %v1684, 0.0
        %v1799 = vmax.f32 %v1689, 0.0
        %v1800 = vmax.f32 %v1694, 0.0
        %v1801 = vmax.f32 %v1699, 0.0
        %v1802 = vmax.f32 %v1704, 0.0
        %v1803 = vmax.f32 %v1709, 0.0
        %v1804 = vmax.f32 %v1714, 0.0
        %v1805 = vmax.f32 %v1719, 0.0
        %v1806 = vmax.f32 %v1724, 0.0
        %v1807 = vmax.f32 %v1729, 0.0
        %v1808 = vmax.f32 %v1734, 0.0
        %v1809 = vmax.f32 %v1739, 0.0
        %v1810 = vmax.f32 %v1744, 0.0
        %v1811 = vmax.f32 %v1749, 0.0
        %v1812 = vmax.f32 %v1754, 0.0
        %v1813 = vmax.f32 %v1759, 0.0
        %v1814 = vmax.f32 %v1764, 0.0
        %v1815 = vmax.f32 %v1769, 0.0
        %v1816 = vmax.f32 %v1774, 0.0
        %v1817 = vmax.f32 %v1779, 0.0
        %v1818 = vmax.f32 %v1784, 0.0
        %v1819 = vmax.f32 %v1789, 0.0
        %v1820 = vmax.f32 %v1792, %v1794
        %v1821 = vmax.f32 %v1793, %v1795
        %vm1822 = vcmask 58368
        %v1823 = vsel %vm1822, %v1820, -inf
        %v1824 = vrot.slane %v1823, 4
        %v1825 = vmax.f32 %v1823, %v1824
        %v1826 = vrot.slane %v1825, 2
        %v1827 = vmax.f32 %v1825, %v1826
        %v1828 = vrot.slane %v1827, 1
        %v1829 = vmax.f32 %v1827, %v1828
        %vm1830 = vcmask 60418
        %v1831 = vsel %vm1830, %v1820, -inf
        %v1832 = vrot.slane %v1831, 4
        %v1833 = vmax.f32 %v1831, %v1832
        %v1834 = vrot.slane %v1833, 2
        %v1835 = vmax.f32 %v1833, %v1834
        %v1836 = vrot.slane %v1835, 1
        %v1837 = vmax.f32 %v1835, %v1836
        %vm1838 = vcmask 62468
        %v1839 = vsel %vm1838, %v1820, -inf
        %v1840 = vrot.slane %v1839, 4
        %v1841 = vmax.f32 %v1839, %v1840
        %v1842 = vrot.slane %v1841, 2
        %v1843 = vmax.f32 %v1841, %v1842
        %v1844 = vrot.slane %v1843, 1
        %v1845 = vmax.f32 %v1843, %v1844
        %vm1846 = vcmask 64518
        %v1847 = vsel %vm1846, %v1820, -inf
        %v1848 = vrot.slane %v1847, 4
        %v1849 = vmax.f32 %v1847, %v1848
        %v1850 = vrot.slane %v1849, 2
        %v1851 = vmax.f32 %v1849, %v1850
        %v1852 = vrot.slane %v1851, 1
        %v1853 = vmax.f32 %v1851, %v1852
        %v1854 = vsel %vm1822, %v1821, -inf
        %v1855 = vrot.slane %v1854, 4
        %v1856 = vmax.f32 %v1854, %v1855
        %v1857 = vrot.slane %v1856, 2
        %v1858 = vmax.f32 %v1856, %v1857
        %v1859 = vrot.slane %v1858, 1
        %v1860 = vmax.f32 %v1858, %v1859
        %v1861 = vsel %vm1830, %v1821, -inf
        %v1862 = vrot.slane %v1861, 4
        %v1863 = vmax.f32 %v1861, %v1862
        %v1864 = vrot.slane %v1863, 2
        %v1865 = vmax.f32 %v1863, %v1864
        %v1866 = vrot.slane %v1865, 1
        %v1867 = vmax.f32 %v1865, %v1866
        %v1868 = vsel %vm1838, %v1821, -inf
        %v1869 = vrot.slane %v1868, 4
        %v1870 = vmax.f32 %v1868, %v1869
        %v1871 = vrot.slane %v1870, 2
        %v1872 = vmax.f32 %v1870, %v1871
        %v1873 = vrot.slane %v1872, 1
        %v1874 = vmax.f32 %v1872, %v1873
        %v1875 = vmax.f32 %v1796, %v1798
        %v1876 = vmax.f32 %v1797, %v1799
        %v1877 = vsel %vm1822, %v1875, -inf
        %v1878 = vrot.slane %v1877, 4
        %v1879 = vmax.f32 %v1877, %v1878
        %v1880 = vrot.slane %v1879, 2
        %v1881 = vmax.f32 %v1879, %v1880
        %v1882 = vrot.slane %v1881, 1
        %v1883 = vmax.f32 %v1881, %v1882
        %v1884 = vsel %vm1830, %v1875, -inf
        %v1885 = vrot.slane %v1884, 4
        %v1886 = vmax.f32 %v1884, %v1885
        %v1887 = vrot.slane %v1886, 2
        %v1888 = vmax.f32 %v1886, %v1887
        %v1889 = vrot.slane %v1888, 1
        %v1890 = vmax.f32 %v1888, %v1889
        %v1891 = vsel %vm1838, %v1875, -inf
        %v1892 = vrot.slane %v1891, 4
        %v1893 = vmax.f32 %v1891, %v1892
        %v1894 = vrot.slane %v1893, 2
        %v1895 = vmax.f32 %v1893, %v1894
        %v1896 = vrot.slane %v1895, 1
        %v1897 = vmax.f32 %v1895, %v1896
        %v1898 = vsel %vm1846, %v1875, -inf
        %v1899 = vrot.slane %v1898, 4
        %v1900 = vmax.f32 %v1898, %v1899
        %v1901 = vrot.slane %v1900, 2
        %v1902 = vmax.f32 %v1900, %v1901
        %v1903 = vrot.slane %v1902, 1
        %v1904 = vmax.f32 %v1902, %v1903
        %v1905 = vsel %vm1822, %v1876, -inf
        %v1906 = vrot.slane %v1905, 4
        %v1907 = vmax.f32 %v1905, %v1906
        %v1908 = vrot.slane %v1907, 2
        %v1909 = vmax.f32 %v1907, %v1908
        %v1910 = vrot.slane %v1909, 1
        %v1911 = vmax.f32 %v1909, %v1910
        %v1912 = vsel %vm1830, %v1876, -inf
        %v1913 = vrot.slane %v1912, 4
        %v1914 = vmax.f32 %v1912, %v1913
        %v1915 = vrot.slane %v1914, 2
        %v1916 = vmax.f32 %v1914, %v1915
        %v1917 = vrot.slane %v1916, 1
        %v1918 = vmax.f32 %v1916, %v1917
        %v1919 = vsel %vm1838, %v1876, -inf
        %v1920 = vrot.slane %v1919, 4
        %v1921 = vmax.f32 %v1919, %v1920
        %v1922 = vrot.slane %v1921, 2
        %v1923 = vmax.f32 %v1921, %v1922
        %v1924 = vrot.slane %v1923, 1
        %v1925 = vmax.f32 %v1923, %v1924
        %v1926 = vmax.f32 %v1800, %v1802
        %v1927 = vmax.f32 %v1801, %v1803
        %v1928 = vsel %vm1822, %v1926, -inf
        %v1929 = vrot.slane %v1928, 4
        %v1930 = vmax.f32 %v1928, %v1929
        %v1931 = vrot.slane %v1930, 2
        %v1932 = vmax.f32 %v1930, %v1931
        %v1933 = vrot.slane %v1932, 1
        %v1934 = vmax.f32 %v1932, %v1933
        %v1935 = vsel %vm1830, %v1926, -inf
        %v1936 = vrot.slane %v1935, 4
        %v1937 = vmax.f32 %v1935, %v1936
        %v1938 = vrot.slane %v1937, 2
        %v1939 = vmax.f32 %v1937, %v1938
        %v1940 = vrot.slane %v1939, 1
        %v1941 = vmax.f32 %v1939, %v1940
        %v1942 = vsel %vm1838, %v1926, -inf
        %v1943 = vrot.slane %v1942, 4
        %v1944 = vmax.f32 %v1942, %v1943
        %v1945 = vrot.slane %v1944, 2
        %v1946 = vmax.f32 %v1944, %v1945
        %v1947 = vrot.slane %v1946, 1
        %v1948 = vmax.f32 %v1946, %v1947
        %v1949 = vsel %vm1846, %v1926, -inf
        %v1950 = vrot.slane %v1949, 4
        %v1951 = vmax.f32 %v1949, %v1950
        %v1952 = vrot.slane %v1951, 2
        %v1953 = vmax.f32 %v1951, %v1952
        %v1954 = vrot.slane %v1953, 1
        %v1955 = vmax.f32 %v1953, %v1954
        %v1956 = vsel %vm1822, %v1927, -inf
        %v1957 = vrot.slane %v1956, 4
        %v1958 = vmax.f32 %v1956, %v1957
        %v1959 = vrot.slane %v1958, 2
        %v1960 = vmax.f32 %v1958, %v1959
        %v1961 = vrot.slane %v1960, 1
        %v1962 = vmax.f32 %v1960, %v1961
        %v1963 = vsel %vm1830, %v1927, -inf
        %v1964 = vrot.slane %v1963, 4
        %v1965 = vmax.f32 %v1963, %v1964
        %v1966 = vrot.slane %v1965, 2
        %v1967 = vmax.f32 %v1965, %v1966
        %v1968 = vrot.slane %v1967, 1
        %v1969 = vmax.f32 %v1967, %v1968
        %v1970 = vsel %vm1838, %v1927, -inf
        %v1971 = vrot.slane %v1970, 4
        %v1972 = vmax.f32 %v1970, %v1971
        %v1973 = vrot.slane %v1972, 2
        %v1974 = vmax.f32 %v1972, %v1973
        %v1975 = vrot.slane %v1974, 1
        %v1976 = vmax.f32 %v1974, %v1975
        %v1977 = vmax.f32 %v1804, %v1806
        %v1978 = vmax.f32 %v1805, %v1807
        %v1979 = vsel %vm1822, %v1977, -inf
        %v1980 = vrot.slane %v1979, 4
        %v1981 = vmax.f32 %v1979, %v1980
        %v1982 = vrot.slane %v1981, 2
        %v1983 = vmax.f32 %v1981, %v1982
        %v1984 = vrot.slane %v1983, 1
        %v1985 = vmax.f32 %v1983, %v1984
        %v1986 = vsel %vm1830, %v1977, -inf
        %v1987 = vrot.slane %v1986, 4
        %v1988 = vmax.f32 %v1986, %v1987
        %v1989 = vrot.slane %v1988, 2
        %v1990 = vmax.f32 %v1988, %v1989
        %v1991 = vrot.slane %v1990, 1
        %v1992 = vmax.f32 %v1990, %v1991
        %v1993 = vsel %vm1838, %v1977, -inf
        %v1994 = vrot.slane %v1993, 4
        %v1995 = vmax.f32 %v1993, %v1994
        %v1996 = vrot.slane %v1995, 2
        %v1997 = vmax.f32 %v1995, %v1996
        %v1998 = vrot.slane %v1997, 1
        %v1999 = vmax.f32 %v1997, %v1998
        %v2000 = vsel %vm1846, %v1977, -inf
        %v2001 = vrot.slane %v2000, 4
        %v2002 = vmax.f32 %v2000, %v2001
        %v2003 = vrot.slane %v2002, 2
        %v2004 = vmax.f32 %v2002, %v2003
        %v2005 = vrot.slane %v2004, 1
        %v2006 = vmax.f32 %v2004, %v2005
        %v2007 = vsel %vm1822, %v1978, -inf
        %v2008 = vrot.slane %v2007, 4
        %v2009 = vmax.f32 %v2007, %v2008
        %v2010 = vrot.slane %v2009, 2
        %v2011 = vmax.f32 %v2009, %v2010
        %v2012 = vrot.slane %v2011, 1
        %v2013 = vmax.f32 %v2011, %v2012
        %v2014 = vsel %vm1830, %v1978, -inf
        %v2015 = vrot.slane %v2014, 4
        %v2016 = vmax.f32 %v2014, %v2015
        %v2017 = vrot.slane %v2016, 2
        %v2018 = vmax.f32 %v2016, %v2017
        %v2019 = vrot.slane %v2018, 1
        %v2020 = vmax.f32 %v2018, %v2019
        %v2021 = vsel %vm1838, %v1978, -inf
        %v2022 = vrot.slane %v2021, 4
        %v2023 = vmax.f32 %v2021, %v2022
        %v2024 = vrot.slane %v2023, 2
        %v2025 = vmax.f32 %v2023, %v2024
        %v2026 = vrot.slane %v2025, 1
        %v2027 = vmax.f32 %v2025, %v2026
        %v2028 = vmax.f32 %v1808, %v1810
        %v2029 = vmax.f32 %v1809, %v1811
        %v2030 = vsel %vm1822, %v2028, -inf
        %v2031 = vrot.slane %v2030, 4
        %v2032 = vmax.f32 %v2030, %v2031
        %v2033 = vrot.slane %v2032, 2
        %v2034 = vmax.f32 %v2032, %v2033
        %v2035 = vrot.slane %v2034, 1
        %v2036 = vmax.f32 %v2034, %v2035
        %v2037 = vsel %vm1830, %v2028, -inf
        %v2038 = vrot.slane %v2037, 4
        %v2039 = vmax.f32 %v2037, %v2038
        %v2040 = vrot.slane %v2039, 2
        %v2041 = vmax.f32 %v2039, %v2040
        %v2042 = vrot.slane %v2041, 1
        %v2043 = vmax.f32 %v2041, %v2042
        %v2044 = vsel %vm1838, %v2028, -inf
        %v2045 = vrot.slane %v2044, 4
        %v2046 = vmax.f32 %v2044, %v2045
        %v2047 = vrot.slane %v2046, 2
        %v2048 = vmax.f32 %v2046, %v2047
        %v2049 = vrot.slane %v2048, 1
        %v2050 = vmax.f32 %v2048, %v2049
        %v2051 = vsel %vm1846, %v2028, -inf
        %v2052 = vrot.slane %v2051, 4
        %v2053 = vmax.f32 %v2051, %v2052
        %v2054 = vrot.slane %v2053, 2
        %v2055 = vmax.f32 %v2053, %v2054
        %v2056 = vrot.slane %v2055, 1
        %v2057 = vmax.f32 %v2055, %v2056
        %v2058 = vsel %vm1822, %v2029, -inf
        %v2059 = vrot.slane %v2058, 4
        %v2060 = vmax.f32 %v2058, %v2059
        %v2061 = vrot.slane %v2060, 2
        %v2062 = vmax.f32 %v2060, %v2061
        %v2063 = vrot.slane %v2062, 1
        %v2064 = vmax.f32 %v2062, %v2063
        %v2065 = vsel %vm1830, %v2029, -inf
        %v2066 = vrot.slane %v2065, 4
        %v2067 = vmax.f32 %v2065, %v2066
        %v2068 = vrot.slane %v2067, 2
        %v2069 = vmax.f32 %v2067, %v2068
        %v2070 = vrot.slane %v2069, 1
        %v2071 = vmax.f32 %v2069, %v2070
        %v2072 = vsel %vm1838, %v2029, -inf
        %v2073 = vrot.slane %v2072, 4
        %v2074 = vmax.f32 %v2072, %v2073
        %v2075 = vrot.slane %v2074, 2
        %v2076 = vmax.f32 %v2074, %v2075
        %v2077 = vrot.slane %v2076, 1
        %v2078 = vmax.f32 %v2076, %v2077
        %v2079 = vmax.f32 %v1812, %v1814
        %v2080 = vmax.f32 %v1813, %v1815
        %v2081 = vsel %vm1822, %v2079, -inf
        %v2082 = vrot.slane %v2081, 4
        %v2083 = vmax.f32 %v2081, %v2082
        %v2084 = vrot.slane %v2083, 2
        %v2085 = vmax.f32 %v2083, %v2084
        %v2086 = vrot.slane %v2085, 1
        %v2087 = vmax.f32 %v2085, %v2086
        %v2088 = vsel %vm1830, %v2079, -inf
        %v2089 = vrot.slane %v2088, 4
        %v2090 = vmax.f32 %v2088, %v2089
        %v2091 = vrot.slane %v2090, 2
        %v2092 = vmax.f32 %v2090, %v2091
        %v2093 = vrot.slane %v2092, 1
        %v2094 = vmax.f32 %v2092, %v2093
        %v2095 = vsel %vm1838, %v2079, -inf
        %v2096 = vrot.slane %v2095, 4
        %v2097 = vmax.f32 %v2095, %v2096
        %v2098 = vrot.slane %v2097, 2
        %v2099 = vmax.f32 %v2097, %v2098
        %v2100 = vrot.slane %v2099, 1
        %v2101 = vmax.f32 %v2099, %v2100
        %v2102 = vsel %vm1846, %v2079, -inf
        %v2103 = vrot.slane %v2102, 4
        %v2104 = vmax.f32 %v2102, %v2103
        %v2105 = vrot.slane %v2104, 2
        %v2106 = vmax.f32 %v2104, %v2105
        %v2107 = vrot.slane %v2106, 1
        %v2108 = vmax.f32 %v2106, %v2107
        %v2109 = vsel %vm1822, %v2080, -inf
        %v2110 = vrot.slane %v2109, 4
        %v2111 = vmax.f32 %v2109, %v2110
        %v2112 = vrot.slane %v2111, 2
        %v2113 = vmax.f32 %v2111, %v2112
        %v2114 = vrot.slane %v2113, 1
        %v2115 = vmax.f32 %v2113, %v2114
        %v2116 = vsel %vm1830, %v2080, -inf
        %v2117 = vrot.slane %v2116, 4
        %v2118 = vmax.f32 %v2116, %v2117
        %v2119 = vrot.slane %v2118, 2
        %v2120 = vmax.f32 %v2118, %v2119
        %v2121 = vrot.slane %v2120, 1
        %v2122 = vmax.f32 %v2120, %v2121
        %v2123 = vsel %vm1838, %v2080, -inf
        %v2124 = vrot.slane %v2123, 4
        %v2125 = vmax.f32 %v2123, %v2124
        %v2126 = vrot.slane %v2125, 2
        %v2127 = vmax.f32 %v2125, %v2126
        %v2128 = vrot.slane %v2127, 1
        %v2129 = vmax.f32 %v2127, %v2128
        %v2130 = vmax.f32 %v1816, %v1818
        %v2131 = vmax.f32 %v1817, %v1819
        %v2132 = vsel %vm1822, %v2130, -inf
        %v2133 = vrot.slane %v2132, 4
        %v2134 = vmax.f32 %v2132, %v2133
        %v2135 = vrot.slane %v2134, 2
        %v2136 = vmax.f32 %v2134, %v2135
        %v2137 = vrot.slane %v2136, 1
        %v2138 = vmax.f32 %v2136, %v2137
        %v2139 = vsel %vm1830, %v2130, -inf
        %v2140 = vrot.slane %v2139, 4
        %v2141 = vmax.f32 %v2139, %v2140
        %v2142 = vrot.slane %v2141, 2
        %v2143 = vmax.f32 %v2141, %v2142
        %v2144 = vrot.slane %v2143, 1
        %v2145 = vmax.f32 %v2143, %v2144
        %v2146 = vsel %vm1838, %v2130, -inf
        %v2147 = vrot.slane %v2146, 4
        %v2148 = vmax.f32 %v2146, %v2147
        %v2149 = vrot.slane %v2148, 2
        %v2150 = vmax.f32 %v2148, %v2149
        %v2151 = vrot.slane %v2150, 1
        %v2152 = vmax.f32 %v2150, %v2151
        %v2153 = vsel %vm1846, %v2130, -inf
        %v2154 = vrot.slane %v2153, 4
        %v2155 = vmax.f32 %v2153, %v2154
        %v2156 = vrot.slane %v2155, 2
        %v2157 = vmax.f32 %v2155, %v2156
        %v2158 = vrot.slane %v2157, 1
        %v2159 = vmax.f32 %v2157, %v2158
        %v2160 = vsel %vm1822, %v2131, -inf
        %v2161 = vrot.slane %v2160, 4
        %v2162 = vmax.f32 %v2160, %v2161
        %v2163 = vrot.slane %v2162, 2
        %v2164 = vmax.f32 %v2162, %v2163
        %v2165 = vrot.slane %v2164, 1
        %v2166 = vmax.f32 %v2164, %v2165
        %v2167 = vsel %vm1830, %v2131, -inf
        %v2168 = vrot.slane %v2167, 4
        %v2169 = vmax.f32 %v2167, %v2168
        %v2170 = vrot.slane %v2169, 2
        %v2171 = vmax.f32 %v2169, %v2170
        %v2172 = vrot.slane %v2171, 1
        %v2173 = vmax.f32 %v2171, %v2172
        %v2174 = vsel %vm1838, %v2131, -inf
        %v2175 = vrot.slane %v2174, 4
        %v2176 = vmax.f32 %v2174, %v2175
        %v2177 = vrot.slane %v2176, 2
        %v2178 = vmax.f32 %v2176, %v2177
        %v2179 = vrot.slane %v2178, 1
        %v2180 = vmax.f32 %v2178, %v2179
        %vm2181 = vcmask 1040384
        %v2182 = vsel %vm2181, %v1829, %v1837
        %vm2183 = vcmask 1041408
        %v2184 = vsel %vm2183, %v2182, %v1845
        %vm2185 = vcmask 1042432
        %v2186 = vsel %vm2185, %v2184, %v1853
        %v2187 = vsel %vm1583, %v2186, %v1860
        %vm2188 = vcmask 1044480
        %v2189 = vsel %vm2188, %v2187, %v1867
        %v2190 = vsel %vm588, %v2189, %v1874
        %v2191 = vsel %vm446, %v2190, %v1883
        %v2192 = vsel %vm2181, %v1890, %v1897
        %v2193 = vsel %vm2183, %v2192, %v1904
        %v2194 = vsel %vm2185, %v2193, %v1911
        %v2195 = vsel %vm1583, %v2194, %v1918
        %v2196 = vsel %vm2188, %v2195, %v1925
        %v2197 = vsel %vm588, %v2196, %v1934
        %v2198 = vsel %vm446, %v2197, %v1941
        %v2199 = vsel %vm2181, %v1948, %v1955
        %v2200 = vsel %vm2183, %v2199, %v1962
        %v2201 = vsel %vm2185, %v2200, %v1969
        %v2202 = vsel %vm1583, %v2201, %v1976
        %v2203 = vsel %vm2188, %v2202, %v1985
        %v2204 = vsel %vm588, %v2203, %v1992
        %v2205 = vsel %vm446, %v2204, %v1999
        %v2206 = vsel %vm2181, %v2006, %v2013
        %v2207 = vsel %vm2183, %v2206, %v2020
        %v2208 = vsel %vm2185, %v2207, %v2027
        %v2209 = vsel %vm1583, %v2208, %v2036
        %v2210 = vsel %vm2188, %v2209, %v2043
        %v2211 = vsel %vm588, %v2210, %v2050
        %v2212 = vsel %vm446, %v2211, %v2057
        %v2213 = vsel %vm2181, %v2064, %v2071
        %v2214 = vsel %vm2183, %v2213, %v2078
        %v2215 = vsel %vm2185, %v2214, %v2087
        %v2216 = vsel %vm1583, %v2215, %v2094
        %v2217 = vsel %vm2188, %v2216, %v2101
        %v2218 = vsel %vm588, %v2217, %v2108
        %v2219 = vsel %vm446, %v2218, %v2115
        %v2220 = vsel %vm2181, %v2122, %v2129
        %v2221 = vsel %vm2183, %v2220, %v2138
        %v2222 = vsel %vm2185, %v2221, %v2145
        %v2223 = vsel %vm1583, %v2222, %v2152
        %v2224 = vsel %vm2188, %v2223, %v2159
        %v2225 = vsel %vm588, %v2224, %v2166
        %v2226 = vsel %vm446, %v2225, %v2173
        %v2227 = vsel %vm2181, %v2180, 0.0
        %v2233 = vrot.slane %v2191, 1
        %v2234 = vrot.slane %v2198, 1
        %v2235 = vsel %vm446, %v2233, %v2234
        %v2236 = vrot.slane %v2205, 1
        %v2237 = vsel %vm446, %v2234, %v2236
        %v2238 = vrot.slane %v2212, 1
        %v2239 = vsel %vm446, %v2236, %v2238
        %v2240 = vrot.slane %v2219, 1
        %v2241 = vsel %vm446, %v2238, %v2240
        %2242 = vrot.lane.b32.xlu0 %v2235, 8
        %v2243 = vpop.permute.xlu0 %2242
        %2244 = vrot.lane.b32.xlu0 %v2237, 8
        %v2245 = vpop.permute.xlu0 %2244
        %2246 = vrot.lane.b32.xlu0 %v2239, 8
        %v2247 = vpop.permute.xlu0 %2246
        %2248 = vrot.lane.b32.xlu0 %v2241, 8
        %v2249 = vpop.permute.xlu0 %2248
        %2250 = vrot.lane.b32.xlu0 %v2240, 8
        %v2251 = vpop.permute.xlu0 %2250
        %v2257 = vrot.slane %v2191, 2
        %v2258 = vrot.slane %v2198, 2
        %v2259 = vsel %vm588, %v2257, %v2258
        %v2260 = vrot.slane %v2205, 2
        %v2261 = vsel %vm588, %v2258, %v2260
        %v2262 = vrot.slane %v2212, 2
        %v2263 = vsel %vm588, %v2260, %v2262
        %v2264 = vrot.slane %v2219, 2
        %v2265 = vsel %vm588, %v2262, %v2264
        %2266 = vrot.lane.b32.xlu0 %v2259, 16
        %v2267 = vpop.permute.xlu0 %2266
        %2268 = vrot.lane.b32.xlu0 %v2261, 16
        %v2269 = vpop.permute.xlu0 %2268
        %2270 = vrot.lane.b32.xlu0 %v2263, 16
        %v2271 = vpop.permute.xlu0 %2270
        %2272 = vrot.lane.b32.xlu0 %v2265, 16
        %v2273 = vpop.permute.xlu0 %2272
        %2274 = vrot.lane.b32.xlu0 %v2264, 16
        %v2275 = vpop.permute.xlu0 %2274
        %v2282 = vrot.slane %v2191, 7
        %v2283 = vrot.slane %v2198, 7
        %v2284 = vsel %vm2181, %v2282, %v2283
        %v2285 = vrot.slane %v2205, 7
        %v2286 = vsel %vm2181, %v2283, %v2285
        %v2287 = vrot.slane %v2212, 7
        %v2288 = vsel %vm2181, %v2285, %v2287
        %v2289 = vrot.slane %v2219, 7
        %v2290 = vsel %vm2181, %v2287, %v2289
        %v2291 = vrot.slane %v2226, 7
        %v2292 = vsel %vm2181, %v2289, %v2291
        %2293 = vrot.lane.b32.xlu0 %v2284, 24
        %v2294 = vpop.permute.xlu0 %2293
        %2295 = vrot.lane.b32.xlu0 %v2286, 24
        %v2296 = vpop.permute.xlu0 %2295
        %2297 = vrot.lane.b32.xlu0 %v2288, 24
        %v2298 = vpop.permute.xlu0 %2297
        %2299 = vrot.lane.b32.xlu0 %v2290, 24
        %v2300 = vpop.permute.xlu0 %2299
        %2301 = vrot.lane.b32.xlu0 %v2292, 24
        %v2302 = vpop.permute.xlu0 %2301
        %2308 = vrot.lane.b32.xlu0 %v2198, 32
        %v2309 = vpop.permute.xlu0 %2308
        %2310 = vrot.lane.b32.xlu0 %v2205, 32
        %v2311 = vpop.permute.xlu0 %2310
        %2312 = vrot.lane.b32.xlu0 %v2212, 32
        %v2313 = vpop.permute.xlu0 %2312
        %2314 = vrot.lane.b32.xlu0 %v2219, 32
        %v2315 = vpop.permute.xlu0 %2314
        %2316 = vrot.lane.b32.xlu0 %v2226, 32
        %v2317 = vpop.permute.xlu0 %2316
        %v2323 = vrot.slane %v2226, 1
        %v2324 = vsel %vm446, %v2240, %v2323
        %2325 = vrot.lane.b32.xlu0 %v2237, 40
        %v2326 = vpop.permute.xlu0 %2325
        %2327 = vrot.lane.b32.xlu0 %v2239, 40
        %v2328 = vpop.permute.xlu0 %2327
        %2329 = vrot.lane.b32.xlu0 %v2241, 40
        %v2330 = vpop.permute.xlu0 %2329
        %2331 = vrot.lane.b32.xlu0 %v2324, 40
        %v2332 = vpop.permute.xlu0 %2331
        %2333 = vrot.lane.b32.xlu0 %v2323, 40
        %v2334 = vpop.permute.xlu0 %2333
        %v2341 = vrot.slane %v2198, 6
        %v2342 = vrot.slane %v2205, 6
        %v2343 = vsel %vm2183, %v2341, %v2342
        %v2344 = vrot.slane %v2212, 6
        %v2345 = vsel %vm2183, %v2342, %v2344
        %v2346 = vrot.slane %v2219, 6
        %v2347 = vsel %vm2183, %v2344, %v2346
        %v2348 = vrot.slane %v2226, 6
        %v2349 = vsel %vm2183, %v2346, %v2348
        %v2350 = vrot.slane %v2227, 6
        %v2351 = vsel %vm2183, %v2348, %v2350
        %2352 = vrot.lane.b32.xlu0 %v2343, 48
        %v2353 = vpop.permute.xlu0 %2352
        %2354 = vrot.lane.b32.xlu0 %v2345, 48
        %v2355 = vpop.permute.xlu0 %2354
        %2356 = vrot.lane.b32.xlu0 %v2347, 48
        %v2357 = vpop.permute.xlu0 %2356
        %2358 = vrot.lane.b32.xlu0 %v2349, 48
        %v2359 = vpop.permute.xlu0 %2358
        %2360 = vrot.lane.b32.xlu0 %v2351, 48
        %v2361 = vpop.permute.xlu0 %2360
        %v2367 = vrot.slane %v2227, 7
        %v2368 = vsel %vm2181, %v2291, %v2367
        %2369 = vrot.lane.b32.xlu0 %v2286, 56
        %v2370 = vpop.permute.xlu0 %2369
        %2371 = vrot.lane.b32.xlu0 %v2288, 56
        %v2372 = vpop.permute.xlu0 %2371
        %2373 = vrot.lane.b32.xlu0 %v2290, 56
        %v2374 = vpop.permute.xlu0 %2373
        %2375 = vrot.lane.b32.xlu0 %v2292, 56
        %v2376 = vpop.permute.xlu0 %2375
        %2377 = vrot.lane.b32.xlu0 %v2368, 56
        %v2378 = vpop.permute.xlu0 %2377
        %2384 = vrot.lane.b32.xlu0 %v2205, 64
        %v2385 = vpop.permute.xlu0 %2384
        %2386 = vrot.lane.b32.xlu0 %v2212, 64
        %v2387 = vpop.permute.xlu0 %2386
        %2388 = vrot.lane.b32.xlu0 %v2219, 64
        %v2389 = vpop.permute.xlu0 %2388
        %2390 = vrot.lane.b32.xlu0 %v2226, 64
        %v2391 = vpop.permute.xlu0 %2390
        %2392 = vrot.lane.b32.xlu0 %v2227, 64
        %v2393 = vpop.permute.xlu0 %2392
        %v2399 = vsel %vm1283, %v2191, %v2243
        %v2400 = vsel %vm1283, %v2198, %v2245
        %v2401 = vsel %vm1283, %v2205, %v2247
        %v2402 = vsel %vm1283, %v2212, %v2249
        %v2403 = vsel %vm1283, %v2219, %v2251
        %v2404 = vsel %vm1341, %v2399, %v2267
        %v2405 = vsel %vm1341, %v2400, %v2269
        %v2406 = vsel %vm1341, %v2401, %v2271
        %v2407 = vsel %vm1341, %v2402, %v2273
        %v2408 = vsel %vm1341, %v2403, %v2275
        %v2409 = vsel %vm1399, %v2404, %v2294
        %v2410 = vsel %vm1399, %v2405, %v2296
        %v2411 = vsel %vm1399, %v2406, %v2298
        %v2412 = vsel %vm1399, %v2407, %v2300
        %v2413 = vsel %vm1399, %v2408, %v2302
        %v2414 = vsel %vm1457, %v2409, %v2309
        %v2415 = vsel %vm1457, %v2410, %v2311
        %v2416 = vsel %vm1457, %v2411, %v2313
        %v2417 = vsel %vm1457, %v2412, %v2315
        %v2418 = vsel %vm1457, %v2413, %v2317
        %vm2419 = vcmask 326656
        %v2420 = vsel %vm2419, %v2414, %v2326
        %v2421 = vsel %vm2419, %v2415, %v2328
        %v2422 = vsel %vm2419, %v2416, %v2330
        %v2423 = vsel %vm2419, %v2417, %v2332
        %v2424 = vsel %vm2419, %v2418, %v2334
        %vm2425 = vcmask 392192
        %v2426 = vsel %vm2425, %v2420, %v2353
        %v2427 = vsel %vm2425, %v2421, %v2355
        %v2428 = vsel %vm2425, %v2422, %v2357
        %v2429 = vsel %vm2425, %v2423, %v2359
        %v2430 = vsel %vm2425, %v2424, %v2361
        %vm2431 = vcmask 457728
        %v2432 = vsel %vm2431, %v2426, %v2370
        %v2433 = vsel %vm2431, %v2427, %v2372
        %v2434 = vsel %vm2431, %v2428, %v2374
        %v2435 = vsel %vm2431, %v2429, %v2376
        %v2436 = vsel %vm2431, %v2430, %v2378
        %vm2437 = vcmask 523264
        %v2438 = vsel %vm2437, %v2432, %v2385
        %v2439 = vsel %vm2437, %v2433, %v2387
        %v2440 = vsel %vm2437, %v2434, %v2389
        %v2441 = vsel %vm2437, %v2435, %v2391
        %v2442 = vsel %vm2437, %v2436, %v2393
        %v2443 = vld [vmem:[%s3] sm:$0xff]
        %v2444 = vld [vmem:[%s3 + $0x8] sm:$0xff]
        %v2445 = vld [vmem:[%s3 + $0x10] sm:$0xff]
        %v2446 = vld [vmem:[%s3 + $0x18] sm:$0xff]
        %v2447 = vld [vmem:[%s3 + $0x20] sm:$0xff]
        %v2448 = vld [vmem:[%s3 + $0x28] sm:$0xff]
        %v2449 = vld [vmem:[%s3 + $0x30] sm:$0xff]
        %v2450 = vld [vmem:[%s3 + $0x38] sm:$0xff]
        %v2451 = vld [vmem:[%s3 + $0x40] sm:$0xff]
        %v2452 = vld [vmem:[%s4] sm:$0x1]
        %v2454 = vlaneseq
        %v2455 = vshrl.u32 %v2454, 7
        %v2456 = vsub.s32 0, %v2455
        %v2457 = vrot.slane %v2452, %v2456
        %vm2459 = vcmask 588800
        %v2461 = vsel %vm2459, %v2438, 0
        %v2464 = vsel %vm2459, %v2439, 0
        %v2467 = vsel %vm2459, %v2440, 0
        %v2470 = vsel %vm2459, %v2441, 0
        %v2473 = vsel %vm2459, %v2442, 0
        %2475 = vmatprep.subr.mxu0 0.0
        %2476 = vmatpush1.msra.mxu0 %v2443
        %2477 = vmatprep.subr.mxu0 0.0
        %2478 = vmatpush1.msra.mxu0 %v2444
        %2479 = vmatprep.subr.mxu0 0.0
        %2480 = vmatpush1.msra.mxu0 %v2445
        %2481 = vmatprep.subr.mxu0 0.0
        %2482 = vmatpush1.msra.mxu0 %v2446
        %2483 = vmatprep.subr.mxu0 0.0
        %2484 = vmatpush1.msra.mxu0 %v2447
        %2485 = vmatprep.subr.mxu0 0.0
        %2486 = vmatpush1.msra.mxu0 %v2448
        %2487 = vmatprep.subr.mxu0 0.0
        %2488 = vmatpush1.msra.mxu0 %v2449
        %2489 = vmatprep.subr.mxu0 0.0
        %2490 = vmatpush1.msra.mxu0 %v2450
        %2491 = vmatprep.subr.mxu0 0.0
        %2492 = vmatpush1.msra.mxu0 %v2451
        %2493 = vmatprep.subr.mxu0 0.0
        %2494 = vmatpush1.msra.mxu0 0.0
        %2495 = vmatprep.subr.mxu0 0.0
        %2496 = vmatpush1.msra.mxu0 0.0
        %2497 = vmatprep.subr.mxu0 0.0
        %2498 = vmatpush1.msra.mxu0 0.0
        %2499 = vmatprep.subr.mxu0 0.0
        %2500 = vmatpush1.msra.mxu0 0.0
        %2501 = vmatprep.subr.mxu0 0.0
        %2502 = vmatpush1.msra.mxu0 0.0
        %2503 = vmatprep.subr.mxu0 0.0
        %2504 = vmatpush1.msra.mxu0 0.0
        %2505 = vmatprep.subr.mxu0 0.0
        %2506 = vmatpush1.msra.mxu0 0.0
        %2507 = vmatprep.subr.mxu0 0.0
        %2508 = vmatpush1.msra.mxu0 0.0
        %2509 = vmatprep.subr.mxu0 0.0
        %2510 = vmatpush1.msra.mxu0 0.0
        %2511 = vmatprep.subr.mxu0 0.0
        %2512 = vmatpush1.msra.mxu0 0.0
        %2513 = vmatprep.subr.mxu0 0.0
        %2514 = vmatpush1.msra.mxu0 0.0
        %2515 = vmatprep.subr.mxu0 0.0
        %2516 = vmatpush1.msra.mxu0 0.0
        %2517 = vmatprep.subr.mxu0 0.0
        %2518 = vmatpush1.msra.mxu0 0.0
        %2519 = vmatprep.subr.mxu0 0.0
        %2520 = vmatpush1.msra.mxu0 0.0
        %2521 = vmatprep.subr.mxu0 0.0
        %2522 = vmatpush1.msra.mxu0 0.0
        %2523 = vmatprep.subr.mxu0 0.0
        %2524 = vmatpush1.msra.mxu0 0.0
        %2525 = vmatprep.subr.mxu0 0.0
        %2526 = vmatpush1.msra.mxu0 0.0
        %2527 = vmatprep.subr.mxu0 0.0
        %2528 = vmatpush1.msra.mxu0 0.0
        %2529 = vmatprep.subr.mxu0 0.0
        %2530 = vmatpush1.msra.mxu0 0.0
        %2531 = vmatprep.subr.mxu0 0.0
        %2532 = vmatpush1.msra.mxu0 0.0
        %2533 = vmatprep.subr.mxu0 0.0
        %2534 = vmatpush1.msra.mxu0 0.0
        %2535 = vmatprep.subr.mxu0 0.0
        %2536 = vmatpush1.msra.mxu0 0.0
        %2537 = vmatprep.subr.mxu0 0.0
        %2538 = vmatpush1.msra.mxu0 0.0
        %2539 = vmatprep.mubr.f32.mxu0 0.0
        %2540 = vmatmul.mubr.f32.gmra.mrb[0].mxu0 %v2461
        %v2541 = vpop.f32.mrb[0].mxu0
        %v2542 = vadd.f32 %v2457, %v2541
        %v2543 = vpop.f32.mrb[0].mxu0
        %2544 = vmatprep.mubr.f32.mxu0 0.0
        %2545 = vmatmul.mubr.f32.gmra.mrb[0].mxu0 %v2464
        %v2546 = vpop.f32.mrb[0].mxu0
        %v2547 = vadd.f32 %v2457, %v2546
        %v2548 = vpop.f32.mrb[0].mxu0
        %2549 = vmatprep.mubr.f32.mxu0 0.0
        %2550 = vmatmul.mubr.f32.gmra.mrb[0].mxu0 %v2467
        %v2551 = vpop.f32.mrb[0].mxu0
        %v2552 = vadd.f32 %v2457, %v2551
        %v2553 = vpop.f32.mrb[0].mxu0
        %2554 = vmatprep.mubr.f32.mxu0 0.0
        %2555 = vmatmul.mubr.f32.gmra.mrb[0].mxu0 %v2470
        %v2556 = vpop.f32.mrb[0].mxu0
        %v2557 = vadd.f32 %v2457, %v2556
        %v2558 = vpop.f32.mrb[0].mxu0
        %2559 = vmatprep.mubr.f32.mxu0 0.0
        %2560 = vmatmul.mubr.f32.gmra.mrb[0].mxu0 %v2473
        %v2561 = vpop.f32.mrb[0].mxu0
        %v2562 = vpop.f32.mrb[0].mxu0
        %2563 = vdwg.mxu0
        %v2564 = vmax.f32 %v2542, 0.0
        %v2565 = vmax.f32 %v2547, 0.0
        %v2566 = vmax.f32 %v2552, 0.0
        %v2567 = vmax.f32 %v2557, 0.0
        %v2570 = vrot.slane %v2564, 7
        %v2571 = vrot.slane %v2565, 7
        %v2572 = vsel %vm2181, %v2570, %v2571
        %v2574 = vmax.f32 %v2564, %v2572
        %vm2575 = vcmask 91136
        %v2576 = vsel %vm2575, %v2574, -inf
        %v2577 = vrot.slane %v2576, 4
        %v2578 = vmax.f32 %v2576, %v2577
        %v2579 = vrot.slane %v2578, 2
        %v2580 = vmax.f32 %v2578, %v2579
        %v2581 = vrot.slane %v2580, 1
        %v2582 = vmax.f32 %v2580, %v2581
        %vm2583 = vcmask 93186
        %v2584 = vsel %vm2583, %v2574, -inf
        %v2585 = vrot.slane %v2584, 4
        %v2586 = vmax.f32 %v2584, %v2585
        %v2587 = vrot.slane %v2586, 2
        %v2588 = vmax.f32 %v2586, %v2587
        %v2589 = vrot.slane %v2588, 1
        %v2590 = vmax.f32 %v2588, %v2589
        %v2593 = vrot.slane %v2566, 7
        %v2594 = vrot.slane %v2567, 7
        %v2595 = vsel %vm2181, %v2593, %v2594
        %v2598 = vmax.f32 %v2565, %v2593
        %v2599 = vmax.f32 %v2566, %v2595
        %vm2600 = vcmask 97286
        %v2601 = vsel %vm2600, %v2598, -inf
        %v2602 = vrot.slane %v2601, 4
        %v2603 = vmax.f32 %v2601, %v2602
        %v2604 = vrot.slane %v2603, 2
        %v2605 = vmax.f32 %v2603, %v2604
        %v2606 = vrot.slane %v2605, 1
        %v2607 = vmax.f32 %v2605, %v2606
        %v2608 = vsel %vm2575, %v2599, -inf
        %v2609 = vrot.slane %v2608, 4
        %v2610 = vmax.f32 %v2608, %v2609
        %v2611 = vrot.slane %v2610, 2
        %v2612 = vmax.f32 %v2610, %v2611
        %v2613 = vrot.slane %v2612, 1
        %v2614 = vmax.f32 %v2612, %v2613
        %2616 = vrot.lane.b32.xlu0 %v2590, 12
        %v2617 = vpop.permute.xlu0 %2616
        %2620 = vrot.lane.b32.xlu0 %v2607, 24
        %v2621 = vpop.permute.xlu0 %2620
        %2624 = vrot.lane.b32.xlu0 %v2614, 36
        %v2625 = vpop.permute.xlu0 %2624
        %v2627 = vsel %vm1312, %v2582, %v2617
        %v2628 = vsel %vm1399, %v2627, %v2621
        %v2629 = vsel %vm1498, %v2628, %v2625
        %v2630 = vld [vmem:[%s5] sm:$0xff]
        %v2631 = vld [vmem:[%s5 + $0x8] sm:$0xff]
        %v2632 = vld [vmem:[%s5 + $0x10] sm:$0xff]
        %v2633 = vld [vmem:[%s5 + $0x18] sm:$0xff]
        %v2634 = vld [vmem:[%s5 + $0x20] sm:$0xff]
        %v2635 = vld [vmem:[%s5 + $0x28] sm:$0xff]
        %v2636 = vld [vmem:[%s6] sm:$0x1]
        %v2638 = vsel %vm2425, %v2629, 0
        %2640 = vmatprep.subr.mxu0 0.0
        %2641 = vmatpush1.msra.mxu0 %v2630
        %2642 = vmatprep.subr.mxu0 0.0
        %2643 = vmatpush1.msra.mxu0 %v2631
        %2644 = vmatprep.subr.mxu0 0.0
        %2645 = vmatpush1.msra.mxu0 %v2632
        %2646 = vmatprep.subr.mxu0 0.0
        %2647 = vmatpush1.msra.mxu0 %v2633
        %2648 = vmatprep.subr.mxu0 0.0
        %2649 = vmatpush1.msra.mxu0 %v2634
        %2650 = vmatprep.subr.mxu0 0.0
        %2651 = vmatpush1.msra.mxu0 %v2635
        %2652 = vmatprep.subr.mxu0 0.0
        %2653 = vmatpush1.msra.mxu0 0.0
        %2654 = vmatprep.subr.mxu0 0.0
        %2655 = vmatpush1.msra.mxu0 0.0
        %2656 = vmatprep.subr.mxu0 0.0
        %2657 = vmatpush1.msra.mxu0 0.0
        %2658 = vmatprep.subr.mxu0 0.0
        %2659 = vmatpush1.msra.mxu0 0.0
        %2660 = vmatprep.subr.mxu0 0.0
        %2661 = vmatpush1.msra.mxu0 0.0
        %2662 = vmatprep.subr.mxu0 0.0
        %2663 = vmatpush1.msra.mxu0 0.0
        %2664 = vmatprep.subr.mxu0 0.0
        %2665 = vmatpush1.msra.mxu0 0.0
        %2666 = vmatprep.subr.mxu0 0.0
        %2667 = vmatpush1.msra.mxu0 0.0
        %2668 = vmatprep.subr.mxu0 0.0
        %2669 = vmatpush1.msra.mxu0 0.0
        %2670 = vmatprep.subr.mxu0 0.0
        %2671 = vmatpush1.msra.mxu0 0.0
        %2672 = vmatprep.subr.mxu0 0.0
        %2673 = vmatpush1.msra.mxu0 0.0
        %2674 = vmatprep.subr.mxu0 0.0
        %2675 = vmatpush1.msra.mxu0 0.0
        %2676 = vmatprep.subr.mxu0 0.0
        %2677 = vmatpush1.msra.mxu0 0.0
        %2678 = vmatprep.subr.mxu0 0.0
        %2679 = vmatpush1.msra.mxu0 0.0
        %2680 = vmatprep.subr.mxu0 0.0
        %2681 = vmatpush1.msra.mxu0 0.0
        %2682 = vmatprep.subr.mxu0 0.0
        %2683 = vmatpush1.msra.mxu0 0.0
        %2684 = vmatprep.subr.mxu0 0.0
        %2685 = vmatpush1.msra.mxu0 0.0
        %2686 = vmatprep.subr.mxu0 0.0
        %2687 = vmatpush1.msra.mxu0 0.0
        %2688 = vmatprep.subr.mxu0 0.0
        %2689 = vmatpush1.msra.mxu0 0.0
        %2690 = vmatprep.subr.mxu0 0.0
        %2691 = vmatpush1.msra.mxu0 0.0
        %2692 = vmatprep.subr.mxu0 0.0
        %2693 = vmatpush1.msra.mxu0 0.0
        %2694 = vmatprep.subr.mxu0 0.0
        %2695 = vmatpush1.msra.mxu0 0.0
        %2696 = vmatprep.subr.mxu0 0.0
        %2697 = vmatpush1.msra.mxu0 0.0
        %2698 = vmatprep.subr.mxu0 0.0
        %2699 = vmatpush1.msra.mxu0 0.0
        %2700 = vmatprep.subr.mxu0 0.0
        %2701 = vmatpush1.msra.mxu0 0.0
        %2702 = vmatprep.subr.mxu0 0.0
        %2703 = vmatpush1.msra.mxu0 0.0
        %2704 = vmatprep.mubr.f32.mxu0 0.0
        %2705 = vmatmul.mubr.f32.gmra.mrb[0].mxu0 %v2638
        %v2706 = vpop.f32.mrb[0].mxu0
        %v2707 = vadd.f32 %v2636, %v2706
        %v2708 = vpop.f32.mrb[0].mxu0
        %2709 = vdwg.mxu0
        %v2710 = vmax.f32 %v2707, 0.0
        %v2711 = vld [vmem:[%s7] sm:$0xff]
        %v2712 = vld [vmem:[%s7 + $0x8] sm:$0xff]
        %v2713 = vld [vmem:[%s7 + $0x10] sm:$0xff]
        %v2714 = vld [vmem:[%s7 + $0x18] sm:$0xff]
        %v2715 = vld [vmem:[%s8] sm:$0x1]
        %v2717 = vsel %vm1457, %v2710, 0
        %2719 = vmatprep.subr.mxu0 0.0
        %2720 = vmatpush1.msra.mxu0 %v2711
        %2721 = vmatprep.subr.mxu0 0.0
        %2722 = vmatpush1.msra.mxu0 %v2712
        %2723 = vmatprep.subr.mxu0 0.0
        %2724 = vmatpush1.msra.mxu0 %v2713
        %2725 = vmatprep.subr.mxu0 0.0
        %2726 = vmatpush1.msra.mxu0 %v2714
        %2727 = vmatprep.subr.mxu0 0.0
        %2728 = vmatpush1.msra.mxu0 0.0
        %2729 = vmatprep.subr.mxu0 0.0
        %2730 = vmatpush1.msra.mxu0 0.0
        %2731 = vmatprep.subr.mxu0 0.0
        %2732 = vmatpush1.msra.mxu0 0.0
        %2733 = vmatprep.subr.mxu0 0.0
        %2734 = vmatpush1.msra.mxu0 0.0
        %2735 = vmatprep.subr.mxu0 0.0
        %2736 = vmatpush1.msra.mxu0 0.0
        %2737 = vmatprep.subr.mxu0 0.0
        %2738 = vmatpush1.msra.mxu0 0.0
        %2739 = vmatprep.subr.mxu0 0.0
        %2740 = vmatpush1.msra.mxu0 0.0
        %2741 = vmatprep.subr.mxu0 0.0
        %2742 = vmatpush1.msra.mxu0 0.0
        %2743 = vmatprep.subr.mxu0 0.0
        %2744 = vmatpush1.msra.mxu0 0.0
        %2745 = vmatprep.subr.mxu0 0.0
        %2746 = vmatpush1.msra.mxu0 0.0
        %2747 = vmatprep.subr.mxu0 0.0
        %2748 = vmatpush1.msra.mxu0 0.0
        %2749 = vmatprep.subr.mxu0 0.0
        %2750 = vmatpush1.msra.mxu0 0.0
        %2751 = vmatprep.subr.mxu0 0.0
        %2752 = vmatpush1.msra.mxu0 0.0
        %2753 = vmatprep.subr.mxu0 0.0
        %2754 = vmatpush1.msra.mxu0 0.0
        %2755 = vmatprep.subr.mxu0 0.0
        %2756 = vmatpush1.msra.mxu0 0.0
        %2757 = vmatprep.subr.mxu0 0.0
        %2758 = vmatpush1.msra.mxu0 0.0
        %2759 = vmatprep.subr.mxu0 0.0
        %2760 = vmatpush1.msra.mxu0 0.0
        %2761 = vmatprep.subr.mxu0 0.0
        %2762 = vmatpush1.msra.mxu0 0.0
        %2763 = vmatprep.subr.mxu0 0.0
        %2764 = vmatpush1.msra.mxu0 0.0
        %2765 = vmatprep.subr.mxu0 0.0
        %2766 = vmatpush1.msra.mxu0 0.0
        %2767 = vmatprep.subr.mxu0 0.0
        %2768 = vmatpush1.msra.mxu0 0.0
        %2769 = vmatprep.subr.mxu0 0.0
        %2770 = vmatpush1.msra.mxu0 0.0
        %2771 = vmatprep.subr.mxu0 0.0
        %2772 = vmatpush1.msra.mxu0 0.0
        %2773 = vmatprep.subr.mxu0 0.0
        %2774 = vmatpush1.msra.mxu0 0.0
        %2775 = vmatprep.subr.mxu0 0.0
        %2776 = vmatpush1.msra.mxu0 0.0
        %2777 = vmatprep.subr.mxu0 0.0
        %2778 = vmatpush1.msra.mxu0 0.0
        %2779 = vmatprep.subr.mxu0 0.0
        %2780 = vmatpush1.msra.mxu0 0.0
        %2781 = vmatprep.subr.mxu0 0.0
        %2782 = vmatpush1.msra.mxu0 0.0
        %2783 = vmatprep.mubr.f32.mxu0 0.0
        %2784 = vmatmul.mubr.f32.gmra.mrb[0].mxu0 %v2717
        %v2785 = vpop.f32.mrb[0].mxu0
        %v2786 = vadd.f32 %v2715, %v2785
        %v2787 = vpop.f32.mrb[0].mxu0
        %2788 = vdwg.mxu0
        %v2789 = vmax.f32 %v2786, 0.0
        %v2790 = vld [vmem:[%s9] sm:$0xff]
        %v2791 = vld [vmem:[%s9 + $0x8] sm:$0xff]
        %v2792 = vld [vmem:[%s10] sm:$0x1]
        %v2794 = vsel %vm1341, %v2789, 0
        %2796 = vmatprep.subr.mxu0 0.0
        %2797 = vmatpush1.msra.mxu0 %v2790
        %2798 = vmatprep.subr.mxu0 0.0
        %2799 = vmatpush1.msra.mxu0 %v2791
        %2800 = vmatprep.subr.mxu0 0.0
        %2801 = vmatpush1.msra.mxu0 0.0
        %2802 = vmatprep.subr.mxu0 0.0
        %2803 = vmatpush1.msra.mxu0 0.0
        %2804 = vmatprep.subr.mxu0 0.0
        %2805 = vmatpush1.msra.mxu0 0.0
        %2806 = vmatprep.subr.mxu0 0.0
        %2807 = vmatpush1.msra.mxu0 0.0
        %2808 = vmatprep.subr.mxu0 0.0
        %2809 = vmatpush1.msra.mxu0 0.0
        %2810 = vmatprep.subr.mxu0 0.0
        %2811 = vmatpush1.msra.mxu0 0.0
        %2812 = vmatprep.subr.mxu0 0.0
        %2813 = vmatpush1.msra.mxu0 0.0
        %2814 = vmatprep.subr.mxu0 0.0
        %2815 = vmatpush1.msra.mxu0 0.0
        %2816 = vmatprep.subr.mxu0 0.0
        %2817 = vmatpush1.msra.mxu0 0.0
        %2818 = vmatprep.subr.mxu0 0.0
        %2819 = vmatpush1.msra.mxu0 0.0
        %2820 = vmatprep.subr.mxu0 0.0
        %2821 = vmatpush1.msra.mxu0 0.0
        %2822 = vmatprep.subr.mxu0 0.0
        %2823 = vmatpush1.msra.mxu0 0.0
        %2824 = vmatprep.subr.mxu0 0.0
        %2825 = vmatpush1.msra.mxu0 0.0
        %2826 = vmatprep.subr.mxu0 0.0
        %2827 = vmatpush1.msra.mxu0 0.0
        %2828 = vmatprep.subr.mxu0 0.0
        %2829 = vmatpush1.msra.mxu0 0.0
        %2830 = vmatprep.subr.mxu0 0.0
        %2831 = vmatpush1.msra.mxu0 0.0
        %2832 = vmatprep.subr.mxu0 0.0
        %2833 = vmatpush1.msra.mxu0 0.0
        %2834 = vmatprep.subr.mxu0 0.0
        %2835 = vmatpush1.msra.mxu0 0.0
        %2836 = vmatprep.subr.mxu0 0.0
        %2837 = vmatpush1.msra.mxu0 0.0
        %2838 = vmatprep.subr.mxu0 0.0
        %2839 = vmatpush1.msra.mxu0 0.0
        %2840 = vmatprep.subr.mxu0 0.0
        %2841 = vmatpush1.msra.mxu0 0.0
        %2842 = vmatprep.subr.mxu0 0.0
        %2843 = vmatpush1.msra.mxu0 0.0
        %2844 = vmatprep.subr.mxu0 0.0
        %2845 = vmatpush1.msra.mxu0 0.0
        %2846 = vmatprep.subr.mxu0 0.0
        %2847 = vmatpush1.msra.mxu0 0.0
        %2848 = vmatprep.subr.mxu0 0.0
        %2849 = vmatpush1.msra.mxu0 0.0
        %2850 = vmatprep.subr.mxu0 0.0
        %2851 = vmatpush1.msra.mxu0 0.0
        %2852 = vmatprep.subr.mxu0 0.0
        %2853 = vmatpush1.msra.mxu0 0.0
        %2854 = vmatprep.subr.mxu0 0.0
        %2855 = vmatpush1.msra.mxu0 0.0
        %2856 = vmatprep.subr.mxu0 0.0
        %2857 = vmatpush1.msra.mxu0 0.0
        %2858 = vmatprep.subr.mxu0 0.0
        %2859 = vmatpush1.msra.mxu0 0.0
        %2860 = vmatprep.mubr.f32.mxu0 0.0
        %2861 = vmatmul.mubr.f32.gmra.mrb[0].mxu0 %v2794
        %v2862 = vpop.f32.mrb[0].mxu0
        %v2863 = vadd.f32 %v2792, %v2862
        %v2864 = vpop.f32.mrb[0].mxu0
        %2865 = vdwg.mxu0
        %v2866 = vsub.f32 0.0, %v2863
        %v2867 = vmul.f32 %v2866, 1.442695
        %v2868 = vpow.pop %v2867
        %v2869 = vadd.f32 %v2868, 1.0
        %v2870 = vrcp.pop %v2869
        %v2871 = vmul.f32 1.0, %v2870
        %vm2872 = vcmask 73728
        %2873 = vst.msk [vmem:[%s378] sm:$0x1] %vm2872, %v2871
        %s2874 = sand.u32 %s269, 1
        %s2875 = scalar_lea.sflag [#allocation3], %s2874
        %s2876 = sand.u32 %s269, 1
        %s2877 = scalar_lea.vmem [#allocation2], %s2876
        // Predicated region
        $region65: #{_lambda_.1} parent=63 // pred_check
          %p2878 = pneg %p279
        $region66: #{_lambda_.1} parent=63 // pred_check_branch
          %2880 = sbr.rel (%p2878) target = $region68
        $region67: #{_lambda_.1} parent=63 // pred_region
          %s2882 = ssub.s32 16, 16
          %2883 = vsyncadd %s2875, %s2882
          %s2884 = smul.addr %s25, 16
          %s2885 = scalar_lea.hbm %s11, %s2884
          %s2887 = sshll.u32 %s2877, 4
          %s2888 = int_to_ptr.vmem [resolvable:$true] %s2887
          %2890 = dma.vmem_to_hbm [thread:$0]  %s2888, 16, %s2885, %s2875
        $region68: #{_lambda_.1} parent=63 // pred_fallthru
          _
      $region64: #{_lambda_.1} parent=5 // pred_fallthru
        _
      %p2891 = scmp.le.s32.totalorder 2, %s20
      // Predicated region
      $region69: #{_lambda_.1} parent=5 // pred_check
        %p2892 = pneg %p2891
      $region70: #{_lambda_.1} parent=5 // pred_check_branch
        %2894 = sbr.rel (%p2892) target = $region72
      $region71: #{_lambda_.1} parent=5 // pred_region
        %s2895 = ssub.s32 %s20, 2
        // Predicated region
        $region73: #{_lambda_.1} parent=71 // pred_check
          %p2896 = pneg %p285
        $region74: #{_lambda_.1} parent=71 // pred_check_branch
          %2898 = sbr.rel (%p2896) target = $region76
        $region75: #{_lambda_.1} parent=71 // pred_region
          %s2899 = sand.u32 %s270, 1
          %s2900 = scalar_lea.sflag [#allocation3], %s2899
          %s2901 = sand.u32 %s270, 1
          %s2902 = scalar_lea.vmem [#allocation2], %s2901
          %2903 = dma.done %s2900, 16
        $region76: #{_lambda_.1} parent=71 // pred_fallthru
          _
      $region72: #{_lambda_.1} parent=5 // pred_fallthru
        _
    $region6: #{_lambda_.1} parent=1 // loop_footer
      %s24 = sadd.s32 1, %s20
    $region7: #{_lambda_.1} parent=1 // loop_footer_branch
      %19 = sbr.rel target = $region3
    $region8: #{_lambda_.1} parent=1 // loop_exit
      _
    %2904 = vsyncpa [#allocation3], 1
    %s2905 = scalar_lea.sflag [#allocation3], 1
    %2906 = vsyncpa %s2905, 1

</llo_original>
